<compile_context>
chip_gen: v7x
topology: tpu7x:2x2x1
jax: 0.10.0
libtpu: 0.0.40
codegen_flags: <defaults>
</compile_context>

<pallas_src>
import functools
import math

import jax
import jax.numpy as jnp
from jax.experimental import pallas as pl
from jax.experimental.pallas import tpu as pltpu


def _tarnn_lstm_kernel(x_ref, bias_ref, wx_hbm, wh_hbm,            # inputs
                       out_ref, state_ref,                          # outputs
                       h_state, tp_carry, z_buf, wx_vmem, wh_vmem, sems,   # scratch
                       *, chunk, hidden, t_total, unroll, needs_mask):
    """One grid step == one time chunk (grid axis 0 is sequential)."""
    t = pl.program_id(0)
    two_h = 2 * hidden
    gate_w = 4 * two_h            # 8H : gate pre-activations
    full_w = gate_w + two_h       # 10H: gates + (bx | bh) column block
    bb = h_state.shape[0]         # padded batch

    # ---- one-time init: single-buffered weight copies + zero state -----------------------
    @pl.when(t == 0)
    def _init():
        cp_x = pltpu.make_async_copy(wx_hbm, wx_vmem, sems.at[0])
        cp_h = pltpu.make_async_copy(wh_hbm, wh_vmem, sems.at[1])
        cp_x.start()
        cp_h.start()
        cp_x.wait()                      # x-projection weights are needed right below
        h_state[...] = jnp.zeros_like(h_state)

    # ---- chunk-wide x projection: ONE MXU matmul with M = chunk * bb ---------------------
    i_dim = x_ref.shape[-1]
    x2 = x_ref[...].reshape(chunk * bb, i_dim).astype(wx_vmem.dtype)
    g = jnp.dot(x2, wx_vmem[...], preferred_element_type=jnp.float32)   # (chunk*bb, 18H)
    g = g.reshape(chunk, bb, 2 * gate_w + two_h)
    gates_x = g[:, :, :gate_w] + bias_ref[...]        # x@W_ih.T + (b_ih + b_hh), one bcast/chunk
    bx      = g[:, :, gate_w:full_w]                  # x@W_bx.T
    tp_cur  = g[:, :, full_w:]                        # x@W_tp_ih.T

    @pl.when(t == 0)
    def _seed_tp():
        tp_carry[...] = tp_cur[0]                     # module: old_input := input at step 0

    if chunk > 1:
        tp_shift = jnp.concatenate([tp_carry[...][None], tp_cur[:chunk - 1]], axis=0)
    else:
        tp_shift = tp_carry[...][None]
    z_buf[:, :, :gate_w] = gates_x + tp_shift         # full gate pre-acts minus the h term
    z_buf[:, :, gate_w:full_w] = bx
    tp_carry[...] = tp_cur[chunk - 1]                 # carry x_last@W_tp to the next chunk

    @pl.when(t == 0)
    def _wait_wh():
        # Overlapped with the chunk-wide matmul above; needed before the recurrence.
        pltpu.make_async_copy(wh_hbm, wh_vmem, sems.at[1]).wait()

    # ---- serial recurrence: tiny (bb, 2H)@(2H, 10H) matmul + elementwise per step --------
    base = t * chunk

    def step(i, h):
        z = z_buf[i]                                                     # (bb, 10H)
        zh = jnp.dot(h.astype(wh_vmem.dtype), wh_vmem[...],
                     preferred_element_type=jnp.float32)                 # (bb, 10H)
        gate = z[:, :gate_w] + zh[:, :gate_w]
        ingate     = jax.nn.sigmoid(gate[:, 0 * two_h:1 * two_h])
        forgetgate = jax.nn.sigmoid(gate[:, 1 * two_h:2 * two_h])
        cellgate   = jnp.tanh(      gate[:, 2 * two_h:3 * two_h])
        outgate    = jax.nn.sigmoid(gate[:, 3 * two_h:4 * two_h])
        b = z[:, gate_w:] + zh[:, gate_w:]                               # bx + bh
        h_new = forgetgate * h + ingate * (cellgate + b)
        h_new = outgate * jnp.tanh(h_new)
        if needs_mask:                                                   # padded tail steps
            h_new = jnp.where(base + i < t_total, h_new, h)
        out_ref[i] = h_new[:, :hidden].astype(out_ref.dtype)             # p = first half of h
        return h_new

    h_fin = jax.lax.fori_loop(0, chunk, step, h_state[...], unroll=unroll)
    h_state[...] = h_fin                                                 # one store per chunk

    @pl.when(t == pl.num_programs(0) - 1)
    def _final():
        state_ref[...] = h_fin.astype(state_ref.dtype)                   # single final store


def b_tarnn_lstm_forward(inputs, params, *, max_chunk=32, x_weight_dtype=None):
    """Pallas implementation of B_TARNN_LSTM.forward (K == 1, zero initial state).

    inputs: (T, B, input_size). Returns (output (T, B, H), (h (1, B, H), c (1, B, H))).
    x_weight_dtype: e.g. jnp.bfloat16 to halve the resident x-side weight slab (W_hh stays f32).
    """
    T, B, I = inputs.shape
    H = params["weight_bx"].shape[0] // 2
    two_h = 2 * H
    gate_w = 4 * two_h
    full_w = gate_w + two_h
    wx_w = 2 * gate_w + two_h

    # ---- host-side weight fusion ----------------------------------------------------------
    # x-side (chunk-wide matmul): cols = [gates (8H) | bx (2H) | tp (8H)]
    wx = jnp.concatenate([params["weight_ih"].T, params["weight_bx"].T,
                          params["weight_tp_ih"].T], axis=1)                    # (I, 18H)
    if x_weight_dtype is not None:
        wx = wx.astype(x_weight_dtype)
    # h-side (serial critical path, kept f32): cols = [gates (8H) | bh (2H)]
    wh = jnp.concatenate([params["weight_hh"].T, params["weight_bh"].T], axis=1)  # (2H, 10H)
    bias = (params["bias_ih"] + params["bias_hh"]).astype(jnp.float32)[None, :]   # (1, 8H)

    # ---- batch padded to the f32 sublane multiple (8); time padded to a chunk multiple ----
    bb = max(8, ((B + 7) // 8) * 8)
    chunk = max(1, min(max_chunk, T))

    act_bytes = jnp.dtype(inputs.dtype).itemsize

    def est_bytes(c):
        return (wx.size * wx.dtype.itemsize + wh.size * wh.dtype.itemsize   # resident weights
                + c * bb * full_w * 4                                        # z_buf scratch
                + c * bb * wx_w * 4                                          # G temporary
                + bb * (gate_w + two_h) * 4                                  # tp_carry + h state
                + 2 * c * bb * I * act_bytes                                 # x chunk (dbl buf)
                + 2 * c * bb * H * act_bytes                                 # out chunk (dbl buf)
                + 2 * bb * two_h * act_bytes + 4 * gate_w * 4)               # state out + bias

    try:
        vmem_cap = int(pltpu.get_tpu_info().vmem_capacity_bytes)             # 64 MiB on v7x
    except Exception:
        vmem_cap = 64 << 20
    while chunk > 1 and est_bytes(chunk) > (vmem_cap * 11) // 20:            # keep headroom
        chunk = max(1, chunk // 2)

    n_chunks = pl.cdiv(T, chunk)
    t_pad = n_chunks * chunk
    needs_mask = (t_pad != T)

    x = inputs
    if t_pad != T or bb != B:
        x = jnp.pad(inputs, ((0, t_pad - T), (0, bb - B), (0, 0)))

    unroll = max(1, min(chunk, 8))
    vmem_limit = min(max(int(est_bytes(chunk) * 3 // 2) + (4 << 20), 32 << 20),
                     (vmem_cap * 7) // 8)

    kernel = functools.partial(_tarnn_lstm_kernel, chunk=chunk, hidden=H,
                               t_total=T, unroll=unroll, needs_mask=needs_mask)

    grid_spec = pltpu.PrefetchScalarGridSpec(
        num_scalar_prefetch=0,
        grid=(n_chunks,),
        in_specs=[
            pl.BlockSpec((chunk, bb, I), lambda t: (t, 0, 0)),     # x time-chunk
            pl.BlockSpec((1, gate_w), lambda t: (0, 0)),           # fused bias (b_ih + b_hh)
            pl.BlockSpec(memory_space=pl.ANY),                     # x-side weights (HBM)
            pl.BlockSpec(memory_space=pl.ANY),                     # h-side weights (HBM)
        ],
        out_specs=[
            pl.BlockSpec((chunk, bb, H), lambda t: (t, 0, 0)),     # per-step outputs p
            pl.BlockSpec((bb, two_h), lambda t: (0, 0)),           # final [h, c]
        ],
        scratch_shapes=[
            pltpu.VMEM((bb, two_h), jnp.float32),                  # recurrent state [h, c]
            pltpu.VMEM((bb, gate_w), jnp.float32),                 # x_{t-1}@W_tp carry
            pltpu.VMEM((chunk, bb, full_w), jnp.float32),          # per-chunk gate precompute
            pltpu.VMEM(wx.shape, wx.dtype),                        # resident x weights (1 buf)
            pltpu.VMEM(wh.shape, wh.dtype),                        # resident h weights (1 buf)
            pltpu.SemaphoreType.DMA((2,)),                         # weight-copy semaphores
        ],
    )

    out, state_fin = pl.pallas_call(
        kernel,
        grid_spec=grid_spec,
        out_shape=(
            jax.ShapeDtypeStruct((t_pad, bb, H), inputs.dtype),
            jax.ShapeDtypeStruct((bb, two_h), inputs.dtype),
        ),
        compiler_params=pltpu.CompilerParams(
            dimension_semantics=("arbitrary",),
            vmem_limit_bytes=int(vmem_limit),
        ),
    )(x, bias, wx, wh)

    out = out[:T, :B]
    state_fin = state_fin[:B]
    return out, (state_fin[:, :H][None], state_fin[:, H:][None])


def init_params(key, input_size, hidden_size):
    """Matches reset_parameters(): every parameter ~ U(-1/sqrt(H), 1/sqrt(H))."""
    stdv = 1.0 / math.sqrt(hidden_size)
    shapes = {
        "weight_ih":    (4 * 2 * hidden_size, input_size),
        "weight_hh":    (4 * 2 * hidden_size, 2 * hidden_size),
        "bias_ih":      (4 * 2 * hidden_size,),
        "bias_hh":      (4 * 2 * hidden_size,),
        "weight_bx":    (2 * hidden_size, input_size),
        "weight_bh":    (2 * hidden_size, 2 * hidden_size),
        "weight_tp_ih": (4 * 2 * hidden_size, input_size),
    }
    keys = jax.random.split(key, len(shapes))
    return {name: jax.random.uniform(k, shape, jnp.float32, minval=-stdv, maxval=stdv)
            for k, (name, shape) in zip(keys, shapes.items())}


def reference_forward(inputs, params):
    """Pure-JAX transcription of the PyTorch forward (zero initial state)."""
    T, B, _ = inputs.shape
    H = params["weight_bx"].shape[0] // 2
    h = jnp.zeros((B, 2 * H), jnp.float32)
    outs = []
    old_x = inputs[0]
    for t in range(T):
        x = inputs[t]
        gates = (x @ params["weight_ih"].T + params["bias_ih"]
                 + h @ params["weight_hh"].T + params["bias_hh"]
                 + old_x @ params["weight_tp_ih"].T)
        i_g, f_g, c_g, o_g = jnp.split(gates, 4, axis=1)
        i_g = jax.nn.sigmoid(i_g)
        f_g = jax.nn.sigmoid(f_g)
        c_g = jnp.tanh(c_g)
        o_g = jax.nn.sigmoid(o_g)
        bx = x @ params["weight_bx"].T
        bh = h @ params["weight_bh"].T
        h = f_g * h + i_g * (c_g + bx + bh)
        h = o_g * jnp.tanh(h)
        outs.append(h[:, :H])
        old_x = x
    return jnp.stack(outs, 0), (h[:, :H][None], h[:, H:][None])


if __name__ == "__main__":
    input_size, hidden_size, n_timesteps, batch = 16, 32, 8, 2

    key = jax.random.PRNGKey(0)
    k_params, k_inputs = jax.random.split(key)
    params = init_params(k_params, input_size, hidden_size)
    inputs = jax.random.normal(k_inputs, (n_timesteps, batch, input_size), jnp.float32)

    out_expect, (h_expect, c_expect) = reference_forward(inputs, params)

    # Single time chunk (whole sequence per grid step).
    out, (h_fin, c_fin) = b_tarnn_lstm_forward(inputs, params)
    jax.block_until_ready((out, h_fin, c_fin))
    assert out.shape == (n_timesteps, batch, hidden_size)
    assert h_fin.shape == (1, batch, hidden_size) and c_fin.shape == (1, batch, hidden_size)
    assert jnp.allclose(out, out_expect, atol=1e-5, rtol=1e-5)
    assert jnp.allclose(h_fin, h_expect, atol=1e-5, rtol=1e-5)
    assert jnp.allclose(c_fin, c_expect, atol=1e-5, rtol=1e-5)

    # Multi-chunk path with a non-dividing chunk (T=8, chunk=3): exercises time padding,
    # in-kernel tail masking, cross-chunk h / tp carries, and the last-chunk-only state store.
    out2, (h2, c2) = b_tarnn_lstm_forward(inputs, params, max_chunk=3)
    jax.block_until_ready((out2, h2, c2))
    assert jnp.allclose(out2, out_expect, atol=1e-5, rtol=1e-5)
    assert jnp.allclose(h2, h_expect, atol=1e-5, rtol=1e-5)
    assert jnp.allclose(c2, c_expect, atol=1e-5, rtol=1e-5)

    print("KERNEL_OK")
</pallas_src>

<mosaic_0001>
module attributes {stable_mosaic.version = 11 : i64} {
  func.func @_tarnn_lstm_kernel(%arg0: i32, %arg1: memref<8x8x16xf32, #tpu.memory_space<vmem>>, %arg2: memref<1x256xf32, #tpu.memory_space<vmem>>, %arg3: memref<16x576xf32, #tpu.memory_space<any>>, %arg4: memref<64x320xf32, #tpu.memory_space<any>>, %arg5: memref<8x8x32xf32, #tpu.memory_space<vmem>>, %arg6: memref<8x64xf32, #tpu.memory_space<vmem>>, %arg7: memref<8x64xf32, #tpu.memory_space<vmem>>, %arg8: memref<8x256xf32, #tpu.memory_space<vmem>>, %arg9: memref<8x8x320xf32, #tpu.memory_space<vmem>>, %arg10: memref<16x576xf32, #tpu.memory_space<vmem>>, %arg11: memref<64x320xf32, #tpu.memory_space<vmem>>, %arg12: memref<2x!tpu.dma_semaphore, #tpu.memory_space<semaphore_mem>>) attributes {dimension_semantics = [#tpu.dimension_semantics<arbitrary>], iteration_bounds = array<i64: 1>, scalar_prefetch = 0 : i64, scratch_operands = 6 : i64, tpu.core_type = #tpu.core_type<tc>, window_params = [{transform_indices = @transform_0, window_bounds = array<i64: 8, 8, 16>}, {pipeline_mode = #tpu.pipeline_mode<synchronous>, transform_indices = @transform_1, window_bounds = array<i64: 1, 256>}, {}, {}, {transform_indices = @transform_4, window_bounds = array<i64: 8, 8, 32>}, {pipeline_mode = #tpu.pipeline_mode<synchronous>, transform_indices = @transform_5, window_bounds = array<i64: 8, 64>}]} {
    %c0_i32 = arith.constant 0 : i32
    %0 = arith.cmpi eq, %arg0, %c0_i32 : i32
    %1 = arith.extui %0 : i1 to i32
    %c0_i32_0 = arith.constant 0 : i32
    %2 = arith.cmpi ne, %1, %c0_i32_0 : i32
    scf.if %2 {
      %c0_i32_107 = arith.constant 0 : i32
      %372 = tpu.memref_slice %arg12[%c0_i32_107] : memref<2x!tpu.dma_semaphore, #tpu.memory_space<semaphore_mem>> -> memref<1x!tpu.dma_semaphore, #tpu.memory_space<semaphore_mem>>
      %373 = tpu.memref_squeeze %372 : memref<1x!tpu.dma_semaphore, #tpu.memory_space<semaphore_mem>> -> memref<!tpu.dma_semaphore, #tpu.memory_space<semaphore_mem>>
      tpu.enqueue_dma source(%arg3 : memref<16x576xf32, #tpu.memory_space<any>>) target(%arg10 : memref<16x576xf32, #tpu.memory_space<vmem>>) target_semaphore(%373 : memref<!tpu.dma_semaphore, #tpu.memory_space<semaphore_mem>>)
      %c1_i32_108 = arith.constant 1 : i32
      %374 = tpu.memref_slice %arg12[%c1_i32_108] : memref<2x!tpu.dma_semaphore, #tpu.memory_space<semaphore_mem>> -> memref<1x!tpu.dma_semaphore, #tpu.memory_space<semaphore_mem>>
      %375 = tpu.memref_squeeze %374 : memref<1x!tpu.dma_semaphore, #tpu.memory_space<semaphore_mem>> -> memref<!tpu.dma_semaphore, #tpu.memory_space<semaphore_mem>>
      tpu.enqueue_dma source(%arg4 : memref<64x320xf32, #tpu.memory_space<any>>) target(%arg11 : memref<64x320xf32, #tpu.memory_space<vmem>>) target_semaphore(%375 : memref<!tpu.dma_semaphore, #tpu.memory_space<semaphore_mem>>)
      %c0_i32_109 = arith.constant 0 : i32
      %376 = tpu.memref_slice %arg12[%c0_i32_109] : memref<2x!tpu.dma_semaphore, #tpu.memory_space<semaphore_mem>> -> memref<1x!tpu.dma_semaphore, #tpu.memory_space<semaphore_mem>>
      %377 = tpu.memref_squeeze %376 : memref<1x!tpu.dma_semaphore, #tpu.memory_space<semaphore_mem>> -> memref<!tpu.dma_semaphore, #tpu.memory_space<semaphore_mem>>
      tpu.wait_dma2 semaphore(%377 : memref<!tpu.dma_semaphore, #tpu.memory_space<semaphore_mem>>) src(%arg3 : memref<16x576xf32, #tpu.memory_space<any>>) dst(%arg10 : memref<16x576xf32, #tpu.memory_space<vmem>>)
      %cst_110 = arith.constant 0.000000e+00 : f32
      %378 = vector.broadcast %cst_110 : f32 to vector<8x64xf32>
      %c0_111 = arith.constant 0 : index
      %c0_112 = arith.constant 0 : index
      %379 = vector.load %arg7[%c0_111, %c0_112] : memref<8x64xf32, #tpu.memory_space<vmem>>, vector<8x64xf32>
      tpu.vector_store %arg7[%c0_111, %c0_112], %378 {strides = array<i32>} : memref<8x64xf32, #tpu.memory_space<vmem>>, vector<8x64xf32>,
    } else {
    }
    %c0 = arith.constant 0 : index
    %c0_1 = arith.constant 0 : index
    %c0_2 = arith.constant 0 : index
    %3 = vector.load %arg1[%c0, %c0_1, %c0_2] : memref<8x8x16xf32, #tpu.memory_space<vmem>>, vector<8x8x16xf32>
    %4 = vector.shape_cast %3 : vector<8x8x16xf32> to vector<64x16xf32>
    %c0_3 = arith.constant 0 : index
    %c0_4 = arith.constant 0 : index
    %5 = vector.load %arg10[%c0_3, %c0_4] : memref<16x576xf32, #tpu.memory_space<vmem>>, vector<16x576xf32>
    %cst = arith.constant dense<0.000000e+00> : vector<64x576xf32>
    %6 = tpu.matmul %4, %5, %cst {dimension_numbers = #tpu.dot_dimension_numbers<[1], [0], [0], [1], [0, 0, 1, 1], [], []>} : vector<64x16xf32>, vector<16x576xf32>, vector<64x576xf32> -> vector<64x576xf32>
    %7 = vector.shape_cast %6 : vector<64x576xf32> to vector<8x8x576xf32>
    %8 = vector.extract_strided_slice %7 {offsets = [0, 0, 0], sizes = [8, 8, 256], strides = [1, 1, 1]} : vector<8x8x576xf32> to vector<8x8x256xf32>
    %c0_5 = arith.constant 0 : index
    %c0_6 = arith.constant 0 : index
    %9 = vector.load %arg2[%c0_5, %c0_6] : memref<1x256xf32, #tpu.memory_space<vmem>>, vector<1x256xf32>
    %10 = vector.shape_cast %9 : vector<1x256xf32> to vector<1x1x256xf32>
    %11 = vector.broadcast %10 : vector<1x1x256xf32> to vector<8x8x256xf32>
    %12 = arith.addf %8, %11 : vector<8x8x256xf32>
    %13 = vector.extract_strided_slice %7 {offsets = [0, 0, 256], sizes = [8, 8, 64], strides = [1, 1, 1]} : vector<8x8x576xf32> to vector<8x8x64xf32>
    %14 = vector.extract_strided_slice %7 {offsets = [0, 0, 320], sizes = [8, 8, 256], strides = [1, 1, 1]} : vector<8x8x576xf32> to vector<8x8x256xf32>
    %c0_i32_7 = arith.constant 0 : i32
    %15 = arith.cmpi eq, %arg0, %c0_i32_7 : i32
    %16 = arith.extui %15 : i1 to i32
    %c0_i32_8 = arith.constant 0 : i32
    %17 = arith.cmpi ne, %16, %c0_i32_8 : i32
    scf.if %17 {
      %372 = vector.extract_strided_slice %14 {offsets = [0, 0, 0], sizes = [1, 8, 256], strides = [1, 1, 1]} : vector<8x8x256xf32> to vector<1x8x256xf32>
      %373 = vector.shape_cast %372 : vector<1x8x256xf32> to vector<8x256xf32>
      %c0_107 = arith.constant 0 : index
      %c0_108 = arith.constant 0 : index
      %374 = vector.load %arg8[%c0_107, %c0_108] : memref<8x256xf32, #tpu.memory_space<vmem>>, vector<8x256xf32>
      tpu.vector_store %arg8[%c0_107, %c0_108], %373 {strides = array<i32>} : memref<8x256xf32, #tpu.memory_space<vmem>>, vector<8x256xf32>,
    } else {
    }
    %c0_9 = arith.constant 0 : index
    %c0_10 = arith.constant 0 : index
    %18 = vector.load %arg8[%c0_9, %c0_10] : memref<8x256xf32, #tpu.memory_space<vmem>>, vector<8x256xf32>
    %19 = vector.shape_cast %18 : vector<8x256xf32> to vector<1x8x256xf32>
    %20 = vector.extract_strided_slice %14 {offsets = [0, 0, 0], sizes = [7, 8, 256], strides = [1, 1, 1]} : vector<8x8x256xf32> to vector<7x8x256xf32>
    %21 = tpu.concatenate %19, %20 in 0 : vector<1x8x256xf32>, vector<7x8x256xf32> -> vector<8x8x256xf32>
    %22 = arith.addf %12, %21 : vector<8x8x256xf32>
    %c0_11 = arith.constant 0 : index
    %c0_12 = arith.constant 0 : index
    %c0_13 = arith.constant 0 : index
    %23 = vector.load %arg9[%c0_11, %c0_12, %c0_13] : memref<8x8x320xf32, #tpu.memory_space<vmem>>, vector<8x8x256xf32>
    tpu.vector_store %arg9[%c0_11, %c0_12, %c0_13], %22 {strides = array<i32>} : memref<8x8x320xf32, #tpu.memory_space<vmem>>, vector<8x8x256xf32>,
    %c0_14 = arith.constant 0 : index
    %c0_15 = arith.constant 0 : index
    %c256 = arith.constant 256 : index
    %24 = vector.load %arg9[%c0_14, %c0_15, %c256] : memref<8x8x320xf32, #tpu.memory_space<vmem>>, vector<8x8x64xf32>
    tpu.vector_store %arg9[%c0_14, %c0_15, %c256], %13 {strides = array<i32>} : memref<8x8x320xf32, #tpu.memory_space<vmem>>, vector<8x8x64xf32>,
    %25 = vector.extract_strided_slice %14 {offsets = [7, 0, 0], sizes = [1, 8, 256], strides = [1, 1, 1]} : vector<8x8x256xf32> to vector<1x8x256xf32>
    %26 = vector.shape_cast %25 : vector<1x8x256xf32> to vector<8x256xf32>
    %c0_16 = arith.constant 0 : index
    %c0_17 = arith.constant 0 : index
    %27 = vector.load %arg8[%c0_16, %c0_17] : memref<8x256xf32, #tpu.memory_space<vmem>>, vector<8x256xf32>
    tpu.vector_store %arg8[%c0_16, %c0_17], %26 {strides = array<i32>} : memref<8x256xf32, #tpu.memory_space<vmem>>, vector<8x256xf32>,
    %c0_i32_18 = arith.constant 0 : i32
    %28 = arith.cmpi eq, %arg0, %c0_i32_18 : i32
    %29 = arith.extui %28 : i1 to i32
    %c0_i32_19 = arith.constant 0 : i32
    %30 = arith.cmpi ne, %29, %c0_i32_19 : i32
    scf.if %30 {
      %c1_i32_107 = arith.constant 1 : i32
      %372 = tpu.memref_slice %arg12[%c1_i32_107] : memref<2x!tpu.dma_semaphore, #tpu.memory_space<semaphore_mem>> -> memref<1x!tpu.dma_semaphore, #tpu.memory_space<semaphore_mem>>
      %373 = tpu.memref_squeeze %372 : memref<1x!tpu.dma_semaphore, #tpu.memory_space<semaphore_mem>> -> memref<!tpu.dma_semaphore, #tpu.memory_space<semaphore_mem>>
      tpu.wait_dma2 semaphore(%373 : memref<!tpu.dma_semaphore, #tpu.memory_space<semaphore_mem>>) src(%arg4 : memref<64x320xf32, #tpu.memory_space<any>>) dst(%arg11 : memref<64x320xf32, #tpu.memory_space<vmem>>)
    } else {
    }
    %c0_20 = arith.constant 0 : index
    %c0_21 = arith.constant 0 : index
    %31 = vector.load %arg7[%c0_20, %c0_21] : memref<8x64xf32, #tpu.memory_space<vmem>>, vector<8x64xf32>
    %c0_i32_22 = arith.constant 0 : i32
    %32 = arith.index_cast %c0_i32_22 : i32 to index
    %c0_23 = arith.constant 0 : index
    %c0_24 = arith.constant 0 : index
    %33 = vector.load %arg9[%32, %c0_23, %c0_24] : memref<8x8x320xf32, #tpu.memory_space<vmem>>, vector<1x8x320xf32>
    %34 = vector.shape_cast %33 : vector<1x8x320xf32> to vector<8x320xf32>
    %c0_25 = arith.constant 0 : index
    %c0_26 = arith.constant 0 : index
    %35 = vector.load %arg11[%c0_25, %c0_26] : memref<64x320xf32, #tpu.memory_space<vmem>>, vector<64x320xf32>
    %cst_27 = arith.constant dense<0.000000e+00> : vector<8x320xf32>
    %36 = tpu.matmul %31, %35, %cst_27 {dimension_numbers = #tpu.dot_dimension_numbers<[1], [0], [0], [1], [0, 0, 1, 1], [], []>} : vector<8x64xf32>, vector<64x320xf32>, vector<8x320xf32> -> vector<8x320xf32>
    %37 = vector.extract_strided_slice %34 {offsets = [0, 0], sizes = [8, 256], strides = [1, 1]} : vector<8x320xf32> to vector<8x256xf32>
    %38 = vector.extract_strided_slice %36 {offsets = [0, 0], sizes = [8, 256], strides = [1, 1]} : vector<8x320xf32> to vector<8x256xf32>
    %39 = arith.addf %37, %38 : vector<8x256xf32>
    %40 = vector.extract_strided_slice %39 {offsets = [0, 0], sizes = [8, 64], strides = [1, 1]} : vector<8x256xf32> to vector<8x64xf32>
    %41 = arith.negf %40 : vector<8x64xf32>
    %42 = math.exp %41 : vector<8x64xf32>
    %cst_28 = arith.constant 1.000000e+00 : f32
    %43 = vector.broadcast %cst_28 : f32 to vector<8x64xf32>
    %44 = arith.addf %43, %42 : vector<8x64xf32>
    %45 = arith.divf %43, %44 : vector<8x64xf32>
    %46 = vector.extract_strided_slice %39 {offsets = [0, 64], sizes = [8, 64], strides = [1, 1]} : vector<8x256xf32> to vector<8x64xf32>
    %47 = arith.negf %46 : vector<8x64xf32>
    %48 = math.exp %47 : vector<8x64xf32>
    %cst_29 = arith.constant 1.000000e+00 : f32
    %49 = vector.broadcast %cst_29 : f32 to vector<8x64xf32>
    %50 = arith.addf %49, %48 : vector<8x64xf32>
    %51 = arith.divf %49, %50 : vector<8x64xf32>
    %52 = vector.extract_strided_slice %39 {offsets = [0, 128], sizes = [8, 64], strides = [1, 1]} : vector<8x256xf32> to vector<8x64xf32>
    %53 = math.tanh %52 : vector<8x64xf32>
    %54 = vector.extract_strided_slice %39 {offsets = [0, 192], sizes = [8, 64], strides = [1, 1]} : vector<8x256xf32> to vector<8x64xf32>
    %55 = arith.negf %54 : vector<8x64xf32>
    %56 = math.exp %55 : vector<8x64xf32>
    %cst_30 = arith.constant 1.000000e+00 : f32
    %57 = vector.broadcast %cst_30 : f32 to vector<8x64xf32>
    %58 = arith.addf %57, %56 : vector<8x64xf32>
    %59 = arith.divf %57, %58 : vector<8x64xf32>
    %60 = vector.extract_strided_slice %34 {offsets = [0, 256], sizes = [8, 64], strides = [1, 1]} : vector<8x320xf32> to vector<8x64xf32>
    %61 = vector.extract_strided_slice %36 {offsets = [0, 256], sizes = [8, 64], strides = [1, 1]} : vector<8x320xf32> to vector<8x64xf32>
    %62 = arith.addf %60, %61 : vector<8x64xf32>
    %63 = arith.mulf %51, %31 : vector<8x64xf32>
    %64 = arith.addf %53, %62 : vector<8x64xf32>
    %65 = arith.mulf %45, %64 : vector<8x64xf32>
    %66 = arith.addf %63, %65 : vector<8x64xf32>
    %67 = math.tanh %66 : vector<8x64xf32>
    %68 = arith.mulf %59, %67 : vector<8x64xf32>
    %69 = vector.extract_strided_slice %68 {offsets = [0, 0], sizes = [8, 32], strides = [1, 1]} : vector<8x64xf32> to vector<8x32xf32>
    %70 = arith.index_cast %c0_i32_22 : i32 to index
    %c0_31 = arith.constant 0 : index
    %c0_32 = arith.constant 0 : index
    %71 = vector.load %arg5[%70, %c0_31, %c0_32] : memref<8x8x32xf32, #tpu.memory_space<vmem>>, vector<1x8x32xf32>
    %72 = vector.shape_cast %71 : vector<1x8x32xf32> to vector<8x32xf32>
    %73 = vector.shape_cast %69 : vector<8x32xf32> to vector<1x8x32xf32>
    tpu.vector_store %arg5[%70, %c0_31, %c0_32], %73 {strides = array<i32>} : memref<8x8x32xf32, #tpu.memory_space<vmem>>, vector<1x8x32xf32>,
    %c1_i32 = arith.constant 1 : i32
    %74 = arith.index_cast %c1_i32 : i32 to index
    %c0_33 = arith.constant 0 : index
    %c0_34 = arith.constant 0 : index
    %75 = vector.load %arg9[%74, %c0_33, %c0_34] : memref<8x8x320xf32, #tpu.memory_space<vmem>>, vector<1x8x320xf32>
    %76 = vector.shape_cast %75 : vector<1x8x320xf32> to vector<8x320xf32>
    %c0_35 = arith.constant 0 : index
    %c0_36 = arith.constant 0 : index
    %77 = vector.load %arg11[%c0_35, %c0_36] : memref<64x320xf32, #tpu.memory_space<vmem>>, vector<64x320xf32>
    %cst_37 = arith.constant dense<0.000000e+00> : vector<8x320xf32>
    %78 = tpu.matmul %68, %77, %cst_37 {dimension_numbers = #tpu.dot_dimension_numbers<[1], [0], [0], [1], [0, 0, 1, 1], [], []>} : vector<8x64xf32>, vector<64x320xf32>, vector<8x320xf32> -> vector<8x320xf32>
    %79 = vector.extract_strided_slice %76 {offsets = [0, 0], sizes = [8, 256], strides = [1, 1]} : vector<8x320xf32> to vector<8x256xf32>
    %80 = vector.extract_strided_slice %78 {offsets = [0, 0], sizes = [8, 256], strides = [1, 1]} : vector<8x320xf32> to vector<8x256xf32>
    %81 = arith.addf %79, %80 : vector<8x256xf32>
    %82 = vector.extract_strided_slice %81 {offsets = [0, 0], sizes = [8, 64], strides = [1, 1]} : vector<8x256xf32> to vector<8x64xf32>
    %83 = arith.negf %82 : vector<8x64xf32>
    %84 = math.exp %83 : vector<8x64xf32>
    %cst_38 = arith.constant 1.000000e+00 : f32
    %85 = vector.broadcast %cst_38 : f32 to vector<8x64xf32>
    %86 = arith.addf %85, %84 : vector<8x64xf32>
    %87 = arith.divf %85, %86 : vector<8x64xf32>
    %88 = vector.extract_strided_slice %81 {offsets = [0, 64], sizes = [8, 64], strides = [1, 1]} : vector<8x256xf32> to vector<8x64xf32>
    %89 = arith.negf %88 : vector<8x64xf32>
    %90 = math.exp %89 : vector<8x64xf32>
    %cst_39 = arith.constant 1.000000e+00 : f32
    %91 = vector.broadcast %cst_39 : f32 to vector<8x64xf32>
    %92 = arith.addf %91, %90 : vector<8x64xf32>
    %93 = arith.divf %91, %92 : vector<8x64xf32>
    %94 = vector.extract_strided_slice %81 {offsets = [0, 128], sizes = [8, 64], strides = [1, 1]} : vector<8x256xf32> to vector<8x64xf32>
    %95 = math.tanh %94 : vector<8x64xf32>
    %96 = vector.extract_strided_slice %81 {offsets = [0, 192], sizes = [8, 64], strides = [1, 1]} : vector<8x256xf32> to vector<8x64xf32>
    %97 = arith.negf %96 : vector<8x64xf32>
    %98 = math.exp %97 : vector<8x64xf32>
    %cst_40 = arith.constant 1.000000e+00 : f32
    %99 = vector.broadcast %cst_40 : f32 to vector<8x64xf32>
    %100 = arith.addf %99, %98 : vector<8x64xf32>
    %101 = arith.divf %99, %100 : vector<8x64xf32>
    %102 = vector.extract_strided_slice %76 {offsets = [0, 256], sizes = [8, 64], strides = [1, 1]} : vector<8x320xf32> to vector<8x64xf32>
    %103 = vector.extract_strided_slice %78 {offsets = [0, 256], sizes = [8, 64], strides = [1, 1]} : vector<8x320xf32> to vector<8x64xf32>
    %104 = arith.addf %102, %103 : vector<8x64xf32>
    %105 = arith.mulf %93, %68 : vector<8x64xf32>
    %106 = arith.addf %95, %104 : vector<8x64xf32>
    %107 = arith.mulf %87, %106 : vector<8x64xf32>
    %108 = arith.addf %105, %107 : vector<8x64xf32>
    %109 = math.tanh %108 : vector<8x64xf32>
    %110 = arith.mulf %101, %109 : vector<8x64xf32>
    %111 = vector.extract_strided_slice %110 {offsets = [0, 0], sizes = [8, 32], strides = [1, 1]} : vector<8x64xf32> to vector<8x32xf32>
    %112 = arith.index_cast %c1_i32 : i32 to index
    %c0_41 = arith.constant 0 : index
    %c0_42 = arith.constant 0 : index
    %113 = vector.load %arg5[%112, %c0_41, %c0_42] : memref<8x8x32xf32, #tpu.memory_space<vmem>>, vector<1x8x32xf32>
    %114 = vector.shape_cast %113 : vector<1x8x32xf32> to vector<8x32xf32>
    %115 = vector.shape_cast %111 : vector<8x32xf32> to vector<1x8x32xf32>
    tpu.vector_store %arg5[%112, %c0_41, %c0_42], %115 {strides = array<i32>} : memref<8x8x32xf32, #tpu.memory_space<vmem>>, vector<1x8x32xf32>,
    %c2_i32 = arith.constant 2 : i32
    %116 = arith.index_cast %c2_i32 : i32 to index
    %c0_43 = arith.constant 0 : index
    %c0_44 = arith.constant 0 : index
    %117 = vector.load %arg9[%116, %c0_43, %c0_44] : memref<8x8x320xf32, #tpu.memory_space<vmem>>, vector<1x8x320xf32>
    %118 = vector.shape_cast %117 : vector<1x8x320xf32> to vector<8x320xf32>
    %c0_45 = arith.constant 0 : index
    %c0_46 = arith.constant 0 : index
    %119 = vector.load %arg11[%c0_45, %c0_46] : memref<64x320xf32, #tpu.memory_space<vmem>>, vector<64x320xf32>
    %cst_47 = arith.constant dense<0.000000e+00> : vector<8x320xf32>
    %120 = tpu.matmul %110, %119, %cst_47 {dimension_numbers = #tpu.dot_dimension_numbers<[1], [0], [0], [1], [0, 0, 1, 1], [], []>} : vector<8x64xf32>, vector<64x320xf32>, vector<8x320xf32> -> vector<8x320xf32>
    %121 = vector.extract_strided_slice %118 {offsets = [0, 0], sizes = [8, 256], strides = [1, 1]} : vector<8x320xf32> to vector<8x256xf32>
    %122 = vector.extract_strided_slice %120 {offsets = [0, 0], sizes = [8, 256], strides = [1, 1]} : vector<8x320xf32> to vector<8x256xf32>
    %123 = arith.addf %121, %122 : vector<8x256xf32>
    %124 = vector.extract_strided_slice %123 {offsets = [0, 0], sizes = [8, 64], strides = [1, 1]} : vector<8x256xf32> to vector<8x64xf32>
    %125 = arith.negf %124 : vector<8x64xf32>
    %126 = math.exp %125 : vector<8x64xf32>
    %cst_48 = arith.constant 1.000000e+00 : f32
    %127 = vector.broadcast %cst_48 : f32 to vector<8x64xf32>
    %128 = arith.addf %127, %126 : vector<8x64xf32>
    %129 = arith.divf %127, %128 : vector<8x64xf32>
    %130 = vector.extract_strided_slice %123 {offsets = [0, 64], sizes = [8, 64], strides = [1, 1]} : vector<8x256xf32> to vector<8x64xf32>
    %131 = arith.negf %130 : vector<8x64xf32>
    %132 = math.exp %131 : vector<8x64xf32>
    %cst_49 = arith.constant 1.000000e+00 : f32
    %133 = vector.broadcast %cst_49 : f32 to vector<8x64xf32>
    %134 = arith.addf %133, %132 : vector<8x64xf32>
    %135 = arith.divf %133, %134 : vector<8x64xf32>
    %136 = vector.extract_strided_slice %123 {offsets = [0, 128], sizes = [8, 64], strides = [1, 1]} : vector<8x256xf32> to vector<8x64xf32>
    %137 = math.tanh %136 : vector<8x64xf32>
    %138 = vector.extract_strided_slice %123 {offsets = [0, 192], sizes = [8, 64], strides = [1, 1]} : vector<8x256xf32> to vector<8x64xf32>
    %139 = arith.negf %138 : vector<8x64xf32>
    %140 = math.exp %139 : vector<8x64xf32>
    %cst_50 = arith.constant 1.000000e+00 : f32
    %141 = vector.broadcast %cst_50 : f32 to vector<8x64xf32>
    %142 = arith.addf %141, %140 : vector<8x64xf32>
    %143 = arith.divf %141, %142 : vector<8x64xf32>
    %144 = vector.extract_strided_slice %118 {offsets = [0, 256], sizes = [8, 64], strides = [1, 1]} : vector<8x320xf32> to vector<8x64xf32>
    %145 = vector.extract_strided_slice %120 {offsets = [0, 256], sizes = [8, 64], strides = [1, 1]} : vector<8x320xf32> to vector<8x64xf32>
    %146 = arith.addf %144, %145 : vector<8x64xf32>
    %147 = arith.mulf %135, %110 : vector<8x64xf32>
    %148 = arith.addf %137, %146 : vector<8x64xf32>
    %149 = arith.mulf %129, %148 : vector<8x64xf32>
    %150 = arith.addf %147, %149 : vector<8x64xf32>
    %151 = math.tanh %150 : vector<8x64xf32>
    %152 = arith.mulf %143, %151 : vector<8x64xf32>
    %153 = vector.extract_strided_slice %152 {offsets = [0, 0], sizes = [8, 32], strides = [1, 1]} : vector<8x64xf32> to vector<8x32xf32>
    %154 = arith.index_cast %c2_i32 : i32 to index
    %c0_51 = arith.constant 0 : index
    %c0_52 = arith.constant 0 : index
    %155 = vector.load %arg5[%154, %c0_51, %c0_52] : memref<8x8x32xf32, #tpu.memory_space<vmem>>, vector<1x8x32xf32>
    %156 = vector.shape_cast %155 : vector<1x8x32xf32> to vector<8x32xf32>
    %157 = vector.shape_cast %153 : vector<8x32xf32> to vector<1x8x32xf32>
    tpu.vector_store %arg5[%154, %c0_51, %c0_52], %157 {strides = array<i32>} : memref<8x8x32xf32, #tpu.memory_space<vmem>>, vector<1x8x32xf32>,
    %c3_i32 = arith.constant 3 : i32
    %158 = arith.index_cast %c3_i32 : i32 to index
    %c0_53 = arith.constant 0 : index
    %c0_54 = arith.constant 0 : index
    %159 = vector.load %arg9[%158, %c0_53, %c0_54] : memref<8x8x320xf32, #tpu.memory_space<vmem>>, vector<1x8x320xf32>
    %160 = vector.shape_cast %159 : vector<1x8x320xf32> to vector<8x320xf32>
    %c0_55 = arith.constant 0 : index
    %c0_56 = arith.constant 0 : index
    %161 = vector.load %arg11[%c0_55, %c0_56] : memref<64x320xf32, #tpu.memory_space<vmem>>, vector<64x320xf32>
    %cst_57 = arith.constant dense<0.000000e+00> : vector<8x320xf32>
    %162 = tpu.matmul %152, %161, %cst_57 {dimension_numbers = #tpu.dot_dimension_numbers<[1], [0], [0], [1], [0, 0, 1, 1], [], []>} : vector<8x64xf32>, vector<64x320xf32>, vector<8x320xf32> -> vector<8x320xf32>
    %163 = vector.extract_strided_slice %160 {offsets = [0, 0], sizes = [8, 256], strides = [1, 1]} : vector<8x320xf32> to vector<8x256xf32>
    %164 = vector.extract_strided_slice %162 {offsets = [0, 0], sizes = [8, 256], strides = [1, 1]} : vector<8x320xf32> to vector<8x256xf32>
    %165 = arith.addf %163, %164 : vector<8x256xf32>
    %166 = vector.extract_strided_slice %165 {offsets = [0, 0], sizes = [8, 64], strides = [1, 1]} : vector<8x256xf32> to vector<8x64xf32>
    %167 = arith.negf %166 : vector<8x64xf32>
    %168 = math.exp %167 : vector<8x64xf32>
    %cst_58 = arith.constant 1.000000e+00 : f32
    %169 = vector.broadcast %cst_58 : f32 to vector<8x64xf32>
    %170 = arith.addf %169, %168 : vector<8x64xf32>
    %171 = arith.divf %169, %170 : vector<8x64xf32>
    %172 = vector.extract_strided_slice %165 {offsets = [0, 64], sizes = [8, 64], strides = [1, 1]} : vector<8x256xf32> to vector<8x64xf32>
    %173 = arith.negf %172 : vector<8x64xf32>
    %174 = math.exp %173 : vector<8x64xf32>
    %cst_59 = arith.constant 1.000000e+00 : f32
    %175 = vector.broadcast %cst_59 : f32 to vector<8x64xf32>
    %176 = arith.addf %175, %174 : vector<8x64xf32>
    %177 = arith.divf %175, %176 : vector<8x64xf32>
    %178 = vector.extract_strided_slice %165 {offsets = [0, 128], sizes = [8, 64], strides = [1, 1]} : vector<8x256xf32> to vector<8x64xf32>
    %179 = math.tanh %178 : vector<8x64xf32>
    %180 = vector.extract_strided_slice %165 {offsets = [0, 192], sizes = [8, 64], strides = [1, 1]} : vector<8x256xf32> to vector<8x64xf32>
    %181 = arith.negf %180 : vector<8x64xf32>
    %182 = math.exp %181 : vector<8x64xf32>
    %cst_60 = arith.constant 1.000000e+00 : f32
    %183 = vector.broadcast %cst_60 : f32 to vector<8x64xf32>
    %184 = arith.addf %183, %182 : vector<8x64xf32>
    %185 = arith.divf %183, %184 : vector<8x64xf32>
    %186 = vector.extract_strided_slice %160 {offsets = [0, 256], sizes = [8, 64], strides = [1, 1]} : vector<8x320xf32> to vector<8x64xf32>
    %187 = vector.extract_strided_slice %162 {offsets = [0, 256], sizes = [8, 64], strides = [1, 1]} : vector<8x320xf32> to vector<8x64xf32>
    %188 = arith.addf %186, %187 : vector<8x64xf32>
    %189 = arith.mulf %177, %152 : vector<8x64xf32>
    %190 = arith.addf %179, %188 : vector<8x64xf32>
    %191 = arith.mulf %171, %190 : vector<8x64xf32>
    %192 = arith.addf %189, %191 : vector<8x64xf32>
    %193 = math.tanh %192 : vector<8x64xf32>
    %194 = arith.mulf %185, %193 : vector<8x64xf32>
    %195 = vector.extract_strided_slice %194 {offsets = [0, 0], sizes = [8, 32], strides = [1, 1]} : vector<8x64xf32> to vector<8x32xf32>
    %196 = arith.index_cast %c3_i32 : i32 to index
    %c0_61 = arith.constant 0 : index
    %c0_62 = arith.constant 0 : index
    %197 = vector.load %arg5[%196, %c0_61, %c0_62] : memref<8x8x32xf32, #tpu.memory_space<vmem>>, vector<1x8x32xf32>
    %198 = vector.shape_cast %197 : vector<1x8x32xf32> to vector<8x32xf32>
    %199 = vector.shape_cast %195 : vector<8x32xf32> to vector<1x8x32xf32>
    tpu.vector_store %arg5[%196, %c0_61, %c0_62], %199 {strides = array<i32>} : memref<8x8x32xf32, #tpu.memory_space<vmem>>, vector<1x8x32xf32>,
    %c4_i32 = arith.constant 4 : i32
    %200 = arith.index_cast %c4_i32 : i32 to index
    %c0_63 = arith.constant 0 : index
    %c0_64 = arith.constant 0 : index
    %201 = vector.load %arg9[%200, %c0_63, %c0_64] : memref<8x8x320xf32, #tpu.memory_space<vmem>>, vector<1x8x320xf32>
    %202 = vector.shape_cast %201 : vector<1x8x320xf32> to vector<8x320xf32>
    %c0_65 = arith.constant 0 : index
    %c0_66 = arith.constant 0 : index
    %203 = vector.load %arg11[%c0_65, %c0_66] : memref<64x320xf32, #tpu.memory_space<vmem>>, vector<64x320xf32>
    %cst_67 = arith.constant dense<0.000000e+00> : vector<8x320xf32>
    %204 = tpu.matmul %194, %203, %cst_67 {dimension_numbers = #tpu.dot_dimension_numbers<[1], [0], [0], [1], [0, 0, 1, 1], [], []>} : vector<8x64xf32>, vector<64x320xf32>, vector<8x320xf32> -> vector<8x320xf32>
    %205 = vector.extract_strided_slice %202 {offsets = [0, 0], sizes = [8, 256], strides = [1, 1]} : vector<8x320xf32> to vector<8x256xf32>
    %206 = vector.extract_strided_slice %204 {offsets = [0, 0], sizes = [8, 256], strides = [1, 1]} : vector<8x320xf32> to vector<8x256xf32>
    %207 = arith.addf %205, %206 : vector<8x256xf32>
    %208 = vector.extract_strided_slice %207 {offsets = [0, 0], sizes = [8, 64], strides = [1, 1]} : vector<8x256xf32> to vector<8x64xf32>
    %209 = arith.negf %208 : vector<8x64xf32>
    %210 = math.exp %209 : vector<8x64xf32>
    %cst_68 = arith.constant 1.000000e+00 : f32
    %211 = vector.broadcast %cst_68 : f32 to vector<8x64xf32>
    %212 = arith.addf %211, %210 : vector<8x64xf32>
    %213 = arith.divf %211, %212 : vector<8x64xf32>
    %214 = vector.extract_strided_slice %207 {offsets = [0, 64], sizes = [8, 64], strides = [1, 1]} : vector<8x256xf32> to vector<8x64xf32>
    %215 = arith.negf %214 : vector<8x64xf32>
    %216 = math.exp %215 : vector<8x64xf32>
    %cst_69 = arith.constant 1.000000e+00 : f32
    %217 = vector.broadcast %cst_69 : f32 to vector<8x64xf32>
    %218 = arith.addf %217, %216 : vector<8x64xf32>
    %219 = arith.divf %217, %218 : vector<8x64xf32>
    %220 = vector.extract_strided_slice %207 {offsets = [0, 128], sizes = [8, 64], strides = [1, 1]} : vector<8x256xf32> to vector<8x64xf32>
    %221 = math.tanh %220 : vector<8x64xf32>
    %222 = vector.extract_strided_slice %207 {offsets = [0, 192], sizes = [8, 64], strides = [1, 1]} : vector<8x256xf32> to vector<8x64xf32>
    %223 = arith.negf %222 : vector<8x64xf32>
    %224 = math.exp %223 : vector<8x64xf32>
    %cst_70 = arith.constant 1.000000e+00 : f32
    %225 = vector.broadcast %cst_70 : f32 to vector<8x64xf32>
    %226 = arith.addf %225, %224 : vector<8x64xf32>
    %227 = arith.divf %225, %226 : vector<8x64xf32>
    %228 = vector.extract_strided_slice %202 {offsets = [0, 256], sizes = [8, 64], strides = [1, 1]} : vector<8x320xf32> to vector<8x64xf32>
    %229 = vector.extract_strided_slice %204 {offsets = [0, 256], sizes = [8, 64], strides = [1, 1]} : vector<8x320xf32> to vector<8x64xf32>
    %230 = arith.addf %228, %229 : vector<8x64xf32>
    %231 = arith.mulf %219, %194 : vector<8x64xf32>
    %232 = arith.addf %221, %230 : vector<8x64xf32>
    %233 = arith.mulf %213, %232 : vector<8x64xf32>
    %234 = arith.addf %231, %233 : vector<8x64xf32>
    %235 = math.tanh %234 : vector<8x64xf32>
    %236 = arith.mulf %227, %235 : vector<8x64xf32>
    %237 = vector.extract_strided_slice %236 {offsets = [0, 0], sizes = [8, 32], strides = [1, 1]} : vector<8x64xf32> to vector<8x32xf32>
    %238 = arith.index_cast %c4_i32 : i32 to index
    %c0_71 = arith.constant 0 : index
    %c0_72 = arith.constant 0 : index
    %239 = vector.load %arg5[%238, %c0_71, %c0_72] : memref<8x8x32xf32, #tpu.memory_space<vmem>>, vector<1x8x32xf32>
    %240 = vector.shape_cast %239 : vector<1x8x32xf32> to vector<8x32xf32>
    %241 = vector.shape_cast %237 : vector<8x32xf32> to vector<1x8x32xf32>
    tpu.vector_store %arg5[%238, %c0_71, %c0_72], %241 {strides = array<i32>} : memref<8x8x32xf32, #tpu.memory_space<vmem>>, vector<1x8x32xf32>,
    %c5_i32 = arith.constant 5 : i32
    %242 = arith.index_cast %c5_i32 : i32 to index
    %c0_73 = arith.constant 0 : index
    %c0_74 = arith.constant 0 : index
    %243 = vector.load %arg9[%242, %c0_73, %c0_74] : memref<8x8x320xf32, #tpu.memory_space<vmem>>, vector<1x8x320xf32>
    %244 = vector.shape_cast %243 : vector<1x8x320xf32> to vector<8x320xf32>
    %c0_75 = arith.constant 0 : index
    %c0_76 = arith.constant 0 : index
    %245 = vector.load %arg11[%c0_75, %c0_76] : memref<64x320xf32, #tpu.memory_space<vmem>>, vector<64x320xf32>
    %cst_77 = arith.constant dense<0.000000e+00> : vector<8x320xf32>
    %246 = tpu.matmul %236, %245, %cst_77 {dimension_numbers = #tpu.dot_dimension_numbers<[1], [0], [0], [1], [0, 0, 1, 1], [], []>} : vector<8x64xf32>, vector<64x320xf32>, vector<8x320xf32> -> vector<8x320xf32>
    %247 = vector.extract_strided_slice %244 {offsets = [0, 0], sizes = [8, 256], strides = [1, 1]} : vector<8x320xf32> to vector<8x256xf32>
    %248 = vector.extract_strided_slice %246 {offsets = [0, 0], sizes = [8, 256], strides = [1, 1]} : vector<8x320xf32> to vector<8x256xf32>
    %249 = arith.addf %247, %248 : vector<8x256xf32>
    %250 = vector.extract_strided_slice %249 {offsets = [0, 0], sizes = [8, 64], strides = [1, 1]} : vector<8x256xf32> to vector<8x64xf32>
    %251 = arith.negf %250 : vector<8x64xf32>
    %252 = math.exp %251 : vector<8x64xf32>
    %cst_78 = arith.constant 1.000000e+00 : f32
    %253 = vector.broadcast %cst_78 : f32 to vector<8x64xf32>
    %254 = arith.addf %253, %252 : vector<8x64xf32>
    %255 = arith.divf %253, %254 : vector<8x64xf32>
    %256 = vector.extract_strided_slice %249 {offsets = [0, 64], sizes = [8, 64], strides = [1, 1]} : vector<8x256xf32> to vector<8x64xf32>
    %257 = arith.negf %256 : vector<8x64xf32>
    %258 = math.exp %257 : vector<8x64xf32>
    %cst_79 = arith.constant 1.000000e+00 : f32
    %259 = vector.broadcast %cst_79 : f32 to vector<8x64xf32>
    %260 = arith.addf %259, %258 : vector<8x64xf32>
    %261 = arith.divf %259, %260 : vector<8x64xf32>
    %262 = vector.extract_strided_slice %249 {offsets = [0, 128], sizes = [8, 64], strides = [1, 1]} : vector<8x256xf32> to vector<8x64xf32>
    %263 = math.tanh %262 : vector<8x64xf32>
    %264 = vector.extract_strided_slice %249 {offsets = [0, 192], sizes = [8, 64], strides = [1, 1]} : vector<8x256xf32> to vector<8x64xf32>
    %265 = arith.negf %264 : vector<8x64xf32>
    %266 = math.exp %265 : vector<8x64xf32>
    %cst_80 = arith.constant 1.000000e+00 : f32
    %267 = vector.broadcast %cst_80 : f32 to vector<8x64xf32>
    %268 = arith.addf %267, %266 : vector<8x64xf32>
    %269 = arith.divf %267, %268 : vector<8x64xf32>
    %270 = vector.extract_strided_slice %244 {offsets = [0, 256], sizes = [8, 64], strides = [1, 1]} : vector<8x320xf32> to vector<8x64xf32>
    %271 = vector.extract_strided_slice %246 {offsets = [0, 256], sizes = [8, 64], strides = [1, 1]} : vector<8x320xf32> to vector<8x64xf32>
    %272 = arith.addf %270, %271 : vector<8x64xf32>
    %273 = arith.mulf %261, %236 : vector<8x64xf32>
    %274 = arith.addf %263, %272 : vector<8x64xf32>
    %275 = arith.mulf %255, %274 : vector<8x64xf32>
    %276 = arith.addf %273, %275 : vector<8x64xf32>
    %277 = math.tanh %276 : vector<8x64xf32>
    %278 = arith.mulf %269, %277 : vector<8x64xf32>
    %279 = vector.extract_strided_slice %278 {offsets = [0, 0], sizes = [8, 32], strides = [1, 1]} : vector<8x64xf32> to vector<8x32xf32>
    %280 = arith.index_cast %c5_i32 : i32 to index
    %c0_81 = arith.constant 0 : index
    %c0_82 = arith.constant 0 : index
    %281 = vector.load %arg5[%280, %c0_81, %c0_82] : memref<8x8x32xf32, #tpu.memory_space<vmem>>, vector<1x8x32xf32>
    %282 = vector.shape_cast %281 : vector<1x8x32xf32> to vector<8x32xf32>
    %283 = vector.shape_cast %279 : vector<8x32xf32> to vector<1x8x32xf32>
    tpu.vector_store %arg5[%280, %c0_81, %c0_82], %283 {strides = array<i32>} : memref<8x8x32xf32, #tpu.memory_space<vmem>>, vector<1x8x32xf32>,
    %c6_i32 = arith.constant 6 : i32
    %284 = arith.index_cast %c6_i32 : i32 to index
    %c0_83 = arith.constant 0 : index
    %c0_84 = arith.constant 0 : index
    %285 = vector.load %arg9[%284, %c0_83, %c0_84] : memref<8x8x320xf32, #tpu.memory_space<vmem>>, vector<1x8x320xf32>
    %286 = vector.shape_cast %285 : vector<1x8x320xf32> to vector<8x320xf32>
    %c0_85 = arith.constant 0 : index
    %c0_86 = arith.constant 0 : index
    %287 = vector.load %arg11[%c0_85, %c0_86] : memref<64x320xf32, #tpu.memory_space<vmem>>, vector<64x320xf32>
    %cst_87 = arith.constant dense<0.000000e+00> : vector<8x320xf32>
    %288 = tpu.matmul %278, %287, %cst_87 {dimension_numbers = #tpu.dot_dimension_numbers<[1], [0], [0], [1], [0, 0, 1, 1], [], []>} : vector<8x64xf32>, vector<64x320xf32>, vector<8x320xf32> -> vector<8x320xf32>
    %289 = vector.extract_strided_slice %286 {offsets = [0, 0], sizes = [8, 256], strides = [1, 1]} : vector<8x320xf32> to vector<8x256xf32>
    %290 = vector.extract_strided_slice %288 {offsets = [0, 0], sizes = [8, 256], strides = [1, 1]} : vector<8x320xf32> to vector<8x256xf32>
    %291 = arith.addf %289, %290 : vector<8x256xf32>
    %292 = vector.extract_strided_slice %291 {offsets = [0, 0], sizes = [8, 64], strides = [1, 1]} : vector<8x256xf32> to vector<8x64xf32>
    %293 = arith.negf %292 : vector<8x64xf32>
    %294 = math.exp %293 : vector<8x64xf32>
    %cst_88 = arith.constant 1.000000e+00 : f32
    %295 = vector.broadcast %cst_88 : f32 to vector<8x64xf32>
    %296 = arith.addf %295, %294 : vector<8x64xf32>
    %297 = arith.divf %295, %296 : vector<8x64xf32>
    %298 = vector.extract_strided_slice %291 {offsets = [0, 64], sizes = [8, 64], strides = [1, 1]} : vector<8x256xf32> to vector<8x64xf32>
    %299 = arith.negf %298 : vector<8x64xf32>
    %300 = math.exp %299 : vector<8x64xf32>
    %cst_89 = arith.constant 1.000000e+00 : f32
    %301 = vector.broadcast %cst_89 : f32 to vector<8x64xf32>
    %302 = arith.addf %301, %300 : vector<8x64xf32>
    %303 = arith.divf %301, %302 : vector<8x64xf32>
    %304 = vector.extract_strided_slice %291 {offsets = [0, 128], sizes = [8, 64], strides = [1, 1]} : vector<8x256xf32> to vector<8x64xf32>
    %305 = math.tanh %304 : vector<8x64xf32>
    %306 = vector.extract_strided_slice %291 {offsets = [0, 192], sizes = [8, 64], strides = [1, 1]} : vector<8x256xf32> to vector<8x64xf32>
    %307 = arith.negf %306 : vector<8x64xf32>
    %308 = math.exp %307 : vector<8x64xf32>
    %cst_90 = arith.constant 1.000000e+00 : f32
    %309 = vector.broadcast %cst_90 : f32 to vector<8x64xf32>
    %310 = arith.addf %309, %308 : vector<8x64xf32>
    %311 = arith.divf %309, %310 : vector<8x64xf32>
    %312 = vector.extract_strided_slice %286 {offsets = [0, 256], sizes = [8, 64], strides = [1, 1]} : vector<8x320xf32> to vector<8x64xf32>
    %313 = vector.extract_strided_slice %288 {offsets = [0, 256], sizes = [8, 64], strides = [1, 1]} : vector<8x320xf32> to vector<8x64xf32>
    %314 = arith.addf %312, %313 : vector<8x64xf32>
    %315 = arith.mulf %303, %278 : vector<8x64xf32>
    %316 = arith.addf %305, %314 : vector<8x64xf32>
    %317 = arith.mulf %297, %316 : vector<8x64xf32>
    %318 = arith.addf %315, %317 : vector<8x64xf32>
    %319 = math.tanh %318 : vector<8x64xf32>
    %320 = arith.mulf %311, %319 : vector<8x64xf32>
    %321 = vector.extract_strided_slice %320 {offsets = [0, 0], sizes = [8, 32], strides = [1, 1]} : vector<8x64xf32> to vector<8x32xf32>
    %322 = arith.index_cast %c6_i32 : i32 to index
    %c0_91 = arith.constant 0 : index
    %c0_92 = arith.constant 0 : index
    %323 = vector.load %arg5[%322, %c0_91, %c0_92] : memref<8x8x32xf32, #tpu.memory_space<vmem>>, vector<1x8x32xf32>
    %324 = vector.shape_cast %323 : vector<1x8x32xf32> to vector<8x32xf32>
    %325 = vector.shape_cast %321 : vector<8x32xf32> to vector<1x8x32xf32>
    tpu.vector_store %arg5[%322, %c0_91, %c0_92], %325 {strides = array<i32>} : memref<8x8x32xf32, #tpu.memory_space<vmem>>, vector<1x8x32xf32>,
    %c7_i32 = arith.constant 7 : i32
    %326 = arith.index_cast %c7_i32 : i32 to index
    %c0_93 = arith.constant 0 : index
    %c0_94 = arith.constant 0 : index
    %327 = vector.load %arg9[%326, %c0_93, %c0_94] : memref<8x8x320xf32, #tpu.memory_space<vmem>>, vector<1x8x320xf32>
    %328 = vector.shape_cast %327 : vector<1x8x320xf32> to vector<8x320xf32>
    %c0_95 = arith.constant 0 : index
    %c0_96 = arith.constant 0 : index
    %329 = vector.load %arg11[%c0_95, %c0_96] : memref<64x320xf32, #tpu.memory_space<vmem>>, vector<64x320xf32>
    %cst_97 = arith.constant dense<0.000000e+00> : vector<8x320xf32>
    %330 = tpu.matmul %320, %329, %cst_97 {dimension_numbers = #tpu.dot_dimension_numbers<[1], [0], [0], [1], [0, 0, 1, 1], [], []>} : vector<8x64xf32>, vector<64x320xf32>, vector<8x320xf32> -> vector<8x320xf32>
    %331 = vector.extract_strided_slice %328 {offsets = [0, 0], sizes = [8, 256], strides = [1, 1]} : vector<8x320xf32> to vector<8x256xf32>
    %332 = vector.extract_strided_slice %330 {offsets = [0, 0], sizes = [8, 256], strides = [1, 1]} : vector<8x320xf32> to vector<8x256xf32>
    %333 = arith.addf %331, %332 : vector<8x256xf32>
    %334 = vector.extract_strided_slice %333 {offsets = [0, 0], sizes = [8, 64], strides = [1, 1]} : vector<8x256xf32> to vector<8x64xf32>
    %335 = arith.negf %334 : vector<8x64xf32>
    %336 = math.exp %335 : vector<8x64xf32>
    %cst_98 = arith.constant 1.000000e+00 : f32
    %337 = vector.broadcast %cst_98 : f32 to vector<8x64xf32>
    %338 = arith.addf %337, %336 : vector<8x64xf32>
    %339 = arith.divf %337, %338 : vector<8x64xf32>
    %340 = vector.extract_strided_slice %333 {offsets = [0, 64], sizes = [8, 64], strides = [1, 1]} : vector<8x256xf32> to vector<8x64xf32>
    %341 = arith.negf %340 : vector<8x64xf32>
    %342 = math.exp %341 : vector<8x64xf32>
    %cst_99 = arith.constant 1.000000e+00 : f32
    %343 = vector.broadcast %cst_99 : f32 to vector<8x64xf32>
    %344 = arith.addf %343, %342 : vector<8x64xf32>
    %345 = arith.divf %343, %344 : vector<8x64xf32>
    %346 = vector.extract_strided_slice %333 {offsets = [0, 128], sizes = [8, 64], strides = [1, 1]} : vector<8x256xf32> to vector<8x64xf32>
    %347 = math.tanh %346 : vector<8x64xf32>
    %348 = vector.extract_strided_slice %333 {offsets = [0, 192], sizes = [8, 64], strides = [1, 1]} : vector<8x256xf32> to vector<8x64xf32>
    %349 = arith.negf %348 : vector<8x64xf32>
    %350 = math.exp %349 : vector<8x64xf32>
    %cst_100 = arith.constant 1.000000e+00 : f32
    %351 = vector.broadcast %cst_100 : f32 to vector<8x64xf32>
    %352 = arith.addf %351, %350 : vector<8x64xf32>
    %353 = arith.divf %351, %352 : vector<8x64xf32>
    %354 = vector.extract_strided_slice %328 {offsets = [0, 256], sizes = [8, 64], strides = [1, 1]} : vector<8x320xf32> to vector<8x64xf32>
    %355 = vector.extract_strided_slice %330 {offsets = [0, 256], sizes = [8, 64], strides = [1, 1]} : vector<8x320xf32> to vector<8x64xf32>
    %356 = arith.addf %354, %355 : vector<8x64xf32>
    %357 = arith.mulf %345, %320 : vector<8x64xf32>
    %358 = arith.addf %347, %356 : vector<8x64xf32>
    %359 = arith.mulf %339, %358 : vector<8x64xf32>
    %360 = arith.addf %357, %359 : vector<8x64xf32>
    %361 = math.tanh %360 : vector<8x64xf32>
    %362 = arith.mulf %353, %361 : vector<8x64xf32>
    %363 = vector.extract_strided_slice %362 {offsets = [0, 0], sizes = [8, 32], strides = [1, 1]} : vector<8x64xf32> to vector<8x32xf32>
    %364 = arith.index_cast %c7_i32 : i32 to index
    %c0_101 = arith.constant 0 : index
    %c0_102 = arith.constant 0 : index
    %365 = vector.load %arg5[%364, %c0_101, %c0_102] : memref<8x8x32xf32, #tpu.memory_space<vmem>>, vector<1x8x32xf32>
    %366 = vector.shape_cast %365 : vector<1x8x32xf32> to vector<8x32xf32>
    %367 = vector.shape_cast %363 : vector<8x32xf32> to vector<1x8x32xf32>
    tpu.vector_store %arg5[%364, %c0_101, %c0_102], %367 {strides = array<i32>} : memref<8x8x32xf32, #tpu.memory_space<vmem>>, vector<1x8x32xf32>,
    %c8_i32 = arith.constant 8 : i32
    %c0_103 = arith.constant 0 : index
    %c0_104 = arith.constant 0 : index
    %368 = vector.load %arg7[%c0_103, %c0_104] : memref<8x64xf32, #tpu.memory_space<vmem>>, vector<8x64xf32>
    tpu.vector_store %arg7[%c0_103, %c0_104], %362 {strides = array<i32>} : memref<8x64xf32, #tpu.memory_space<vmem>>, vector<8x64xf32>,
    %c0_i32_105 = arith.constant 0 : i32
    %369 = arith.cmpi eq, %arg0, %c0_i32_105 : i32
    %370 = arith.extui %369 : i1 to i32
    %c0_i32_106 = arith.constant 0 : i32
    %371 = arith.cmpi ne, %370, %c0_i32_106 : i32
    scf.if %371 {
      %c0_107 = arith.constant 0 : index
      %c0_108 = arith.constant 0 : index
      %372 = vector.load %arg6[%c0_107, %c0_108] : memref<8x64xf32, #tpu.memory_space<vmem>>, vector<8x64xf32>
      tpu.vector_store %arg6[%c0_107, %c0_108], %362 {strides = array<i32>} : memref<8x64xf32, #tpu.memory_space<vmem>>, vector<8x64xf32>,
    } else {
    }
    return
  }
  func.func @transform_0(%arg0: i32) -> (i32, i32, i32) {
    %c0_i32 = arith.constant 0 : i32
    %c0_i32_0 = arith.constant 0 : i32
    %c0_i32_1 = arith.constant 0 : i32
    return %arg0, %c0_i32, %c0_i32_0 : i32, i32, i32
  }
  func.func @transform_1(%arg0: i32) -> (i32, i32) {
    %c0_i32 = arith.constant 0 : i32
    %c0_i32_0 = arith.constant 0 : i32
    %c0_i32_1 = arith.constant 0 : i32
    return %c0_i32, %c0_i32_0 : i32, i32
  }
  func.func @transform_4(%arg0: i32) -> (i32, i32, i32) {
    %c0_i32 = arith.constant 0 : i32
    %c0_i32_0 = arith.constant 0 : i32
    %c0_i32_1 = arith.constant 0 : i32
    return %arg0, %c0_i32, %c0_i32_0 : i32, i32, i32
  }
  func.func @transform_5(%arg0: i32) -> (i32, i32) {
    %c0_i32 = arith.constant 0 : i32
    %c0_i32_0 = arith.constant 0 : i32
    %c0_i32_1 = arith.constant 0 : i32
    return %c0_i32, %c0_i32_0 : i32, i32
  }
}

</mosaic_0001>

<llo_original>
// kernel: tpu_custom_call.1
$region0: #{tpu_custom_call.1}
  #allocation0 [shape = 'u32[]', space=smem, size = 0x4, offset = 0x4, fixed_abs, tag = 'smem constant byte address 0x4 - core index']
  #allocation1 [shape = 'u32[144,128]{1,0:T(1,128)}', space=vmem, size = 0x12000, scoped, tag = 'internal scratch']
  #allocation2 [shape = 'f32[8,64]{1,0:T(8,128)}', space=vmem, size = 0x1000, scoped, tag = 'scratch operand']
  #allocation3 [shape = 'f32[8,256]{1,0:T(8,128)}', space=vmem, size = 0x2000, scoped, tag = 'scratch operand']
  #allocation4 [shape = 'f32[8,8,320]{2,1,0:T(8,128)}', space=vmem, size = 0x18000, scoped, tag = 'scratch operand']
  #allocation5 [shape = 'f32[16,576]{1,0:T(8,128)}', space=vmem, size = 0xa000, scoped, tag = 'scratch operand']
  #allocation6 [shape = 'f32[64,320]{1,0:T(8,128)}', space=vmem, size = 0x18000, scoped, tag = 'scratch operand']
  #allocation7 [shape = 's32[2]{0}', space=sflag, size = 0x8, scoped, tag = 'scratch operand']
  #allocation14 [shape = 's32[]', space=sflag, size = 0x4, offset = 0, fixed_abs, tag = 'sflag constant byte address 0x0 - dummy sync flag']
  #allocation15 [shape = 's32[]', space=sflag, size = 0x4, offset = 0, fixed_abs, tag = 'sflag constant byte address 0x0 - dummy sync flag']
  #allocation16 [shape = 'u32[]', space=smem, size = 0x4, offset = 0x44, fixed_abs, tag = 'smem constant byte address 0x44 - assertion arg 0']
  #allocation17 [shape = 'u32[]', space=smem, size = 0x4, offset = 0x48, fixed_abs, tag = 'smem constant byte address 0x48 - assertion arg 1']
  #allocation18 [shape = 's32[]', space=sflag, size = 0x4, offset = 0, fixed_abs, tag = 'sflag constant byte address 0x0 - dummy sync flag']
  #allocation19 [shape = 's32[]', space=sflag, size = 0x4, offset = 0, fixed_abs, tag = 'sflag constant byte address 0x0 - dummy sync flag']
  %s0 = inlined_call_operand.hbm [shape: f32[8,8,16], index: 0, kind: input, shape index: {}]
  %s1 = inlined_call_operand.vmem [shape: f32[1,256], index: 1, kind: input, shape index: {}]
  %s2 = inlined_call_operand.hbm [shape: f32[16,576], index: 2, kind: input, shape index: {}]
  %s3 = inlined_call_operand.hbm [shape: f32[64,320], index: 3, kind: input, shape index: {}]
  %s4 = inlined_call_operand.hbm [shape: f32[8,8,32], index: 4, kind: output, shape index: {0}]
  %s5 = inlined_call_operand.hbm [shape: f32[8,64], index: 5, kind: output, shape index: {1}]
  %6 = xla_tuple %s4, %s5
  %s7 = sld [smem:[#allocation0]]
  $region54: #{tpu_custom_call.1} parent=0
    _
  %s9 = ssub.s32 1, %s7
  %s10 = scalar_select 0, %s9, %s7
  $region1: #{tpu_custom_call.1} parent=0
    #allocation8 [shape = 'u8[32768]{0}', space=vmem, size = 0x8000, scoped, tag = 'input window, operand 0, single buffered']
    #allocation9 [shape = 's32[1]{0}', space=sflag, size = 0x4, scoped, tag = 'scoped memory for tpu_custom_call.1']
    #allocation10 [shape = 's32[1]{0}', space=sflag, size = 0x4, scoped, tag = 'scoped memory for tpu_custom_call.1']
    #allocation11 [shape = 'u8[32768]{0}', space=vmem, size = 0x8000, scoped, tag = 'output window, operand 0, single buffered']
    #allocation12 [shape = 'u8[4096]{0}', space=vmem, size = 0x1000, scoped, tag = 'output window, operand 1, single buffered']
    #allocation13 [shape = 's32[1]{0}', space=sflag, size = 0x4, scoped, tag = 'scoped memory for tpu_custom_call.1']
    %11 = vsyncpa [#allocation9], 0
    %12 = vsyncpa [#allocation10], 0
    %13 = vsyncpa [#allocation13], 0
    // Predicated region
    $region2: #{tpu_custom_call.1} parent=1 // pred_check
      _
    $region3: #{tpu_custom_call.1} parent=1 // pred_check_branch
      %15 = sbr.rel (0) target = $region5
    $region4: #{tpu_custom_call.1} parent=1 // pred_region
      %s17 = ssub.s32 1024, 1024
      %18 = vsyncadd [#allocation9], %s17
      %s19 = sshll.u32 [#allocation8], 4
      %s20 = int_to_ptr.vmem [resolvable:$true] %s19
      %25 = dma.hbm_to_vmem [thread:$0]  %s0, 1024, %s20, [#allocation9], 128, 128, 8
    $region5: #{tpu_custom_call.1} parent=1 // pred_fallthru
      _
    // Predicated region
    $region6: #{tpu_custom_call.1} parent=1 // pred_check
      _
    $region7: #{tpu_custom_call.1} parent=1 // pred_check_branch
      %27 = sbr.rel (0) target = $region9
    $region8: #{tpu_custom_call.1} parent=1 // pred_region
      _
    $region9: #{tpu_custom_call.1} parent=1 // pred_fallthru
      _
    // Predicated region
    $region10: #{tpu_custom_call.1} parent=1 // pred_check
      _
    $region11: #{tpu_custom_call.1} parent=1 // pred_check_branch
      %29 = sbr.rel (0) target = $region13
    $region12: #{tpu_custom_call.1} parent=1 // pred_region
      %30 = dma.done [#allocation9], 1024
    $region13: #{tpu_custom_call.1} parent=1 // pred_fallthru
      _
    %p31 = scmp.eq.s32.totalorder 0, 0
    // Predicated region
    $region14: #{tpu_custom_call.1} parent=1 // pred_check
      %p32 = pneg %p31
    $region15: #{tpu_custom_call.1} parent=1 // pred_check_branch
      %34 = sbr.rel (%p32) target = $region17
    $region16: #{tpu_custom_call.1} parent=1 // pred_region
      // Predicated region
      $region18: #{tpu_custom_call.1} parent=16 // pred_check
        _
      $region19: #{tpu_custom_call.1} parent=16 // pred_check_branch
        %36 = sbr.rel target = $region21
      $region20: #{tpu_custom_call.1} parent=16 // pred_region
        %37 = sst [smem:[#allocation16]] [#allocation15]
        %38 = sst [smem:[#allocation17]] [#allocation14]
      $region21: #{tpu_custom_call.1} parent=16 // pred_fallthru
        _
      %40 = shalt.err (0)
      %s42 = sshll.u32 [#allocation5], 4
      %s43 = int_to_ptr.vmem [resolvable:$true] %s42
      %45 = dma.hbm_to_vmem [thread:$0]  %s2, 1280, %s43, [#allocation7]
      %s46 = scalar_lea.sflag [#allocation7], 1
      // Predicated region
      $region22: #{tpu_custom_call.1} parent=16 // pred_check
        _
      $region23: #{tpu_custom_call.1} parent=16 // pred_check_branch
        %48 = sbr.rel target = $region25
      $region24: #{tpu_custom_call.1} parent=16 // pred_region
        %49 = sst [smem:[#allocation16]] [#allocation19]
        %50 = sst [smem:[#allocation17]] [#allocation18]
      $region25: #{tpu_custom_call.1} parent=16 // pred_fallthru
        _
      %52 = shalt.err (0)
      %s54 = sshll.u32 [#allocation6], 4
      %s55 = int_to_ptr.vmem [resolvable:$true] %s54
      %57 = dma.hbm_to_vmem [thread:$0]  %s3, 3072, %s55, %s46
      %s58 = smul.u32 8, 2
      %s59 = smul.u32 %s58, 5
      %s60 = sshll.u32 %s59, 4
      %61 = dma.done [#allocation7], %s60
      %vm62 = vcmask 523264
      %63 = vst.msk [vmem:[#allocation2] sm:$0xff] %vm62, 0.0
    $region17: #{tpu_custom_call.1} parent=1 // pred_fallthru
      _
    %v64 = vld [vmem:[#allocation8] sm:$0xff]
    %v65 = vld [vmem:[#allocation8 + $0x8] sm:$0xff]
    %v66 = vld [vmem:[#allocation8 + $0x10] sm:$0xff]
    %v67 = vld [vmem:[#allocation8 + $0x18] sm:$0xff]
    %v68 = vld [vmem:[#allocation8 + $0x20] sm:$0xff]
    %v69 = vld [vmem:[#allocation8 + $0x28] sm:$0xff]
    %v70 = vld [vmem:[#allocation8 + $0x30] sm:$0xff]
    %v71 = vld [vmem:[#allocation8 + $0x38] sm:$0xff]
    %v72 = vld [vmem:[#allocation5] sm:$0xff]
    %v73 = vld [vmem:[#allocation5 + $0x8] sm:$0xff]
    %v74 = vld [vmem:[#allocation5 + $0x10] sm:$0xff]
    %v75 = vld [vmem:[#allocation5 + $0x18] sm:$0xff]
    %v76 = vld [vmem:[#allocation5 + $0x20] sm:$0xff]
    %v77 = vld [vmem:[#allocation5 + $0x28] sm:$0xff]
    %v78 = vld [vmem:[#allocation5 + $0x30] sm:$0xff]
    %v79 = vld [vmem:[#allocation5 + $0x38] sm:$0xff]
    %v80 = vld [vmem:[#allocation5 + $0x40] sm:$0xff]
    %v81 = vld [vmem:[#allocation5 + $0x48] sm:$0xff]
    %vm82 = vcmask 130048
    %v84 = vsel %vm82, %v64, 0
    %v87 = vsel %vm82, %v65, 0
    %v90 = vsel %vm82, %v66, 0
    %v93 = vsel %vm82, %v67, 0
    %v96 = vsel %vm82, %v68, 0
    %v99 = vsel %vm82, %v69, 0
    %v102 = vsel %vm82, %v70, 0
    %v105 = vsel %vm82, %v71, 0
    %107 = vmatprep.subr.mxu0 %v73
    %108 = vmatpush1.msra.mxu0 %v72
    %109 = vmatprep.subr.mxu0 %v78
    %110 = vmatpush1.msra.mxu0 %v77
    %111 = vmatprep.subr.mxu0 0.0
    %112 = vmatpush1.msra.mxu0 0.0
    %113 = vmatprep.subr.mxu0 0.0
    %114 = vmatpush1.msra.mxu0 0.0
    %115 = vmatprep.subr.mxu0 0.0
    %116 = vmatpush1.msra.mxu0 0.0
    %117 = vmatprep.subr.mxu0 0.0
    %118 = vmatpush1.msra.mxu0 0.0
    %119 = vmatprep.subr.mxu0 0.0
    %120 = vmatpush1.msra.mxu0 0.0
    %121 = vmatprep.subr.mxu0 0.0
    %122 = vmatpush1.msra.mxu0 0.0
    %123 = vmatprep.subr.mxu0 0.0
    %124 = vmatpush1.msra.mxu0 0.0
    %125 = vmatprep.subr.mxu0 0.0
    %126 = vmatpush1.msra.mxu0 0.0
    %127 = vmatprep.subr.mxu0 0.0
    %128 = vmatpush1.msra.mxu0 0.0
    %129 = vmatprep.subr.mxu0 0.0
    %130 = vmatpush1.msra.mxu0 0.0
    %131 = vmatprep.subr.mxu0 0.0
    %132 = vmatpush1.msra.mxu0 0.0
    %133 = vmatprep.subr.mxu0 0.0
    %134 = vmatpush1.msra.mxu0 0.0
    %135 = vmatprep.subr.mxu0 0.0
    %136 = vmatpush1.msra.mxu0 0.0
    %137 = vmatprep.subr.mxu0 0.0
    %138 = vmatpush1.msra.mxu0 0.0
    %139 = vmatprep.subr.mxu0 0.0
    %140 = vmatpush1.msra.mxu0 0.0
    %141 = vmatprep.subr.mxu0 0.0
    %142 = vmatpush1.msra.mxu0 0.0
    %143 = vmatprep.subr.mxu0 0.0
    %144 = vmatpush1.msra.mxu0 0.0
    %145 = vmatprep.subr.mxu0 0.0
    %146 = vmatpush1.msra.mxu0 0.0
    %147 = vmatprep.subr.mxu0 0.0
    %148 = vmatpush1.msra.mxu0 0.0
    %149 = vmatprep.subr.mxu0 0.0
    %150 = vmatpush1.msra.mxu0 0.0
    %151 = vmatprep.subr.mxu0 0.0
    %152 = vmatpush1.msra.mxu0 0.0
    %153 = vmatprep.subr.mxu0 0.0
    %154 = vmatpush1.msra.mxu0 0.0
    %155 = vmatprep.subr.mxu0 0.0
    %156 = vmatpush1.msra.mxu0 0.0
    %157 = vmatprep.subr.mxu0 0.0
    %158 = vmatpush1.msra.mxu0 0.0
    %159 = vmatprep.subr.mxu0 0.0
    %160 = vmatpush1.msra.mxu0 0.0
    %161 = vmatprep.subr.mxu0 0.0
    %162 = vmatpush1.msra.mxu0 0.0
    %163 = vmatprep.subr.mxu0 0.0
    %164 = vmatpush1.msra.mxu0 0.0
    %165 = vmatprep.subr.mxu0 0.0
    %166 = vmatpush1.msra.mxu0 0.0
    %167 = vmatprep.subr.mxu0 0.0
    %168 = vmatpush1.msra.mxu0 0.0
    %169 = vmatprep.subr.mxu0 0.0
    %170 = vmatpush1.msra.mxu0 0.0
    %171 = vmatprep.mubr.f32.mxu0 0.0
    %172 = vmatmul.mubr.f32.gmra.mrb[0].mxu0 %v84
    %v173 = vpop.f32.mrb[0].mxu0
    %v174 = vadd.f32 0.0, %v173
    %v175 = vpop.f32.mrb[0].mxu0
    %v176 = vadd.f32 0.0, %v175
    %177 = vmatprep.mubr.f32.mxu0 0.0
    %178 = vmatmul.mubr.f32.gmra.mrb[0].mxu0 %v87
    %v179 = vpop.f32.mrb[0].mxu0
    %v180 = vadd.f32 0.0, %v179
    %v181 = vpop.f32.mrb[0].mxu0
    %v182 = vadd.f32 0.0, %v181
    %183 = vmatprep.mubr.f32.mxu0 0.0
    %184 = vmatmul.mubr.f32.gmra.mrb[0].mxu0 %v90
    %v185 = vpop.f32.mrb[0].mxu0
    %v186 = vadd.f32 0.0, %v185
    %v187 = vpop.f32.mrb[0].mxu0
    %v188 = vadd.f32 0.0, %v187
    %189 = vmatprep.mubr.f32.mxu0 0.0
    %190 = vmatmul.mubr.f32.gmra.mrb[0].mxu0 %v93
    %v191 = vpop.f32.mrb[0].mxu0
    %v192 = vadd.f32 0.0, %v191
    %v193 = vpop.f32.mrb[0].mxu0
    %v194 = vadd.f32 0.0, %v193
    %195 = vmatprep.mubr.f32.mxu0 0.0
    %196 = vmatmul.mubr.f32.gmra.mrb[0].mxu0 %v96
    %v197 = vpop.f32.mrb[0].mxu0
    %v198 = vadd.f32 0.0, %v197
    %v199 = vpop.f32.mrb[0].mxu0
    %v200 = vadd.f32 0.0, %v199
    %201 = vmatprep.mubr.f32.mxu0 0.0
    %202 = vmatmul.mubr.f32.gmra.mrb[0].mxu0 %v99
    %v203 = vpop.f32.mrb[0].mxu0
    %v204 = vadd.f32 0.0, %v203
    %v205 = vpop.f32.mrb[0].mxu0
    %v206 = vadd.f32 0.0, %v205
    %207 = vmatprep.mubr.f32.mxu0 0.0
    %208 = vmatmul.mubr.f32.gmra.mrb[0].mxu0 %v102
    %v209 = vpop.f32.mrb[0].mxu0
    %v210 = vadd.f32 0.0, %v209
    %v211 = vpop.f32.mrb[0].mxu0
    %v212 = vadd.f32 0.0, %v211
    %213 = vmatprep.mubr.f32.mxu0 0.0
    %214 = vmatmul.mubr.f32.gmra.mrb[0].mxu0 %v105
    %v215 = vpop.f32.mrb[0].mxu0
    %v216 = vadd.f32 0.0, %v215
    %v217 = vpop.f32.mrb[0].mxu0
    %v218 = vadd.f32 0.0, %v217
    %219 = vdwg.mxu0
    %220 = vmatprep.subr.mxu0 %v75
    %221 = vmatpush1.msra.mxu0 %v74
    %222 = vmatprep.subr.mxu0 %v80
    %223 = vmatpush1.msra.mxu0 %v79
    %224 = vmatprep.subr.mxu0 0.0
    %225 = vmatpush1.msra.mxu0 0.0
    %226 = vmatprep.subr.mxu0 0.0
    %227 = vmatpush1.msra.mxu0 0.0
    %228 = vmatprep.subr.mxu0 0.0
    %229 = vmatpush1.msra.mxu0 0.0
    %230 = vmatprep.subr.mxu0 0.0
    %231 = vmatpush1.msra.mxu0 0.0
    %232 = vmatprep.subr.mxu0 0.0
    %233 = vmatpush1.msra.mxu0 0.0
    %234 = vmatprep.subr.mxu0 0.0
    %235 = vmatpush1.msra.mxu0 0.0
    %236 = vmatprep.subr.mxu0 0.0
    %237 = vmatpush1.msra.mxu0 0.0
    %238 = vmatprep.subr.mxu0 0.0
    %239 = vmatpush1.msra.mxu0 0.0
    %240 = vmatprep.subr.mxu0 0.0
    %241 = vmatpush1.msra.mxu0 0.0
    %242 = vmatprep.subr.mxu0 0.0
    %243 = vmatpush1.msra.mxu0 0.0
    %244 = vmatprep.subr.mxu0 0.0
    %245 = vmatpush1.msra.mxu0 0.0
    %246 = vmatprep.subr.mxu0 0.0
    %247 = vmatpush1.msra.mxu0 0.0
    %248 = vmatprep.subr.mxu0 0.0
    %249 = vmatpush1.msra.mxu0 0.0
    %250 = vmatprep.subr.mxu0 0.0
    %251 = vmatpush1.msra.mxu0 0.0
    %252 = vmatprep.subr.mxu0 0.0
    %253 = vmatpush1.msra.mxu0 0.0
    %254 = vmatprep.subr.mxu0 0.0
    %255 = vmatpush1.msra.mxu0 0.0
    %256 = vmatprep.subr.mxu0 0.0
    %257 = vmatpush1.msra.mxu0 0.0
    %258 = vmatprep.subr.mxu0 0.0
    %259 = vmatpush1.msra.mxu0 0.0
    %260 = vmatprep.subr.mxu0 0.0
    %261 = vmatpush1.msra.mxu0 0.0
    %262 = vmatprep.subr.mxu0 0.0
    %263 = vmatpush1.msra.mxu0 0.0
    %264 = vmatprep.subr.mxu0 0.0
    %265 = vmatpush1.msra.mxu0 0.0
    %266 = vmatprep.subr.mxu0 0.0
    %267 = vmatpush1.msra.mxu0 0.0
    %268 = vmatprep.subr.mxu0 0.0
    %269 = vmatpush1.msra.mxu0 0.0
    %270 = vmatprep.subr.mxu0 0.0
    %271 = vmatpush1.msra.mxu0 0.0
    %272 = vmatprep.subr.mxu0 0.0
    %273 = vmatpush1.msra.mxu0 0.0
    %274 = vmatprep.subr.mxu0 0.0
    %275 = vmatpush1.msra.mxu0 0.0
    %276 = vmatprep.subr.mxu0 0.0
    %277 = vmatpush1.msra.mxu0 0.0
    %278 = vmatprep.subr.mxu0 0.0
    %279 = vmatpush1.msra.mxu0 0.0
    %280 = vmatprep.subr.mxu0 0.0
    %281 = vmatpush1.msra.mxu0 0.0
    %282 = vmatprep.subr.mxu0 0.0
    %283 = vmatpush1.msra.mxu0 0.0
    %284 = vmatprep.mubr.f32.mxu0 0.0
    %285 = vmatmul.mubr.f32.gmra.mrb[0].mxu0 %v84
    %v286 = vpop.f32.mrb[0].mxu0
    %v287 = vadd.f32 0.0, %v286
    %v288 = vpop.f32.mrb[0].mxu0
    %v289 = vadd.f32 0.0, %v288
    %290 = vmatprep.mubr.f32.mxu0 0.0
    %291 = vmatmul.mubr.f32.gmra.mrb[0].mxu0 %v87
    %v292 = vpop.f32.mrb[0].mxu0
    %v293 = vadd.f32 0.0, %v292
    %v294 = vpop.f32.mrb[0].mxu0
    %v295 = vadd.f32 0.0, %v294
    %296 = vmatprep.mubr.f32.mxu0 0.0
    %297 = vmatmul.mubr.f32.gmra.mrb[0].mxu0 %v90
    %v298 = vpop.f32.mrb[0].mxu0
    %v299 = vadd.f32 0.0, %v298
    %v300 = vpop.f32.mrb[0].mxu0
    %v301 = vadd.f32 0.0, %v300
    %302 = vmatprep.mubr.f32.mxu0 0.0
    %303 = vmatmul.mubr.f32.gmra.mrb[0].mxu0 %v93
    %v304 = vpop.f32.mrb[0].mxu0
    %v305 = vadd.f32 0.0, %v304
    %v306 = vpop.f32.mrb[0].mxu0
    %v307 = vadd.f32 0.0, %v306
    %308 = vmatprep.mubr.f32.mxu0 0.0
    %309 = vmatmul.mubr.f32.gmra.mrb[0].mxu0 %v96
    %v310 = vpop.f32.mrb[0].mxu0
    %v311 = vadd.f32 0.0, %v310
    %v312 = vpop.f32.mrb[0].mxu0
    %v313 = vadd.f32 0.0, %v312
    %314 = vmatprep.mubr.f32.mxu0 0.0
    %315 = vmatmul.mubr.f32.gmra.mrb[0].mxu0 %v99
    %v316 = vpop.f32.mrb[0].mxu0
    %v317 = vadd.f32 0.0, %v316
    %v318 = vpop.f32.mrb[0].mxu0
    %v319 = vadd.f32 0.0, %v318
    %320 = vmatprep.mubr.f32.mxu0 0.0
    %321 = vmatmul.mubr.f32.gmra.mrb[0].mxu0 %v102
    %v322 = vpop.f32.mrb[0].mxu0
    %v323 = vadd.f32 0.0, %v322
    %v324 = vpop.f32.mrb[0].mxu0
    %v325 = vadd.f32 0.0, %v324
    %326 = vmatprep.mubr.f32.mxu0 0.0
    %327 = vmatmul.mubr.f32.gmra.mrb[0].mxu0 %v105
    %v328 = vpop.f32.mrb[0].mxu0
    %v329 = vadd.f32 0.0, %v328
    %v330 = vpop.f32.mrb[0].mxu0
    %v331 = vadd.f32 0.0, %v330
    %332 = vdwg.mxu0
    %333 = vmatprep.subr.mxu0 0.0
    %334 = vmatpush1.msra.mxu0 %v76
    %335 = vmatprep.subr.mxu0 0.0
    %336 = vmatpush1.msra.mxu0 %v81
    %337 = vmatprep.subr.mxu0 0.0
    %338 = vmatpush1.msra.mxu0 0.0
    %339 = vmatprep.subr.mxu0 0.0
    %340 = vmatpush1.msra.mxu0 0.0
    %341 = vmatprep.subr.mxu0 0.0
    %342 = vmatpush1.msra.mxu0 0.0
    %343 = vmatprep.subr.mxu0 0.0
    %344 = vmatpush1.msra.mxu0 0.0
    %345 = vmatprep.subr.mxu0 0.0
    %346 = vmatpush1.msra.mxu0 0.0
    %347 = vmatprep.subr.mxu0 0.0
    %348 = vmatpush1.msra.mxu0 0.0
    %349 = vmatprep.subr.mxu0 0.0
    %350 = vmatpush1.msra.mxu0 0.0
    %351 = vmatprep.subr.mxu0 0.0
    %352 = vmatpush1.msra.mxu0 0.0
    %353 = vmatprep.subr.mxu0 0.0
    %354 = vmatpush1.msra.mxu0 0.0
    %355 = vmatprep.subr.mxu0 0.0
    %356 = vmatpush1.msra.mxu0 0.0
    %357 = vmatprep.subr.mxu0 0.0
    %358 = vmatpush1.msra.mxu0 0.0
    %359 = vmatprep.subr.mxu0 0.0
    %360 = vmatpush1.msra.mxu0 0.0
    %361 = vmatprep.subr.mxu0 0.0
    %362 = vmatpush1.msra.mxu0 0.0
    %363 = vmatprep.subr.mxu0 0.0
    %364 = vmatpush1.msra.mxu0 0.0
    %365 = vmatprep.subr.mxu0 0.0
    %366 = vmatpush1.msra.mxu0 0.0
    %367 = vmatprep.subr.mxu0 0.0
    %368 = vmatpush1.msra.mxu0 0.0
    %369 = vmatprep.subr.mxu0 0.0
    %370 = vmatpush1.msra.mxu0 0.0
    %371 = vmatprep.subr.mxu0 0.0
    %372 = vmatpush1.msra.mxu0 0.0
    %373 = vmatprep.subr.mxu0 0.0
    %374 = vmatpush1.msra.mxu0 0.0
    %375 = vmatprep.subr.mxu0 0.0
    %376 = vmatpush1.msra.mxu0 0.0
    %377 = vmatprep.subr.mxu0 0.0
    %378 = vmatpush1.msra.mxu0 0.0
    %379 = vmatprep.subr.mxu0 0.0
    %380 = vmatpush1.msra.mxu0 0.0
    %381 = vmatprep.subr.mxu0 0.0
    %382 = vmatpush1.msra.mxu0 0.0
    %383 = vmatprep.subr.mxu0 0.0
    %384 = vmatpush1.msra.mxu0 0.0
    %385 = vmatprep.subr.mxu0 0.0
    %386 = vmatpush1.msra.mxu0 0.0
    %387 = vmatprep.subr.mxu0 0.0
    %388 = vmatpush1.msra.mxu0 0.0
    %389 = vmatprep.subr.mxu0 0.0
    %390 = vmatpush1.msra.mxu0 0.0
    %391 = vmatprep.subr.mxu0 0.0
    %392 = vmatpush1.msra.mxu0 0.0
    %393 = vmatprep.subr.mxu0 0.0
    %394 = vmatpush1.msra.mxu0 0.0
    %395 = vmatprep.subr.mxu0 0.0
    %396 = vmatpush1.msra.mxu0 0.0
    %397 = vmatprep.mubr.f32.mxu0 0.0
    %398 = vmatmul.mubr.f32.gmra.mrb[0].mxu0 %v84
    %v399 = vpop.f32.mrb[0].mxu0
    %v400 = vadd.f32 0.0, %v399
    %v401 = vpop.f32.mrb[0].mxu0
    %402 = vmatprep.mubr.f32.mxu0 0.0
    %403 = vmatmul.mubr.f32.gmra.mrb[0].mxu0 %v87
    %v404 = vpop.f32.mrb[0].mxu0
    %v405 = vadd.f32 0.0, %v404
    %v406 = vpop.f32.mrb[0].mxu0
    %407 = vmatprep.mubr.f32.mxu0 0.0
    %408 = vmatmul.mubr.f32.gmra.mrb[0].mxu0 %v90
    %v409 = vpop.f32.mrb[0].mxu0
    %v410 = vadd.f32 0.0, %v409
    %v411 = vpop.f32.mrb[0].mxu0
    %412 = vmatprep.mubr.f32.mxu0 0.0
    %413 = vmatmul.mubr.f32.gmra.mrb[0].mxu0 %v93
    %v414 = vpop.f32.mrb[0].mxu0
    %v415 = vadd.f32 0.0, %v414
    %v416 = vpop.f32.mrb[0].mxu0
    %417 = vmatprep.mubr.f32.mxu0 0.0
    %418 = vmatmul.mubr.f32.gmra.mrb[0].mxu0 %v96
    %v419 = vpop.f32.mrb[0].mxu0
    %v420 = vadd.f32 0.0, %v419
    %v421 = vpop.f32.mrb[0].mxu0
    %422 = vmatprep.mubr.f32.mxu0 0.0
    %423 = vmatmul.mubr.f32.gmra.mrb[0].mxu0 %v99
    %v424 = vpop.f32.mrb[0].mxu0
    %v425 = vadd.f32 0.0, %v424
    %v426 = vpop.f32.mrb[0].mxu0
    %427 = vmatprep.mubr.f32.mxu0 0.0
    %428 = vmatmul.mubr.f32.gmra.mrb[0].mxu0 %v102
    %v429 = vpop.f32.mrb[0].mxu0
    %v430 = vadd.f32 0.0, %v429
    %v431 = vpop.f32.mrb[0].mxu0
    %432 = vmatprep.mubr.f32.mxu0 0.0
    %433 = vmatmul.mubr.f32.gmra.mrb[0].mxu0 %v105
    %v434 = vpop.f32.mrb[0].mxu0
    %v435 = vadd.f32 0.0, %v434
    %v436 = vpop.f32.mrb[0].mxu0
    %437 = vdwg.mxu0
    %v438 = vld [vmem:[%s1] sm:$0x3]
    %v440 = vlaneseq
    %v441 = vshrl.u32 %v440, 7
    %v442 = vsub.s32 0, %v441
    %v443 = vrot.slane %v438, %v442
    %v444 = vlaneseq
    %v445 = vshrl.u32 %v444, 7
    %v446 = vsub.s32 1, %v445
    %v447 = vrot.slane %v438, %v446
    %v450 = vadd.f32 %v174, %v443
    %v451 = vadd.f32 %v176, %v447
    %v452 = vadd.f32 %v180, %v443
    %v453 = vadd.f32 %v182, %v447
    %v454 = vadd.f32 %v186, %v443
    %v455 = vadd.f32 %v188, %v447
    %v456 = vadd.f32 %v192, %v443
    %v457 = vadd.f32 %v194, %v447
    %v458 = vadd.f32 %v198, %v443
    %v459 = vadd.f32 %v200, %v447
    %v460 = vadd.f32 %v204, %v443
    %v461 = vadd.f32 %v206, %v447
    %v462 = vadd.f32 %v210, %v443
    %v463 = vadd.f32 %v212, %v447
    %v464 = vadd.f32 %v216, %v443
    %v465 = vadd.f32 %v218, %v447
    // Predicated region
    $region26: #{tpu_custom_call.1} parent=1 // pred_check
      %p466 = pneg %p31
    $region27: #{tpu_custom_call.1} parent=1 // pred_check_branch
      %468 = sbr.rel (%p466) target = $region29
    $region28: #{tpu_custom_call.1} parent=1 // pred_region
      %472 = vrot.lane.b32.xlu0 %v287, 64
      %v473 = vpop.permute.xlu0 %472
      %474 = vrot.lane.b32.xlu0 %v289, 64
      %v475 = vpop.permute.xlu0 %474
      %476 = vrot.lane.b32.xlu0 %v400, 64
      %v477 = vpop.permute.xlu0 %476
      %vm478 = vcmask 523264
      %v479 = vsel %vm478, %v473, %v475
      %v480 = vsel %vm478, %v475, %v477
      %483 = vst [vmem:[#allocation3] sm:$0xff] %v479
      %484 = vst [vmem:[#allocation3 + $0x8] sm:$0xff] %v480
    $region29: #{tpu_custom_call.1} parent=1 // pred_fallthru
      _
    %v485 = vld [vmem:[#allocation3] sm:$0xff]
    %v486 = vld [vmem:[#allocation3 + $0x8] sm:$0xff]
    %508 = vrot.lane.b32.xlu0 %v287, 64
    %v509 = vpop.permute.xlu0 %508
    %510 = vrot.lane.b32.xlu0 %v289, 64
    %v511 = vpop.permute.xlu0 %510
    %512 = vrot.lane.b32.xlu0 %v400, 64
    %v513 = vpop.permute.xlu0 %512
    %514 = vrot.lane.b32.xlu0 %v293, 64
    %v515 = vpop.permute.xlu0 %514
    %516 = vrot.lane.b32.xlu0 %v295, 64
    %v517 = vpop.permute.xlu0 %516
    %518 = vrot.lane.b32.xlu0 %v405, 64
    %v519 = vpop.permute.xlu0 %518
    %520 = vrot.lane.b32.xlu0 %v299, 64
    %v521 = vpop.permute.xlu0 %520
    %522 = vrot.lane.b32.xlu0 %v301, 64
    %v523 = vpop.permute.xlu0 %522
    %524 = vrot.lane.b32.xlu0 %v410, 64
    %v525 = vpop.permute.xlu0 %524
    %526 = vrot.lane.b32.xlu0 %v305, 64
    %v527 = vpop.permute.xlu0 %526
    %528 = vrot.lane.b32.xlu0 %v307, 64
    %v529 = vpop.permute.xlu0 %528
    %530 = vrot.lane.b32.xlu0 %v415, 64
    %v531 = vpop.permute.xlu0 %530
    %532 = vrot.lane.b32.xlu0 %v311, 64
    %v533 = vpop.permute.xlu0 %532
    %534 = vrot.lane.b32.xlu0 %v313, 64
    %v535 = vpop.permute.xlu0 %534
    %536 = vrot.lane.b32.xlu0 %v420, 64
    %v537 = vpop.permute.xlu0 %536
    %538 = vrot.lane.b32.xlu0 %v317, 64
    %v539 = vpop.permute.xlu0 %538
    %540 = vrot.lane.b32.xlu0 %v319, 64
    %v541 = vpop.permute.xlu0 %540
    %542 = vrot.lane.b32.xlu0 %v425, 64
    %v543 = vpop.permute.xlu0 %542
    %544 = vrot.lane.b32.xlu0 %v323, 64
    %v545 = vpop.permute.xlu0 %544
    %546 = vrot.lane.b32.xlu0 %v325, 64
    %v547 = vpop.permute.xlu0 %546
    %548 = vrot.lane.b32.xlu0 %v430, 64
    %v549 = vpop.permute.xlu0 %548
    %vm550 = vcmask 523264
    %v551 = vsel %vm550, %v509, %v511
    %v552 = vsel %vm550, %v511, %v513
    %v553 = vsel %vm550, %v515, %v517
    %v554 = vsel %vm550, %v517, %v519
    %v555 = vsel %vm550, %v521, %v523
    %v556 = vsel %vm550, %v523, %v525
    %v557 = vsel %vm550, %v527, %v529
    %v558 = vsel %vm550, %v529, %v531
    %v559 = vsel %vm550, %v533, %v535
    %v560 = vsel %vm550, %v535, %v537
    %v561 = vsel %vm550, %v539, %v541
    %v562 = vsel %vm550, %v541, %v543
    %v563 = vsel %vm550, %v545, %v547
    %v564 = vsel %vm550, %v547, %v549
    %v579 = vadd.f32 %v450, %v485
    %v580 = vadd.f32 %v451, %v486
    %v581 = vadd.f32 %v452, %v551
    %v582 = vadd.f32 %v453, %v552
    %v583 = vadd.f32 %v454, %v553
    %v584 = vadd.f32 %v455, %v554
    %v585 = vadd.f32 %v456, %v555
    %v586 = vadd.f32 %v457, %v556
    %v587 = vadd.f32 %v458, %v557
    %v588 = vadd.f32 %v459, %v558
    %v589 = vadd.f32 %v460, %v559
    %v590 = vadd.f32 %v461, %v560
    %v591 = vadd.f32 %v462, %v561
    %v592 = vadd.f32 %v463, %v562
    %v593 = vadd.f32 %v464, %v563
    %v594 = vadd.f32 %v465, %v564
    %595 = vst [vmem:[#allocation4] sm:$0xff] %v579
    %596 = vst [vmem:[#allocation4 + $0x8] sm:$0xff] %v580
    %597 = vst [vmem:[#allocation4 + $0x18] sm:$0xff] %v581
    %598 = vst [vmem:[#allocation4 + $0x20] sm:$0xff] %v582
    %599 = vst [vmem:[#allocation4 + $0x30] sm:$0xff] %v583
    %600 = vst [vmem:[#allocation4 + $0x38] sm:$0xff] %v584
    %601 = vst [vmem:[#allocation4 + $0x48] sm:$0xff] %v585
    %602 = vst [vmem:[#allocation4 + $0x50] sm:$0xff] %v586
    %603 = vst [vmem:[#allocation4 + $0x60] sm:$0xff] %v587
    %604 = vst [vmem:[#allocation4 + $0x68] sm:$0xff] %v588
    %605 = vst [vmem:[#allocation4 + $0x78] sm:$0xff] %v589
    %606 = vst [vmem:[#allocation4 + $0x80] sm:$0xff] %v590
    %607 = vst [vmem:[#allocation4 + $0x90] sm:$0xff] %v591
    %608 = vst [vmem:[#allocation4 + $0x98] sm:$0xff] %v592
    %609 = vst [vmem:[#allocation4 + $0xa8] sm:$0xff] %v593
    %610 = vst [vmem:[#allocation4 + $0xb0] sm:$0xff] %v594
    %611 = vst.msk [vmem:[#allocation4 + $0x10] sm:$0xff] %vm550, %v287
    %612 = vst.msk [vmem:[#allocation4 + $0x28] sm:$0xff] %vm550, %v293
    %613 = vst.msk [vmem:[#allocation4 + $0x40] sm:$0xff] %vm550, %v299
    %614 = vst.msk [vmem:[#allocation4 + $0x58] sm:$0xff] %vm550, %v305
    %615 = vst.msk [vmem:[#allocation4 + $0x70] sm:$0xff] %vm550, %v311
    %616 = vst.msk [vmem:[#allocation4 + $0x88] sm:$0xff] %vm550, %v317
    %617 = vst.msk [vmem:[#allocation4 + $0xa0] sm:$0xff] %vm550, %v323
    %618 = vst.msk [vmem:[#allocation4 + $0xb8] sm:$0xff] %vm550, %v329
    %622 = vrot.lane.b32.xlu0 %v329, 64
    %v623 = vpop.permute.xlu0 %622
    %624 = vrot.lane.b32.xlu0 %v331, 64
    %v625 = vpop.permute.xlu0 %624
    %626 = vrot.lane.b32.xlu0 %v435, 64
    %v627 = vpop.permute.xlu0 %626
    %v628 = vsel %vm550, %v623, %v625
    %v629 = vsel %vm550, %v625, %v627
    %632 = vst [vmem:[#allocation3] sm:$0xff] %v628
    %633 = vst [vmem:[#allocation3 + $0x8] sm:$0xff] %v629
    // Predicated region
    $region30: #{tpu_custom_call.1} parent=1 // pred_check
      %p634 = pneg %p31
    $region31: #{tpu_custom_call.1} parent=1 // pred_check_branch
      %636 = sbr.rel (%p634) target = $region33
    $region32: #{tpu_custom_call.1} parent=1 // pred_region
      %s637 = scalar_lea.sflag [#allocation7], 1
      %s638 = smul.u32 8, 8
      %s639 = smul.u32 %s638, 3
      %s640 = sshll.u32 %s639, 4
      %641 = dma.done %s637, %s640
    $region33: #{tpu_custom_call.1} parent=1 // pred_fallthru
      _
    %v642 = vld [vmem:[#allocation2] sm:$0xff]
    %v643 = vld [vmem:[#allocation4] sm:$0xff]
    %v644 = vld [vmem:[#allocation4 + $0x8] sm:$0xff]
    %v645 = vld [vmem:[#allocation4 + $0x10] sm:$0xff]
    %v646 = vld [vmem:[#allocation6] sm:$0xff]
    %v647 = vld [vmem:[#allocation6 + $0x8] sm:$0xff]
    %v648 = vld [vmem:[#allocation6 + $0x10] sm:$0xff]
    %v649 = vld [vmem:[#allocation6 + $0x18] sm:$0xff]
    %v650 = vld [vmem:[#allocation6 + $0x20] sm:$0xff]
    %v651 = vld [vmem:[#allocation6 + $0x28] sm:$0xff]
    %v652 = vld [vmem:[#allocation6 + $0x30] sm:$0xff]
    %v653 = vld [vmem:[#allocation6 + $0x38] sm:$0xff]
    %v654 = vld [vmem:[#allocation6 + $0x40] sm:$0xff]
    %v655 = vld [vmem:[#allocation6 + $0x48] sm:$0xff]
    %v656 = vld [vmem:[#allocation6 + $0x50] sm:$0xff]
    %v657 = vld [vmem:[#allocation6 + $0x58] sm:$0xff]
    %v658 = vld [vmem:[#allocation6 + $0x60] sm:$0xff]
    %v659 = vld [vmem:[#allocation6 + $0x68] sm:$0xff]
    %v660 = vld [vmem:[#allocation6 + $0x70] sm:$0xff]
    %v661 = vld [vmem:[#allocation6 + $0x78] sm:$0xff]
    %v662 = vld [vmem:[#allocation6 + $0x80] sm:$0xff]
    %v663 = vld [vmem:[#allocation6 + $0x88] sm:$0xff]
    %v664 = vld [vmem:[#allocation6 + $0x90] sm:$0xff]
    %v665 = vld [vmem:[#allocation6 + $0x98] sm:$0xff]
    %v666 = vld [vmem:[#allocation6 + $0xa0] sm:$0xff]
    %v667 = vld [vmem:[#allocation6 + $0xa8] sm:$0xff]
    %v668 = vld [vmem:[#allocation6 + $0xb0] sm:$0xff]
    %v669 = vld [vmem:[#allocation6 + $0xb8] sm:$0xff]
    %v671 = vsel %vm550, %v642, 0
    %673 = vmatprep.subr.mxu0 %v647
    %674 = vmatpush1.msra.mxu0 %v646
    %675 = vmatprep.subr.mxu0 %v650
    %676 = vmatpush1.msra.mxu0 %v649
    %677 = vmatprep.subr.mxu0 %v653
    %678 = vmatpush1.msra.mxu0 %v652
    %679 = vmatprep.subr.mxu0 %v656
    %680 = vmatpush1.msra.mxu0 %v655
    %681 = vmatprep.subr.mxu0 %v659
    %682 = vmatpush1.msra.mxu0 %v658
    %683 = vmatprep.subr.mxu0 %v662
    %684 = vmatpush1.msra.mxu0 %v661
    %685 = vmatprep.subr.mxu0 %v665
    %686 = vmatpush1.msra.mxu0 %v664
    %687 = vmatprep.subr.mxu0 %v668
    %688 = vmatpush1.msra.mxu0 %v667
    %689 = vmatprep.subr.mxu0 0.0
    %690 = vmatpush1.msra.mxu0 0.0
    %691 = vmatprep.subr.mxu0 0.0
    %692 = vmatpush1.msra.mxu0 0.0
    %693 = vmatprep.subr.mxu0 0.0
    %694 = vmatpush1.msra.mxu0 0.0
    %695 = vmatprep.subr.mxu0 0.0
    %696 = vmatpush1.msra.mxu0 0.0
    %697 = vmatprep.subr.mxu0 0.0
    %698 = vmatpush1.msra.mxu0 0.0
    %699 = vmatprep.subr.mxu0 0.0
    %700 = vmatpush1.msra.mxu0 0.0
    %701 = vmatprep.subr.mxu0 0.0
    %702 = vmatpush1.msra.mxu0 0.0
    %703 = vmatprep.subr.mxu0 0.0
    %704 = vmatpush1.msra.mxu0 0.0
    %705 = vmatprep.subr.mxu0 0.0
    %706 = vmatpush1.msra.mxu0 0.0
    %707 = vmatprep.subr.mxu0 0.0
    %708 = vmatpush1.msra.mxu0 0.0
    %709 = vmatprep.subr.mxu0 0.0
    %710 = vmatpush1.msra.mxu0 0.0
    %711 = vmatprep.subr.mxu0 0.0
    %712 = vmatpush1.msra.mxu0 0.0
    %713 = vmatprep.subr.mxu0 0.0
    %714 = vmatpush1.msra.mxu0 0.0
    %715 = vmatprep.subr.mxu0 0.0
    %716 = vmatpush1.msra.mxu0 0.0
    %717 = vmatprep.subr.mxu0 0.0
    %718 = vmatpush1.msra.mxu0 0.0
    %719 = vmatprep.subr.mxu0 0.0
    %720 = vmatpush1.msra.mxu0 0.0
    %721 = vmatprep.subr.mxu0 0.0
    %722 = vmatpush1.msra.mxu0 0.0
    %723 = vmatprep.subr.mxu0 0.0
    %724 = vmatpush1.msra.mxu0 0.0
    %725 = vmatprep.subr.mxu0 0.0
    %726 = vmatpush1.msra.mxu0 0.0
    %727 = vmatprep.subr.mxu0 0.0
    %728 = vmatpush1.msra.mxu0 0.0
    %729 = vmatprep.subr.mxu0 0.0
    %730 = vmatpush1.msra.mxu0 0.0
    %731 = vmatprep.subr.mxu0 0.0
    %732 = vmatpush1.msra.mxu0 0.0
    %733 = vmatprep.subr.mxu0 0.0
    %734 = vmatpush1.msra.mxu0 0.0
    %735 = vmatprep.subr.mxu0 0.0
    %736 = vmatpush1.msra.mxu0 0.0
    %737 = vmatprep.mubr.f32.mxu0 0.0
    %738 = vmatmul.mubr.f32.gmra.mrb[0].mxu0 %v671
    %v739 = vpop.f32.mrb[0].mxu0
    %v740 = vadd.f32 0.0, %v739
    %v741 = vpop.f32.mrb[0].mxu0
    %v742 = vadd.f32 0.0, %v741
    %743 = vdwg.mxu0
    %744 = vmatprep.subr.mxu0 0.0
    %745 = vmatpush1.msra.mxu0 %v648
    %746 = vmatprep.subr.mxu0 0.0
    %747 = vmatpush1.msra.mxu0 %v651
    %748 = vmatprep.subr.mxu0 0.0
    %749 = vmatpush1.msra.mxu0 %v654
    %750 = vmatprep.subr.mxu0 0.0
    %751 = vmatpush1.msra.mxu0 %v657
    %752 = vmatprep.subr.mxu0 0.0
    %753 = vmatpush1.msra.mxu0 %v660
    %754 = vmatprep.subr.mxu0 0.0
    %755 = vmatpush1.msra.mxu0 %v663
    %756 = vmatprep.subr.mxu0 0.0
    %757 = vmatpush1.msra.mxu0 %v666
    %758 = vmatprep.subr.mxu0 0.0
    %759 = vmatpush1.msra.mxu0 %v669
    %760 = vmatprep.subr.mxu0 0.0
    %761 = vmatpush1.msra.mxu0 0.0
    %762 = vmatprep.subr.mxu0 0.0
    %763 = vmatpush1.msra.mxu0 0.0
    %764 = vmatprep.subr.mxu0 0.0
    %765 = vmatpush1.msra.mxu0 0.0
    %766 = vmatprep.subr.mxu0 0.0
    %767 = vmatpush1.msra.mxu0 0.0
    %768 = vmatprep.subr.mxu0 0.0
    %769 = vmatpush1.msra.mxu0 0.0
    %770 = vmatprep.subr.mxu0 0.0
    %771 = vmatpush1.msra.mxu0 0.0
    %772 = vmatprep.subr.mxu0 0.0
    %773 = vmatpush1.msra.mxu0 0.0
    %774 = vmatprep.subr.mxu0 0.0
    %775 = vmatpush1.msra.mxu0 0.0
    %776 = vmatprep.subr.mxu0 0.0
    %777 = vmatpush1.msra.mxu0 0.0
    %778 = vmatprep.subr.mxu0 0.0
    %779 = vmatpush1.msra.mxu0 0.0
    %780 = vmatprep.subr.mxu0 0.0
    %781 = vmatpush1.msra.mxu0 0.0
    %782 = vmatprep.subr.mxu0 0.0
    %783 = vmatpush1.msra.mxu0 0.0
    %784 = vmatprep.subr.mxu0 0.0
    %785 = vmatpush1.msra.mxu0 0.0
    %786 = vmatprep.subr.mxu0 0.0
    %787 = vmatpush1.msra.mxu0 0.0
    %788 = vmatprep.subr.mxu0 0.0
    %789 = vmatpush1.msra.mxu0 0.0
    %790 = vmatprep.subr.mxu0 0.0
    %791 = vmatpush1.msra.mxu0 0.0
    %792 = vmatprep.subr.mxu0 0.0
    %793 = vmatpush1.msra.mxu0 0.0
    %794 = vmatprep.subr.mxu0 0.0
    %795 = vmatpush1.msra.mxu0 0.0
    %796 = vmatprep.subr.mxu0 0.0
    %797 = vmatpush1.msra.mxu0 0.0
    %798 = vmatprep.subr.mxu0 0.0
    %799 = vmatpush1.msra.mxu0 0.0
    %800 = vmatprep.subr.mxu0 0.0
    %801 = vmatpush1.msra.mxu0 0.0
    %802 = vmatprep.subr.mxu0 0.0
    %803 = vmatpush1.msra.mxu0 0.0
    %804 = vmatprep.subr.mxu0 0.0
    %805 = vmatpush1.msra.mxu0 0.0
    %806 = vmatprep.subr.mxu0 0.0
    %807 = vmatpush1.msra.mxu0 0.0
    %808 = vmatprep.mubr.f32.mxu0 0.0
    %809 = vmatmul.mubr.f32.gmra.mrb[0].mxu0 %v671
    %v810 = vpop.f32.mrb[0].mxu0
    %v811 = vadd.f32 0.0, %v810
    %v812 = vpop.f32.mrb[0].mxu0
    %813 = vdwg.mxu0
    %v814 = vadd.f32 %v643, %v740
    %v815 = vadd.f32 %v644, %v742
    %v816 = vxor.u32 %v814, 2147483648
    %v817 = vmul.f32 %v816, 1.442695
    %v818 = vpow.pop %v817
    %v819 = vadd.f32 %v818, 1.0
    %v820 = vrcp.pop %v819
    %v821 = vmul.f32 1.0, %v820
    %v822 = vtanh.pop %v815
    %v823 = vxor.u32 %v815, 2147483648
    %v824 = vmul.f32 %v823, 1.442695
    %v825 = vpow.pop %v824
    %v826 = vadd.f32 %v825, 1.0
    %v827 = vrcp.pop %v826
    %v828 = vmul.f32 1.0, %v827
    %v829 = vadd.f32 %v645, %v811
    %830 = vrot.lane.b32.xlu0 %v642, 64
    %v831 = vpop.permute.xlu0 %830
    %v833 = vmul.f32 %v821, %v831
    %v834 = vadd.f32 %v822, %v829
    %v835 = vmul.f32 %v821, %v834
    %837 = vrot.lane.b32.xlu0 %v835, 64
    %v838 = vpop.permute.xlu0 %837
    %v840 = vadd.f32 %v833, %v838
    %v841 = vtanh.pop %v840
    %v842 = vmul.f32 %v828, %v841
    %844 = vrot.lane.b32.xlu0 %v842, 64
    %v845 = vpop.permute.xlu0 %844
    %vm847 = vcmask 261120
    %848 = vst.msk [vmem:[#allocation11] sm:$0xff] %vm847, %v845
    %s849 = scalar_lea.vmem [#allocation4], 24
    %v850 = vld [vmem:[%s849] sm:$0xff]
    %v851 = vld [vmem:[%s849 + $0x8] sm:$0xff]
    %v852 = vld [vmem:[%s849 + $0x10] sm:$0xff]
    %v853 = vld [vmem:[#allocation6] sm:$0xff]
    %v854 = vld [vmem:[#allocation6 + $0x8] sm:$0xff]
    %v855 = vld [vmem:[#allocation6 + $0x10] sm:$0xff]
    %v856 = vld [vmem:[#allocation6 + $0x18] sm:$0xff]
    %v857 = vld [vmem:[#allocation6 + $0x20] sm:$0xff]
    %v858 = vld [vmem:[#allocation6 + $0x28] sm:$0xff]
    %v859 = vld [vmem:[#allocation6 + $0x30] sm:$0xff]
    %v860 = vld [vmem:[#allocation6 + $0x38] sm:$0xff]
    %v861 = vld [vmem:[#allocation6 + $0x40] sm:$0xff]
    %v862 = vld [vmem:[#allocation6 + $0x48] sm:$0xff]
    %v863 = vld [vmem:[#allocation6 + $0x50] sm:$0xff]
    %v864 = vld [vmem:[#allocation6 + $0x58] sm:$0xff]
    %v865 = vld [vmem:[#allocation6 + $0x60] sm:$0xff]
    %v866 = vld [vmem:[#allocation6 + $0x68] sm:$0xff]
    %v867 = vld [vmem:[#allocation6 + $0x70] sm:$0xff]
    %v868 = vld [vmem:[#allocation6 + $0x78] sm:$0xff]
    %v869 = vld [vmem:[#allocation6 + $0x80] sm:$0xff]
    %v870 = vld [vmem:[#allocation6 + $0x88] sm:$0xff]
    %v871 = vld [vmem:[#allocation6 + $0x90] sm:$0xff]
    %v872 = vld [vmem:[#allocation6 + $0x98] sm:$0xff]
    %v873 = vld [vmem:[#allocation6 + $0xa0] sm:$0xff]
    %v874 = vld [vmem:[#allocation6 + $0xa8] sm:$0xff]
    %v875 = vld [vmem:[#allocation6 + $0xb0] sm:$0xff]
    %v876 = vld [vmem:[#allocation6 + $0xb8] sm:$0xff]
    %v877 = vsel %vm550, %v845, 0
    %879 = vmatprep.subr.mxu0 %v854
    %880 = vmatpush1.msra.mxu0 %v853
    %881 = vmatprep.subr.mxu0 %v857
    %882 = vmatpush1.msra.mxu0 %v856
    %883 = vmatprep.subr.mxu0 %v860
    %884 = vmatpush1.msra.mxu0 %v859
    %885 = vmatprep.subr.mxu0 %v863
    %886 = vmatpush1.msra.mxu0 %v862
    %887 = vmatprep.subr.mxu0 %v866
    %888 = vmatpush1.msra.mxu0 %v865
    %889 = vmatprep.subr.mxu0 %v869
    %890 = vmatpush1.msra.mxu0 %v868
    %891 = vmatprep.subr.mxu0 %v872
    %892 = vmatpush1.msra.mxu0 %v871
    %893 = vmatprep.subr.mxu0 %v875
    %894 = vmatpush1.msra.mxu0 %v874
    %895 = vmatprep.subr.mxu0 0.0
    %896 = vmatpush1.msra.mxu0 0.0
    %897 = vmatprep.subr.mxu0 0.0
    %898 = vmatpush1.msra.mxu0 0.0
    %899 = vmatprep.subr.mxu0 0.0
    %900 = vmatpush1.msra.mxu0 0.0
    %901 = vmatprep.subr.mxu0 0.0
    %902 = vmatpush1.msra.mxu0 0.0
    %903 = vmatprep.subr.mxu0 0.0
    %904 = vmatpush1.msra.mxu0 0.0
    %905 = vmatprep.subr.mxu0 0.0
    %906 = vmatpush1.msra.mxu0 0.0
    %907 = vmatprep.subr.mxu0 0.0
    %908 = vmatpush1.msra.mxu0 0.0
    %909 = vmatprep.subr.mxu0 0.0
    %910 = vmatpush1.msra.mxu0 0.0
    %911 = vmatprep.subr.mxu0 0.0
    %912 = vmatpush1.msra.mxu0 0.0
    %913 = vmatprep.subr.mxu0 0.0
    %914 = vmatpush1.msra.mxu0 0.0
    %915 = vmatprep.subr.mxu0 0.0
    %916 = vmatpush1.msra.mxu0 0.0
    %917 = vmatprep.subr.mxu0 0.0
    %918 = vmatpush1.msra.mxu0 0.0
    %919 = vmatprep.subr.mxu0 0.0
    %920 = vmatpush1.msra.mxu0 0.0
    %921 = vmatprep.subr.mxu0 0.0
    %922 = vmatpush1.msra.mxu0 0.0
    %923 = vmatprep.subr.mxu0 0.0
    %924 = vmatpush1.msra.mxu0 0.0
    %925 = vmatprep.subr.mxu0 0.0
    %926 = vmatpush1.msra.mxu0 0.0
    %927 = vmatprep.subr.mxu0 0.0
    %928 = vmatpush1.msra.mxu0 0.0
    %929 = vmatprep.subr.mxu0 0.0
    %930 = vmatpush1.msra.mxu0 0.0
    %931 = vmatprep.subr.mxu0 0.0
    %932 = vmatpush1.msra.mxu0 0.0
    %933 = vmatprep.subr.mxu0 0.0
    %934 = vmatpush1.msra.mxu0 0.0
    %935 = vmatprep.subr.mxu0 0.0
    %936 = vmatpush1.msra.mxu0 0.0
    %937 = vmatprep.subr.mxu0 0.0
    %938 = vmatpush1.msra.mxu0 0.0
    %939 = vmatprep.subr.mxu0 0.0
    %940 = vmatpush1.msra.mxu0 0.0
    %941 = vmatprep.subr.mxu0 0.0
    %942 = vmatpush1.msra.mxu0 0.0
    %943 = vmatprep.mubr.f32.mxu0 0.0
    %944 = vmatmul.mubr.f32.gmra.mrb[0].mxu0 %v877
    %v945 = vpop.f32.mrb[0].mxu0
    %v946 = vadd.f32 0.0, %v945
    %v947 = vpop.f32.mrb[0].mxu0
    %v948 = vadd.f32 0.0, %v947
    %949 = vdwg.mxu0
    %950 = vmatprep.subr.mxu0 0.0
    %951 = vmatpush1.msra.mxu0 %v855
    %952 = vmatprep.subr.mxu0 0.0
    %953 = vmatpush1.msra.mxu0 %v858
    %954 = vmatprep.subr.mxu0 0.0
    %955 = vmatpush1.msra.mxu0 %v861
    %956 = vmatprep.subr.mxu0 0.0
    %957 = vmatpush1.msra.mxu0 %v864
    %958 = vmatprep.subr.mxu0 0.0
    %959 = vmatpush1.msra.mxu0 %v867
    %960 = vmatprep.subr.mxu0 0.0
    %961 = vmatpush1.msra.mxu0 %v870
    %962 = vmatprep.subr.mxu0 0.0
    %963 = vmatpush1.msra.mxu0 %v873
    %964 = vmatprep.subr.mxu0 0.0
    %965 = vmatpush1.msra.mxu0 %v876
    %966 = vmatprep.subr.mxu0 0.0
    %967 = vmatpush1.msra.mxu0 0.0
    %968 = vmatprep.subr.mxu0 0.0
    %969 = vmatpush1.msra.mxu0 0.0
    %970 = vmatprep.subr.mxu0 0.0
    %971 = vmatpush1.msra.mxu0 0.0
    %972 = vmatprep.subr.mxu0 0.0
    %973 = vmatpush1.msra.mxu0 0.0
    %974 = vmatprep.subr.mxu0 0.0
    %975 = vmatpush1.msra.mxu0 0.0
    %976 = vmatprep.subr.mxu0 0.0
    %977 = vmatpush1.msra.mxu0 0.0
    %978 = vmatprep.subr.mxu0 0.0
    %979 = vmatpush1.msra.mxu0 0.0
    %980 = vmatprep.subr.mxu0 0.0
    %981 = vmatpush1.msra.mxu0 0.0
    %982 = vmatprep.subr.mxu0 0.0
    %983 = vmatpush1.msra.mxu0 0.0
    %984 = vmatprep.subr.mxu0 0.0
    %985 = vmatpush1.msra.mxu0 0.0
    %986 = vmatprep.subr.mxu0 0.0
    %987 = vmatpush1.msra.mxu0 0.0
    %988 = vmatprep.subr.mxu0 0.0
    %989 = vmatpush1.msra.mxu0 0.0
    %990 = vmatprep.subr.mxu0 0.0
    %991 = vmatpush1.msra.mxu0 0.0
    %992 = vmatprep.subr.mxu0 0.0
    %993 = vmatpush1.msra.mxu0 0.0
    %994 = vmatprep.subr.mxu0 0.0
    %995 = vmatpush1.msra.mxu0 0.0
    %996 = vmatprep.subr.mxu0 0.0
    %997 = vmatpush1.msra.mxu0 0.0
    %998 = vmatprep.subr.mxu0 0.0
    %999 = vmatpush1.msra.mxu0 0.0
    %1000 = vmatprep.subr.mxu0 0.0
    %1001 = vmatpush1.msra.mxu0 0.0
    %1002 = vmatprep.subr.mxu0 0.0
    %1003 = vmatpush1.msra.mxu0 0.0
    %1004 = vmatprep.subr.mxu0 0.0
    %1005 = vmatpush1.msra.mxu0 0.0
    %1006 = vmatprep.subr.mxu0 0.0
    %1007 = vmatpush1.msra.mxu0 0.0
    %1008 = vmatprep.subr.mxu0 0.0
    %1009 = vmatpush1.msra.mxu0 0.0
    %1010 = vmatprep.subr.mxu0 0.0
    %1011 = vmatpush1.msra.mxu0 0.0
    %1012 = vmatprep.subr.mxu0 0.0
    %1013 = vmatpush1.msra.mxu0 0.0
    %1014 = vmatprep.mubr.f32.mxu0 0.0
    %1015 = vmatmul.mubr.f32.gmra.mrb[0].mxu0 %v877
    %v1016 = vpop.f32.mrb[0].mxu0
    %v1017 = vadd.f32 0.0, %v1016
    %v1018 = vpop.f32.mrb[0].mxu0
    %1019 = vdwg.mxu0
    %v1020 = vadd.f32 %v850, %v946
    %v1021 = vadd.f32 %v851, %v948
    %v1022 = vxor.u32 %v1020, 2147483648
    %v1023 = vmul.f32 %v1022, 1.442695
    %v1024 = vpow.pop %v1023
    %v1025 = vadd.f32 %v1024, 1.0
    %v1026 = vrcp.pop %v1025
    %v1027 = vmul.f32 1.0, %v1026
    %v1028 = vtanh.pop %v1021
    %v1029 = vxor.u32 %v1021, 2147483648
    %v1030 = vmul.f32 %v1029, 1.442695
    %v1031 = vpow.pop %v1030
    %v1032 = vadd.f32 %v1031, 1.0
    %v1033 = vrcp.pop %v1032
    %v1034 = vmul.f32 1.0, %v1033
    %v1035 = vadd.f32 %v852, %v1017
    %v1036 = vmul.f32 %v1027, %v842
    %v1037 = vadd.f32 %v1028, %v1035
    %v1038 = vmul.f32 %v1027, %v1037
    %1040 = vrot.lane.b32.xlu0 %v1038, 64
    %v1041 = vpop.permute.xlu0 %1040
    %v1043 = vadd.f32 %v1036, %v1041
    %v1044 = vtanh.pop %v1043
    %v1045 = vmul.f32 %v1034, %v1044
    %1047 = vrot.lane.b32.xlu0 %v1045, 64
    %v1048 = vpop.permute.xlu0 %1047
    %s1050 = scalar_lea.vmem [#allocation11], 8
    %1051 = vst.msk [vmem:[%s1050] sm:$0xff] %vm847, %v1048
    %s1052 = scalar_lea.vmem [#allocation4], 48
    %v1053 = vld [vmem:[%s1052] sm:$0xff]
    %v1054 = vld [vmem:[%s1052 + $0x8] sm:$0xff]
    %v1055 = vld [vmem:[%s1052 + $0x10] sm:$0xff]
    %v1056 = vld [vmem:[#allocation6] sm:$0xff]
    %v1057 = vld [vmem:[#allocation6 + $0x8] sm:$0xff]
    %v1058 = vld [vmem:[#allocation6 + $0x10] sm:$0xff]
    %v1059 = vld [vmem:[#allocation6 + $0x18] sm:$0xff]
    %v1060 = vld [vmem:[#allocation6 + $0x20] sm:$0xff]
    %v1061 = vld [vmem:[#allocation6 + $0x28] sm:$0xff]
    %v1062 = vld [vmem:[#allocation6 + $0x30] sm:$0xff]
    %v1063 = vld [vmem:[#allocation6 + $0x38] sm:$0xff]
    %v1064 = vld [vmem:[#allocation6 + $0x40] sm:$0xff]
    %v1065 = vld [vmem:[#allocation6 + $0x48] sm:$0xff]
    %v1066 = vld [vmem:[#allocation6 + $0x50] sm:$0xff]
    %v1067 = vld [vmem:[#allocation6 + $0x58] sm:$0xff]
    %v1068 = vld [vmem:[#allocation6 + $0x60] sm:$0xff]
    %v1069 = vld [vmem:[#allocation6 + $0x68] sm:$0xff]
    %v1070 = vld [vmem:[#allocation6 + $0x70] sm:$0xff]
    %v1071 = vld [vmem:[#allocation6 + $0x78] sm:$0xff]
    %v1072 = vld [vmem:[#allocation6 + $0x80] sm:$0xff]
    %v1073 = vld [vmem:[#allocation6 + $0x88] sm:$0xff]
    %v1074 = vld [vmem:[#allocation6 + $0x90] sm:$0xff]
    %v1075 = vld [vmem:[#allocation6 + $0x98] sm:$0xff]
    %v1076 = vld [vmem:[#allocation6 + $0xa0] sm:$0xff]
    %v1077 = vld [vmem:[#allocation6 + $0xa8] sm:$0xff]
    %v1078 = vld [vmem:[#allocation6 + $0xb0] sm:$0xff]
    %v1079 = vld [vmem:[#allocation6 + $0xb8] sm:$0xff]
    %v1080 = vsel %vm550, %v1048, 0
    %1082 = vmatprep.subr.mxu0 %v1057
    %1083 = vmatpush1.msra.mxu0 %v1056
    %1084 = vmatprep.subr.mxu0 %v1060
    %1085 = vmatpush1.msra.mxu0 %v1059
    %1086 = vmatprep.subr.mxu0 %v1063
    %1087 = vmatpush1.msra.mxu0 %v1062
    %1088 = vmatprep.subr.mxu0 %v1066
    %1089 = vmatpush1.msra.mxu0 %v1065
    %1090 = vmatprep.subr.mxu0 %v1069
    %1091 = vmatpush1.msra.mxu0 %v1068
    %1092 = vmatprep.subr.mxu0 %v1072
    %1093 = vmatpush1.msra.mxu0 %v1071
    %1094 = vmatprep.subr.mxu0 %v1075
    %1095 = vmatpush1.msra.mxu0 %v1074
    %1096 = vmatprep.subr.mxu0 %v1078
    %1097 = vmatpush1.msra.mxu0 %v1077
    %1098 = vmatprep.subr.mxu0 0.0
    %1099 = vmatpush1.msra.mxu0 0.0
    %1100 = vmatprep.subr.mxu0 0.0
    %1101 = vmatpush1.msra.mxu0 0.0
    %1102 = vmatprep.subr.mxu0 0.0
    %1103 = vmatpush1.msra.mxu0 0.0
    %1104 = vmatprep.subr.mxu0 0.0
    %1105 = vmatpush1.msra.mxu0 0.0
    %1106 = vmatprep.subr.mxu0 0.0
    %1107 = vmatpush1.msra.mxu0 0.0
    %1108 = vmatprep.subr.mxu0 0.0
    %1109 = vmatpush1.msra.mxu0 0.0
    %1110 = vmatprep.subr.mxu0 0.0
    %1111 = vmatpush1.msra.mxu0 0.0
    %1112 = vmatprep.subr.mxu0 0.0
    %1113 = vmatpush1.msra.mxu0 0.0
    %1114 = vmatprep.subr.mxu0 0.0
    %1115 = vmatpush1.msra.mxu0 0.0
    %1116 = vmatprep.subr.mxu0 0.0
    %1117 = vmatpush1.msra.mxu0 0.0
    %1118 = vmatprep.subr.mxu0 0.0
    %1119 = vmatpush1.msra.mxu0 0.0
    %1120 = vmatprep.subr.mxu0 0.0
    %1121 = vmatpush1.msra.mxu0 0.0
    %1122 = vmatprep.subr.mxu0 0.0
    %1123 = vmatpush1.msra.mxu0 0.0
    %1124 = vmatprep.subr.mxu0 0.0
    %1125 = vmatpush1.msra.mxu0 0.0
    %1126 = vmatprep.subr.mxu0 0.0
    %1127 = vmatpush1.msra.mxu0 0.0
    %1128 = vmatprep.subr.mxu0 0.0
    %1129 = vmatpush1.msra.mxu0 0.0
    %1130 = vmatprep.subr.mxu0 0.0
    %1131 = vmatpush1.msra.mxu0 0.0
    %1132 = vmatprep.subr.mxu0 0.0
    %1133 = vmatpush1.msra.mxu0 0.0
    %1134 = vmatprep.subr.mxu0 0.0
    %1135 = vmatpush1.msra.mxu0 0.0
    %1136 = vmatprep.subr.mxu0 0.0
    %1137 = vmatpush1.msra.mxu0 0.0
    %1138 = vmatprep.subr.mxu0 0.0
    %1139 = vmatpush1.msra.mxu0 0.0
    %1140 = vmatprep.subr.mxu0 0.0
    %1141 = vmatpush1.msra.mxu0 0.0
    %1142 = vmatprep.subr.mxu0 0.0
    %1143 = vmatpush1.msra.mxu0 0.0
    %1144 = vmatprep.subr.mxu0 0.0
    %1145 = vmatpush1.msra.mxu0 0.0
    %1146 = vmatprep.mubr.f32.mxu0 0.0
    %1147 = vmatmul.mubr.f32.gmra.mrb[0].mxu0 %v1080
    %v1148 = vpop.f32.mrb[0].mxu0
    %v1149 = vadd.f32 0.0, %v1148
    %v1150 = vpop.f32.mrb[0].mxu0
    %v1151 = vadd.f32 0.0, %v1150
    %1152 = vdwg.mxu0
    %1153 = vmatprep.subr.mxu0 0.0
    %1154 = vmatpush1.msra.mxu0 %v1058
    %1155 = vmatprep.subr.mxu0 0.0
    %1156 = vmatpush1.msra.mxu0 %v1061
    %1157 = vmatprep.subr.mxu0 0.0
    %1158 = vmatpush1.msra.mxu0 %v1064
    %1159 = vmatprep.subr.mxu0 0.0
    %1160 = vmatpush1.msra.mxu0 %v1067
    %1161 = vmatprep.subr.mxu0 0.0
    %1162 = vmatpush1.msra.mxu0 %v1070
    %1163 = vmatprep.subr.mxu0 0.0
    %1164 = vmatpush1.msra.mxu0 %v1073
    %1165 = vmatprep.subr.mxu0 0.0
    %1166 = vmatpush1.msra.mxu0 %v1076
    %1167 = vmatprep.subr.mxu0 0.0
    %1168 = vmatpush1.msra.mxu0 %v1079
    %1169 = vmatprep.subr.mxu0 0.0
    %1170 = vmatpush1.msra.mxu0 0.0
    %1171 = vmatprep.subr.mxu0 0.0
    %1172 = vmatpush1.msra.mxu0 0.0
    %1173 = vmatprep.subr.mxu0 0.0
    %1174 = vmatpush1.msra.mxu0 0.0
    %1175 = vmatprep.subr.mxu0 0.0
    %1176 = vmatpush1.msra.mxu0 0.0
    %1177 = vmatprep.subr.mxu0 0.0
    %1178 = vmatpush1.msra.mxu0 0.0
    %1179 = vmatprep.subr.mxu0 0.0
    %1180 = vmatpush1.msra.mxu0 0.0
    %1181 = vmatprep.subr.mxu0 0.0
    %1182 = vmatpush1.msra.mxu0 0.0
    %1183 = vmatprep.subr.mxu0 0.0
    %1184 = vmatpush1.msra.mxu0 0.0
    %1185 = vmatprep.subr.mxu0 0.0
    %1186 = vmatpush1.msra.mxu0 0.0
    %1187 = vmatprep.subr.mxu0 0.0
    %1188 = vmatpush1.msra.mxu0 0.0
    %1189 = vmatprep.subr.mxu0 0.0
    %1190 = vmatpush1.msra.mxu0 0.0
    %1191 = vmatprep.subr.mxu0 0.0
    %1192 = vmatpush1.msra.mxu0 0.0
    %1193 = vmatprep.subr.mxu0 0.0
    %1194 = vmatpush1.msra.mxu0 0.0
    %1195 = vmatprep.subr.mxu0 0.0
    %1196 = vmatpush1.msra.mxu0 0.0
    %1197 = vmatprep.subr.mxu0 0.0
    %1198 = vmatpush1.msra.mxu0 0.0
    %1199 = vmatprep.subr.mxu0 0.0
    %1200 = vmatpush1.msra.mxu0 0.0
    %1201 = vmatprep.subr.mxu0 0.0
    %1202 = vmatpush1.msra.mxu0 0.0
    %1203 = vmatprep.subr.mxu0 0.0
    %1204 = vmatpush1.msra.mxu0 0.0
    %1205 = vmatprep.subr.mxu0 0.0
    %1206 = vmatpush1.msra.mxu0 0.0
    %1207 = vmatprep.subr.mxu0 0.0
    %1208 = vmatpush1.msra.mxu0 0.0
    %1209 = vmatprep.subr.mxu0 0.0
    %1210 = vmatpush1.msra.mxu0 0.0
    %1211 = vmatprep.subr.mxu0 0.0
    %1212 = vmatpush1.msra.mxu0 0.0
    %1213 = vmatprep.subr.mxu0 0.0
    %1214 = vmatpush1.msra.mxu0 0.0
    %1215 = vmatprep.subr.mxu0 0.0
    %1216 = vmatpush1.msra.mxu0 0.0
    %1217 = vmatprep.mubr.f32.mxu0 0.0
    %1218 = vmatmul.mubr.f32.gmra.mrb[0].mxu0 %v1080
    %v1219 = vpop.f32.mrb[0].mxu0
    %v1220 = vadd.f32 0.0, %v1219
    %v1221 = vpop.f32.mrb[0].mxu0
    %1222 = vdwg.mxu0
    %v1223 = vadd.f32 %v1053, %v1149
    %v1224 = vadd.f32 %v1054, %v1151
    %v1225 = vxor.u32 %v1223, 2147483648
    %v1226 = vmul.f32 %v1225, 1.442695
    %v1227 = vpow.pop %v1226
    %v1228 = vadd.f32 %v1227, 1.0
    %v1229 = vrcp.pop %v1228
    %v1230 = vmul.f32 1.0, %v1229
    %v1231 = vtanh.pop %v1224
    %v1232 = vxor.u32 %v1224, 2147483648
    %v1233 = vmul.f32 %v1232, 1.442695
    %v1234 = vpow.pop %v1233
    %v1235 = vadd.f32 %v1234, 1.0
    %v1236 = vrcp.pop %v1235
    %v1237 = vmul.f32 1.0, %v1236
    %v1238 = vadd.f32 %v1055, %v1220
    %v1239 = vmul.f32 %v1230, %v1045
    %v1240 = vadd.f32 %v1231, %v1238
    %v1241 = vmul.f32 %v1230, %v1240
    %1243 = vrot.lane.b32.xlu0 %v1241, 64
    %v1244 = vpop.permute.xlu0 %1243
    %v1246 = vadd.f32 %v1239, %v1244
    %v1247 = vtanh.pop %v1246
    %v1248 = vmul.f32 %v1237, %v1247
    %1250 = vrot.lane.b32.xlu0 %v1248, 64
    %v1251 = vpop.permute.xlu0 %1250
    %s1253 = scalar_lea.vmem [#allocation11], 16
    %1254 = vst.msk [vmem:[%s1253] sm:$0xff] %vm847, %v1251
    %s1255 = scalar_lea.vmem [#allocation4], 72
    %v1256 = vld [vmem:[%s1255] sm:$0xff]
    %v1257 = vld [vmem:[%s1255 + $0x8] sm:$0xff]
    %v1258 = vld [vmem:[%s1255 + $0x10] sm:$0xff]
    %v1259 = vld [vmem:[#allocation6] sm:$0xff]
    %v1260 = vld [vmem:[#allocation6 + $0x8] sm:$0xff]
    %v1261 = vld [vmem:[#allocation6 + $0x10] sm:$0xff]
    %v1262 = vld [vmem:[#allocation6 + $0x18] sm:$0xff]
    %v1263 = vld [vmem:[#allocation6 + $0x20] sm:$0xff]
    %v1264 = vld [vmem:[#allocation6 + $0x28] sm:$0xff]
    %v1265 = vld [vmem:[#allocation6 + $0x30] sm:$0xff]
    %v1266 = vld [vmem:[#allocation6 + $0x38] sm:$0xff]
    %v1267 = vld [vmem:[#allocation6 + $0x40] sm:$0xff]
    %v1268 = vld [vmem:[#allocation6 + $0x48] sm:$0xff]
    %v1269 = vld [vmem:[#allocation6 + $0x50] sm:$0xff]
    %v1270 = vld [vmem:[#allocation6 + $0x58] sm:$0xff]
    %v1271 = vld [vmem:[#allocation6 + $0x60] sm:$0xff]
    %v1272 = vld [vmem:[#allocation6 + $0x68] sm:$0xff]
    %v1273 = vld [vmem:[#allocation6 + $0x70] sm:$0xff]
    %v1274 = vld [vmem:[#allocation6 + $0x78] sm:$0xff]
    %v1275 = vld [vmem:[#allocation6 + $0x80] sm:$0xff]
    %v1276 = vld [vmem:[#allocation6 + $0x88] sm:$0xff]
    %v1277 = vld [vmem:[#allocation6 + $0x90] sm:$0xff]
    %v1278 = vld [vmem:[#allocation6 + $0x98] sm:$0xff]
    %v1279 = vld [vmem:[#allocation6 + $0xa0] sm:$0xff]
    %v1280 = vld [vmem:[#allocation6 + $0xa8] sm:$0xff]
    %v1281 = vld [vmem:[#allocation6 + $0xb0] sm:$0xff]
    %v1282 = vld [vmem:[#allocation6 + $0xb8] sm:$0xff]
    %v1283 = vsel %vm550, %v1251, 0
    %1285 = vmatprep.subr.mxu0 %v1260
    %1286 = vmatpush1.msra.mxu0 %v1259
    %1287 = vmatprep.subr.mxu0 %v1263
    %1288 = vmatpush1.msra.mxu0 %v1262
    %1289 = vmatprep.subr.mxu0 %v1266
    %1290 = vmatpush1.msra.mxu0 %v1265
    %1291 = vmatprep.subr.mxu0 %v1269
    %1292 = vmatpush1.msra.mxu0 %v1268
    %1293 = vmatprep.subr.mxu0 %v1272
    %1294 = vmatpush1.msra.mxu0 %v1271
    %1295 = vmatprep.subr.mxu0 %v1275
    %1296 = vmatpush1.msra.mxu0 %v1274
    %1297 = vmatprep.subr.mxu0 %v1278
    %1298 = vmatpush1.msra.mxu0 %v1277
    %1299 = vmatprep.subr.mxu0 %v1281
    %1300 = vmatpush1.msra.mxu0 %v1280
    %1301 = vmatprep.subr.mxu0 0.0
    %1302 = vmatpush1.msra.mxu0 0.0
    %1303 = vmatprep.subr.mxu0 0.0
    %1304 = vmatpush1.msra.mxu0 0.0
    %1305 = vmatprep.subr.mxu0 0.0
    %1306 = vmatpush1.msra.mxu0 0.0
    %1307 = vmatprep.subr.mxu0 0.0
    %1308 = vmatpush1.msra.mxu0 0.0
    %1309 = vmatprep.subr.mxu0 0.0
    %1310 = vmatpush1.msra.mxu0 0.0
    %1311 = vmatprep.subr.mxu0 0.0
    %1312 = vmatpush1.msra.mxu0 0.0
    %1313 = vmatprep.subr.mxu0 0.0
    %1314 = vmatpush1.msra.mxu0 0.0
    %1315 = vmatprep.subr.mxu0 0.0
    %1316 = vmatpush1.msra.mxu0 0.0
    %1317 = vmatprep.subr.mxu0 0.0
    %1318 = vmatpush1.msra.mxu0 0.0
    %1319 = vmatprep.subr.mxu0 0.0
    %1320 = vmatpush1.msra.mxu0 0.0
    %1321 = vmatprep.subr.mxu0 0.0
    %1322 = vmatpush1.msra.mxu0 0.0
    %1323 = vmatprep.subr.mxu0 0.0
    %1324 = vmatpush1.msra.mxu0 0.0
    %1325 = vmatprep.subr.mxu0 0.0
    %1326 = vmatpush1.msra.mxu0 0.0
    %1327 = vmatprep.subr.mxu0 0.0
    %1328 = vmatpush1.msra.mxu0 0.0
    %1329 = vmatprep.subr.mxu0 0.0
    %1330 = vmatpush1.msra.mxu0 0.0
    %1331 = vmatprep.subr.mxu0 0.0
    %1332 = vmatpush1.msra.mxu0 0.0
    %1333 = vmatprep.subr.mxu0 0.0
    %1334 = vmatpush1.msra.mxu0 0.0
    %1335 = vmatprep.subr.mxu0 0.0
    %1336 = vmatpush1.msra.mxu0 0.0
    %1337 = vmatprep.subr.mxu0 0.0
    %1338 = vmatpush1.msra.mxu0 0.0
    %1339 = vmatprep.subr.mxu0 0.0
    %1340 = vmatpush1.msra.mxu0 0.0
    %1341 = vmatprep.subr.mxu0 0.0
    %1342 = vmatpush1.msra.mxu0 0.0
    %1343 = vmatprep.subr.mxu0 0.0
    %1344 = vmatpush1.msra.mxu0 0.0
    %1345 = vmatprep.subr.mxu0 0.0
    %1346 = vmatpush1.msra.mxu0 0.0
    %1347 = vmatprep.subr.mxu0 0.0
    %1348 = vmatpush1.msra.mxu0 0.0
    %1349 = vmatprep.mubr.f32.mxu0 0.0
    %1350 = vmatmul.mubr.f32.gmra.mrb[0].mxu0 %v1283
    %v1351 = vpop.f32.mrb[0].mxu0
    %v1352 = vadd.f32 0.0, %v1351
    %v1353 = vpop.f32.mrb[0].mxu0
    %v1354 = vadd.f32 0.0, %v1353
    %1355 = vdwg.mxu0
    %1356 = vmatprep.subr.mxu0 0.0
    %1357 = vmatpush1.msra.mxu0 %v1261
    %1358 = vmatprep.subr.mxu0 0.0
    %1359 = vmatpush1.msra.mxu0 %v1264
    %1360 = vmatprep.subr.mxu0 0.0
    %1361 = vmatpush1.msra.mxu0 %v1267
    %1362 = vmatprep.subr.mxu0 0.0
    %1363 = vmatpush1.msra.mxu0 %v1270
    %1364 = vmatprep.subr.mxu0 0.0
    %1365 = vmatpush1.msra.mxu0 %v1273
    %1366 = vmatprep.subr.mxu0 0.0
    %1367 = vmatpush1.msra.mxu0 %v1276
    %1368 = vmatprep.subr.mxu0 0.0
    %1369 = vmatpush1.msra.mxu0 %v1279
    %1370 = vmatprep.subr.mxu0 0.0
    %1371 = vmatpush1.msra.mxu0 %v1282
    %1372 = vmatprep.subr.mxu0 0.0
    %1373 = vmatpush1.msra.mxu0 0.0
    %1374 = vmatprep.subr.mxu0 0.0
    %1375 = vmatpush1.msra.mxu0 0.0
    %1376 = vmatprep.subr.mxu0 0.0
    %1377 = vmatpush1.msra.mxu0 0.0
    %1378 = vmatprep.subr.mxu0 0.0
    %1379 = vmatpush1.msra.mxu0 0.0
    %1380 = vmatprep.subr.mxu0 0.0
    %1381 = vmatpush1.msra.mxu0 0.0
    %1382 = vmatprep.subr.mxu0 0.0
    %1383 = vmatpush1.msra.mxu0 0.0
    %1384 = vmatprep.subr.mxu0 0.0
    %1385 = vmatpush1.msra.mxu0 0.0
    %1386 = vmatprep.subr.mxu0 0.0
    %1387 = vmatpush1.msra.mxu0 0.0
    %1388 = vmatprep.subr.mxu0 0.0
    %1389 = vmatpush1.msra.mxu0 0.0
    %1390 = vmatprep.subr.mxu0 0.0
    %1391 = vmatpush1.msra.mxu0 0.0
    %1392 = vmatprep.subr.mxu0 0.0
    %1393 = vmatpush1.msra.mxu0 0.0
    %1394 = vmatprep.subr.mxu0 0.0
    %1395 = vmatpush1.msra.mxu0 0.0
    %1396 = vmatprep.subr.mxu0 0.0
    %1397 = vmatpush1.msra.mxu0 0.0
    %1398 = vmatprep.subr.mxu0 0.0
    %1399 = vmatpush1.msra.mxu0 0.0
    %1400 = vmatprep.subr.mxu0 0.0
    %1401 = vmatpush1.msra.mxu0 0.0
    %1402 = vmatprep.subr.mxu0 0.0
    %1403 = vmatpush1.msra.mxu0 0.0
    %1404 = vmatprep.subr.mxu0 0.0
    %1405 = vmatpush1.msra.mxu0 0.0
    %1406 = vmatprep.subr.mxu0 0.0
    %1407 = vmatpush1.msra.mxu0 0.0
    %1408 = vmatprep.subr.mxu0 0.0
    %1409 = vmatpush1.msra.mxu0 0.0
    %1410 = vmatprep.subr.mxu0 0.0
    %1411 = vmatpush1.msra.mxu0 0.0
    %1412 = vmatprep.subr.mxu0 0.0
    %1413 = vmatpush1.msra.mxu0 0.0
    %1414 = vmatprep.subr.mxu0 0.0
    %1415 = vmatpush1.msra.mxu0 0.0
    %1416 = vmatprep.subr.mxu0 0.0
    %1417 = vmatpush1.msra.mxu0 0.0
    %1418 = vmatprep.subr.mxu0 0.0
    %1419 = vmatpush1.msra.mxu0 0.0
    %1420 = vmatprep.mubr.f32.mxu0 0.0
    %1421 = vmatmul.mubr.f32.gmra.mrb[0].mxu0 %v1283
    %v1422 = vpop.f32.mrb[0].mxu0
    %v1423 = vadd.f32 0.0, %v1422
    %v1424 = vpop.f32.mrb[0].mxu0
    %1425 = vdwg.mxu0
    %v1426 = vadd.f32 %v1256, %v1352
    %v1427 = vadd.f32 %v1257, %v1354
    %v1428 = vxor.u32 %v1426, 2147483648
    %v1429 = vmul.f32 %v1428, 1.442695
    %v1430 = vpow.pop %v1429
    %v1431 = vadd.f32 %v1430, 1.0
    %v1432 = vrcp.pop %v1431
    %v1433 = vmul.f32 1.0, %v1432
    %v1434 = vtanh.pop %v1427
    %v1435 = vxor.u32 %v1427, 2147483648
    %v1436 = vmul.f32 %v1435, 1.442695
    %v1437 = vpow.pop %v1436
    %v1438 = vadd.f32 %v1437, 1.0
    %v1439 = vrcp.pop %v1438
    %v1440 = vmul.f32 1.0, %v1439
    %v1441 = vadd.f32 %v1258, %v1423
    %v1442 = vmul.f32 %v1433, %v1248
    %v1443 = vadd.f32 %v1434, %v1441
    %v1444 = vmul.f32 %v1433, %v1443
    %1446 = vrot.lane.b32.xlu0 %v1444, 64
    %v1447 = vpop.permute.xlu0 %1446
    %v1449 = vadd.f32 %v1442, %v1447
    %v1450 = vtanh.pop %v1449
    %v1451 = vmul.f32 %v1440, %v1450
    %1453 = vrot.lane.b32.xlu0 %v1451, 64
    %v1454 = vpop.permute.xlu0 %1453
    %s1456 = scalar_lea.vmem [#allocation11], 24
    %1457 = vst.msk [vmem:[%s1456] sm:$0xff] %vm847, %v1454
    %s1458 = scalar_lea.vmem [#allocation4], 96
    %v1459 = vld [vmem:[%s1458] sm:$0xff]
    %v1460 = vld [vmem:[%s1458 + $0x8] sm:$0xff]
    %v1461 = vld [vmem:[%s1458 + $0x10] sm:$0xff]
    %v1462 = vld [vmem:[#allocation6] sm:$0xff]
    %v1463 = vld [vmem:[#allocation6 + $0x8] sm:$0xff]
    %v1464 = vld [vmem:[#allocation6 + $0x10] sm:$0xff]
    %v1465 = vld [vmem:[#allocation6 + $0x18] sm:$0xff]
    %v1466 = vld [vmem:[#allocation6 + $0x20] sm:$0xff]
    %v1467 = vld [vmem:[#allocation6 + $0x28] sm:$0xff]
    %v1468 = vld [vmem:[#allocation6 + $0x30] sm:$0xff]
    %v1469 = vld [vmem:[#allocation6 + $0x38] sm:$0xff]
    %v1470 = vld [vmem:[#allocation6 + $0x40] sm:$0xff]
    %v1471 = vld [vmem:[#allocation6 + $0x48] sm:$0xff]
    %v1472 = vld [vmem:[#allocation6 + $0x50] sm:$0xff]
    %v1473 = vld [vmem:[#allocation6 + $0x58] sm:$0xff]
    %v1474 = vld [vmem:[#allocation6 + $0x60] sm:$0xff]
    %v1475 = vld [vmem:[#allocation6 + $0x68] sm:$0xff]
    %v1476 = vld [vmem:[#allocation6 + $0x70] sm:$0xff]
    %v1477 = vld [vmem:[#allocation6 + $0x78] sm:$0xff]
    %v1478 = vld [vmem:[#allocation6 + $0x80] sm:$0xff]
    %v1479 = vld [vmem:[#allocation6 + $0x88] sm:$0xff]
    %v1480 = vld [vmem:[#allocation6 + $0x90] sm:$0xff]
    %v1481 = vld [vmem:[#allocation6 + $0x98] sm:$0xff]
    %v1482 = vld [vmem:[#allocation6 + $0xa0] sm:$0xff]
    %v1483 = vld [vmem:[#allocation6 + $0xa8] sm:$0xff]
    %v1484 = vld [vmem:[#allocation6 + $0xb0] sm:$0xff]
    %v1485 = vld [vmem:[#allocation6 + $0xb8] sm:$0xff]
    %v1486 = vsel %vm550, %v1454, 0
    %1488 = vmatprep.subr.mxu0 %v1463
    %1489 = vmatpush1.msra.mxu0 %v1462
    %1490 = vmatprep.subr.mxu0 %v1466
    %1491 = vmatpush1.msra.mxu0 %v1465
    %1492 = vmatprep.subr.mxu0 %v1469
    %1493 = vmatpush1.msra.mxu0 %v1468
    %1494 = vmatprep.subr.mxu0 %v1472
    %1495 = vmatpush1.msra.mxu0 %v1471
    %1496 = vmatprep.subr.mxu0 %v1475
    %1497 = vmatpush1.msra.mxu0 %v1474
    %1498 = vmatprep.subr.mxu0 %v1478
    %1499 = vmatpush1.msra.mxu0 %v1477
    %1500 = vmatprep.subr.mxu0 %v1481
    %1501 = vmatpush1.msra.mxu0 %v1480
    %1502 = vmatprep.subr.mxu0 %v1484
    %1503 = vmatpush1.msra.mxu0 %v1483
    %1504 = vmatprep.subr.mxu0 0.0
    %1505 = vmatpush1.msra.mxu0 0.0
    %1506 = vmatprep.subr.mxu0 0.0
    %1507 = vmatpush1.msra.mxu0 0.0
    %1508 = vmatprep.subr.mxu0 0.0
    %1509 = vmatpush1.msra.mxu0 0.0
    %1510 = vmatprep.subr.mxu0 0.0
    %1511 = vmatpush1.msra.mxu0 0.0
    %1512 = vmatprep.subr.mxu0 0.0
    %1513 = vmatpush1.msra.mxu0 0.0
    %1514 = vmatprep.subr.mxu0 0.0
    %1515 = vmatpush1.msra.mxu0 0.0
    %1516 = vmatprep.subr.mxu0 0.0
    %1517 = vmatpush1.msra.mxu0 0.0
    %1518 = vmatprep.subr.mxu0 0.0
    %1519 = vmatpush1.msra.mxu0 0.0
    %1520 = vmatprep.subr.mxu0 0.0
    %1521 = vmatpush1.msra.mxu0 0.0
    %1522 = vmatprep.subr.mxu0 0.0
    %1523 = vmatpush1.msra.mxu0 0.0
    %1524 = vmatprep.subr.mxu0 0.0
    %1525 = vmatpush1.msra.mxu0 0.0
    %1526 = vmatprep.subr.mxu0 0.0
    %1527 = vmatpush1.msra.mxu0 0.0
    %1528 = vmatprep.subr.mxu0 0.0
    %1529 = vmatpush1.msra.mxu0 0.0
    %1530 = vmatprep.subr.mxu0 0.0
    %1531 = vmatpush1.msra.mxu0 0.0
    %1532 = vmatprep.subr.mxu0 0.0
    %1533 = vmatpush1.msra.mxu0 0.0
    %1534 = vmatprep.subr.mxu0 0.0
    %1535 = vmatpush1.msra.mxu0 0.0
    %1536 = vmatprep.subr.mxu0 0.0
    %1537 = vmatpush1.msra.mxu0 0.0
    %1538 = vmatprep.subr.mxu0 0.0
    %1539 = vmatpush1.msra.mxu0 0.0
    %1540 = vmatprep.subr.mxu0 0.0
    %1541 = vmatpush1.msra.mxu0 0.0
    %1542 = vmatprep.subr.mxu0 0.0
    %1543 = vmatpush1.msra.mxu0 0.0
    %1544 = vmatprep.subr.mxu0 0.0
    %1545 = vmatpush1.msra.mxu0 0.0
    %1546 = vmatprep.subr.mxu0 0.0
    %1547 = vmatpush1.msra.mxu0 0.0
    %1548 = vmatprep.subr.mxu0 0.0
    %1549 = vmatpush1.msra.mxu0 0.0
    %1550 = vmatprep.subr.mxu0 0.0
    %1551 = vmatpush1.msra.mxu0 0.0
    %1552 = vmatprep.mubr.f32.mxu0 0.0
    %1553 = vmatmul.mubr.f32.gmra.mrb[0].mxu0 %v1486
    %v1554 = vpop.f32.mrb[0].mxu0
    %v1555 = vadd.f32 0.0, %v1554
    %v1556 = vpop.f32.mrb[0].mxu0
    %v1557 = vadd.f32 0.0, %v1556
    %1558 = vdwg.mxu0
    %1559 = vmatprep.subr.mxu0 0.0
    %1560 = vmatpush1.msra.mxu0 %v1464
    %1561 = vmatprep.subr.mxu0 0.0
    %1562 = vmatpush1.msra.mxu0 %v1467
    %1563 = vmatprep.subr.mxu0 0.0
    %1564 = vmatpush1.msra.mxu0 %v1470
    %1565 = vmatprep.subr.mxu0 0.0
    %1566 = vmatpush1.msra.mxu0 %v1473
    %1567 = vmatprep.subr.mxu0 0.0
    %1568 = vmatpush1.msra.mxu0 %v1476
    %1569 = vmatprep.subr.mxu0 0.0
    %1570 = vmatpush1.msra.mxu0 %v1479
    %1571 = vmatprep.subr.mxu0 0.0
    %1572 = vmatpush1.msra.mxu0 %v1482
    %1573 = vmatprep.subr.mxu0 0.0
    %1574 = vmatpush1.msra.mxu0 %v1485
    %1575 = vmatprep.subr.mxu0 0.0
    %1576 = vmatpush1.msra.mxu0 0.0
    %1577 = vmatprep.subr.mxu0 0.0
    %1578 = vmatpush1.msra.mxu0 0.0
    %1579 = vmatprep.subr.mxu0 0.0
    %1580 = vmatpush1.msra.mxu0 0.0
    %1581 = vmatprep.subr.mxu0 0.0
    %1582 = vmatpush1.msra.mxu0 0.0
    %1583 = vmatprep.subr.mxu0 0.0
    %1584 = vmatpush1.msra.mxu0 0.0
    %1585 = vmatprep.subr.mxu0 0.0
    %1586 = vmatpush1.msra.mxu0 0.0
    %1587 = vmatprep.subr.mxu0 0.0
    %1588 = vmatpush1.msra.mxu0 0.0
    %1589 = vmatprep.subr.mxu0 0.0
    %1590 = vmatpush1.msra.mxu0 0.0
    %1591 = vmatprep.subr.mxu0 0.0
    %1592 = vmatpush1.msra.mxu0 0.0
    %1593 = vmatprep.subr.mxu0 0.0
    %1594 = vmatpush1.msra.mxu0 0.0
    %1595 = vmatprep.subr.mxu0 0.0
    %1596 = vmatpush1.msra.mxu0 0.0
    %1597 = vmatprep.subr.mxu0 0.0
    %1598 = vmatpush1.msra.mxu0 0.0
    %1599 = vmatprep.subr.mxu0 0.0
    %1600 = vmatpush1.msra.mxu0 0.0
    %1601 = vmatprep.subr.mxu0 0.0
    %1602 = vmatpush1.msra.mxu0 0.0
    %1603 = vmatprep.subr.mxu0 0.0
    %1604 = vmatpush1.msra.mxu0 0.0
    %1605 = vmatprep.subr.mxu0 0.0
    %1606 = vmatpush1.msra.mxu0 0.0
    %1607 = vmatprep.subr.mxu0 0.0
    %1608 = vmatpush1.msra.mxu0 0.0
    %1609 = vmatprep.subr.mxu0 0.0
    %1610 = vmatpush1.msra.mxu0 0.0
    %1611 = vmatprep.subr.mxu0 0.0
    %1612 = vmatpush1.msra.mxu0 0.0
    %1613 = vmatprep.subr.mxu0 0.0
    %1614 = vmatpush1.msra.mxu0 0.0
    %1615 = vmatprep.subr.mxu0 0.0
    %1616 = vmatpush1.msra.mxu0 0.0
    %1617 = vmatprep.subr.mxu0 0.0
    %1618 = vmatpush1.msra.mxu0 0.0
    %1619 = vmatprep.subr.mxu0 0.0
    %1620 = vmatpush1.msra.mxu0 0.0
    %1621 = vmatprep.subr.mxu0 0.0
    %1622 = vmatpush1.msra.mxu0 0.0
    %1623 = vmatprep.mubr.f32.mxu0 0.0
    %1624 = vmatmul.mubr.f32.gmra.mrb[0].mxu0 %v1486
    %v1625 = vpop.f32.mrb[0].mxu0
    %v1626 = vadd.f32 0.0, %v1625
    %v1627 = vpop.f32.mrb[0].mxu0
    %1628 = vdwg.mxu0
    %v1629 = vadd.f32 %v1459, %v1555
    %v1630 = vadd.f32 %v1460, %v1557
    %v1631 = vxor.u32 %v1629, 2147483648
    %v1632 = vmul.f32 %v1631, 1.442695
    %v1633 = vpow.pop %v1632
    %v1634 = vadd.f32 %v1633, 1.0
    %v1635 = vrcp.pop %v1634
    %v1636 = vmul.f32 1.0, %v1635
    %v1637 = vtanh.pop %v1630
    %v1638 = vxor.u32 %v1630, 2147483648
    %v1639 = vmul.f32 %v1638, 1.442695
    %v1640 = vpow.pop %v1639
    %v1641 = vadd.f32 %v1640, 1.0
    %v1642 = vrcp.pop %v1641
    %v1643 = vmul.f32 1.0, %v1642
    %v1644 = vadd.f32 %v1461, %v1626
    %v1645 = vmul.f32 %v1636, %v1451
    %v1646 = vadd.f32 %v1637, %v1644
    %v1647 = vmul.f32 %v1636, %v1646
    %1649 = vrot.lane.b32.xlu0 %v1647, 64
    %v1650 = vpop.permute.xlu0 %1649
    %v1652 = vadd.f32 %v1645, %v1650
    %v1653 = vtanh.pop %v1652
    %v1654 = vmul.f32 %v1643, %v1653
    %1656 = vrot.lane.b32.xlu0 %v1654, 64
    %v1657 = vpop.permute.xlu0 %1656
    %s1659 = scalar_lea.vmem [#allocation11], 32
    %1660 = vst.msk [vmem:[%s1659] sm:$0xff] %vm847, %v1657
    %s1661 = scalar_lea.vmem [#allocation4], 120
    %v1662 = vld [vmem:[%s1661] sm:$0xff]
    %v1663 = vld [vmem:[%s1661 + $0x8] sm:$0xff]
    %v1664 = vld [vmem:[%s1661 + $0x10] sm:$0xff]
    %v1665 = vld [vmem:[#allocation6] sm:$0xff]
    %v1666 = vld [vmem:[#allocation6 + $0x8] sm:$0xff]
    %v1667 = vld [vmem:[#allocation6 + $0x10] sm:$0xff]
    %v1668 = vld [vmem:[#allocation6 + $0x18] sm:$0xff]
    %v1669 = vld [vmem:[#allocation6 + $0x20] sm:$0xff]
    %v1670 = vld [vmem:[#allocation6 + $0x28] sm:$0xff]
    %v1671 = vld [vmem:[#allocation6 + $0x30] sm:$0xff]
    %v1672 = vld [vmem:[#allocation6 + $0x38] sm:$0xff]
    %v1673 = vld [vmem:[#allocation6 + $0x40] sm:$0xff]
    %v1674 = vld [vmem:[#allocation6 + $0x48] sm:$0xff]
    %v1675 = vld [vmem:[#allocation6 + $0x50] sm:$0xff]
    %v1676 = vld [vmem:[#allocation6 + $0x58] sm:$0xff]
    %v1677 = vld [vmem:[#allocation6 + $0x60] sm:$0xff]
    %v1678 = vld [vmem:[#allocation6 + $0x68] sm:$0xff]
    %v1679 = vld [vmem:[#allocation6 + $0x70] sm:$0xff]
    %v1680 = vld [vmem:[#allocation6 + $0x78] sm:$0xff]
    %v1681 = vld [vmem:[#allocation6 + $0x80] sm:$0xff]
    %v1682 = vld [vmem:[#allocation6 + $0x88] sm:$0xff]
    %v1683 = vld [vmem:[#allocation6 + $0x90] sm:$0xff]
    %v1684 = vld [vmem:[#allocation6 + $0x98] sm:$0xff]
    %v1685 = vld [vmem:[#allocation6 + $0xa0] sm:$0xff]
    %v1686 = vld [vmem:[#allocation6 + $0xa8] sm:$0xff]
    %v1687 = vld [vmem:[#allocation6 + $0xb0] sm:$0xff]
    %v1688 = vld [vmem:[#allocation6 + $0xb8] sm:$0xff]
    %v1689 = vsel %vm550, %v1657, 0
    %1691 = vmatprep.subr.mxu0 %v1666
    %1692 = vmatpush1.msra.mxu0 %v1665
    %1693 = vmatprep.subr.mxu0 %v1669
    %1694 = vmatpush1.msra.mxu0 %v1668
    %1695 = vmatprep.subr.mxu0 %v1672
    %1696 = vmatpush1.msra.mxu0 %v1671
    %1697 = vmatprep.subr.mxu0 %v1675
    %1698 = vmatpush1.msra.mxu0 %v1674
    %1699 = vmatprep.subr.mxu0 %v1678
    %1700 = vmatpush1.msra.mxu0 %v1677
    %1701 = vmatprep.subr.mxu0 %v1681
    %1702 = vmatpush1.msra.mxu0 %v1680
    %1703 = vmatprep.subr.mxu0 %v1684
    %1704 = vmatpush1.msra.mxu0 %v1683
    %1705 = vmatprep.subr.mxu0 %v1687
    %1706 = vmatpush1.msra.mxu0 %v1686
    %1707 = vmatprep.subr.mxu0 0.0
    %1708 = vmatpush1.msra.mxu0 0.0
    %1709 = vmatprep.subr.mxu0 0.0
    %1710 = vmatpush1.msra.mxu0 0.0
    %1711 = vmatprep.subr.mxu0 0.0
    %1712 = vmatpush1.msra.mxu0 0.0
    %1713 = vmatprep.subr.mxu0 0.0
    %1714 = vmatpush1.msra.mxu0 0.0
    %1715 = vmatprep.subr.mxu0 0.0
    %1716 = vmatpush1.msra.mxu0 0.0
    %1717 = vmatprep.subr.mxu0 0.0
    %1718 = vmatpush1.msra.mxu0 0.0
    %1719 = vmatprep.subr.mxu0 0.0
    %1720 = vmatpush1.msra.mxu0 0.0
    %1721 = vmatprep.subr.mxu0 0.0
    %1722 = vmatpush1.msra.mxu0 0.0
    %1723 = vmatprep.subr.mxu0 0.0
    %1724 = vmatpush1.msra.mxu0 0.0
    %1725 = vmatprep.subr.mxu0 0.0
    %1726 = vmatpush1.msra.mxu0 0.0
    %1727 = vmatprep.subr.mxu0 0.0
    %1728 = vmatpush1.msra.mxu0 0.0
    %1729 = vmatprep.subr.mxu0 0.0
    %1730 = vmatpush1.msra.mxu0 0.0
    %1731 = vmatprep.subr.mxu0 0.0
    %1732 = vmatpush1.msra.mxu0 0.0
    %1733 = vmatprep.subr.mxu0 0.0
    %1734 = vmatpush1.msra.mxu0 0.0
    %1735 = vmatprep.subr.mxu0 0.0
    %1736 = vmatpush1.msra.mxu0 0.0
    %1737 = vmatprep.subr.mxu0 0.0
    %1738 = vmatpush1.msra.mxu0 0.0
    %1739 = vmatprep.subr.mxu0 0.0
    %1740 = vmatpush1.msra.mxu0 0.0
    %1741 = vmatprep.subr.mxu0 0.0
    %1742 = vmatpush1.msra.mxu0 0.0
    %1743 = vmatprep.subr.mxu0 0.0
    %1744 = vmatpush1.msra.mxu0 0.0
    %1745 = vmatprep.subr.mxu0 0.0
    %1746 = vmatpush1.msra.mxu0 0.0
    %1747 = vmatprep.subr.mxu0 0.0
    %1748 = vmatpush1.msra.mxu0 0.0
    %1749 = vmatprep.subr.mxu0 0.0
    %1750 = vmatpush1.msra.mxu0 0.0
    %1751 = vmatprep.subr.mxu0 0.0
    %1752 = vmatpush1.msra.mxu0 0.0
    %1753 = vmatprep.subr.mxu0 0.0
    %1754 = vmatpush1.msra.mxu0 0.0
    %1755 = vmatprep.mubr.f32.mxu0 0.0
    %1756 = vmatmul.mubr.f32.gmra.mrb[0].mxu0 %v1689
    %v1757 = vpop.f32.mrb[0].mxu0
    %v1758 = vadd.f32 0.0, %v1757
    %v1759 = vpop.f32.mrb[0].mxu0
    %v1760 = vadd.f32 0.0, %v1759
    %1761 = vdwg.mxu0
    %1762 = vmatprep.subr.mxu0 0.0
    %1763 = vmatpush1.msra.mxu0 %v1667
    %1764 = vmatprep.subr.mxu0 0.0
    %1765 = vmatpush1.msra.mxu0 %v1670
    %1766 = vmatprep.subr.mxu0 0.0
    %1767 = vmatpush1.msra.mxu0 %v1673
    %1768 = vmatprep.subr.mxu0 0.0
    %1769 = vmatpush1.msra.mxu0 %v1676
    %1770 = vmatprep.subr.mxu0 0.0
    %1771 = vmatpush1.msra.mxu0 %v1679
    %1772 = vmatprep.subr.mxu0 0.0
    %1773 = vmatpush1.msra.mxu0 %v1682
    %1774 = vmatprep.subr.mxu0 0.0
    %1775 = vmatpush1.msra.mxu0 %v1685
    %1776 = vmatprep.subr.mxu0 0.0
    %1777 = vmatpush1.msra.mxu0 %v1688
    %1778 = vmatprep.subr.mxu0 0.0
    %1779 = vmatpush1.msra.mxu0 0.0
    %1780 = vmatprep.subr.mxu0 0.0
    %1781 = vmatpush1.msra.mxu0 0.0
    %1782 = vmatprep.subr.mxu0 0.0
    %1783 = vmatpush1.msra.mxu0 0.0
    %1784 = vmatprep.subr.mxu0 0.0
    %1785 = vmatpush1.msra.mxu0 0.0
    %1786 = vmatprep.subr.mxu0 0.0
    %1787 = vmatpush1.msra.mxu0 0.0
    %1788 = vmatprep.subr.mxu0 0.0
    %1789 = vmatpush1.msra.mxu0 0.0
    %1790 = vmatprep.subr.mxu0 0.0
    %1791 = vmatpush1.msra.mxu0 0.0
    %1792 = vmatprep.subr.mxu0 0.0
    %1793 = vmatpush1.msra.mxu0 0.0
    %1794 = vmatprep.subr.mxu0 0.0
    %1795 = vmatpush1.msra.mxu0 0.0
    %1796 = vmatprep.subr.mxu0 0.0
    %1797 = vmatpush1.msra.mxu0 0.0
    %1798 = vmatprep.subr.mxu0 0.0
    %1799 = vmatpush1.msra.mxu0 0.0
    %1800 = vmatprep.subr.mxu0 0.0
    %1801 = vmatpush1.msra.mxu0 0.0
    %1802 = vmatprep.subr.mxu0 0.0
    %1803 = vmatpush1.msra.mxu0 0.0
    %1804 = vmatprep.subr.mxu0 0.0
    %1805 = vmatpush1.msra.mxu0 0.0
    %1806 = vmatprep.subr.mxu0 0.0
    %1807 = vmatpush1.msra.mxu0 0.0
    %1808 = vmatprep.subr.mxu0 0.0
    %1809 = vmatpush1.msra.mxu0 0.0
    %1810 = vmatprep.subr.mxu0 0.0
    %1811 = vmatpush1.msra.mxu0 0.0
    %1812 = vmatprep.subr.mxu0 0.0
    %1813 = vmatpush1.msra.mxu0 0.0
    %1814 = vmatprep.subr.mxu0 0.0
    %1815 = vmatpush1.msra.mxu0 0.0
    %1816 = vmatprep.subr.mxu0 0.0
    %1817 = vmatpush1.msra.mxu0 0.0
    %1818 = vmatprep.subr.mxu0 0.0
    %1819 = vmatpush1.msra.mxu0 0.0
    %1820 = vmatprep.subr.mxu0 0.0
    %1821 = vmatpush1.msra.mxu0 0.0
    %1822 = vmatprep.subr.mxu0 0.0
    %1823 = vmatpush1.msra.mxu0 0.0
    %1824 = vmatprep.subr.mxu0 0.0
    %1825 = vmatpush1.msra.mxu0 0.0
    %1826 = vmatprep.mubr.f32.mxu0 0.0
    %1827 = vmatmul.mubr.f32.gmra.mrb[0].mxu0 %v1689
    %v1828 = vpop.f32.mrb[0].mxu0
    %v1829 = vadd.f32 0.0, %v1828
    %v1830 = vpop.f32.mrb[0].mxu0
    %1831 = vdwg.mxu0
    %v1832 = vadd.f32 %v1662, %v1758
    %v1833 = vadd.f32 %v1663, %v1760
    %v1834 = vxor.u32 %v1832, 2147483648
    %v1835 = vmul.f32 %v1834, 1.442695
    %v1836 = vpow.pop %v1835
    %v1837 = vadd.f32 %v1836, 1.0
    %v1838 = vrcp.pop %v1837
    %v1839 = vmul.f32 1.0, %v1838
    %v1840 = vtanh.pop %v1833
    %v1841 = vxor.u32 %v1833, 2147483648
    %v1842 = vmul.f32 %v1841, 1.442695
    %v1843 = vpow.pop %v1842
    %v1844 = vadd.f32 %v1843, 1.0
    %v1845 = vrcp.pop %v1844
    %v1846 = vmul.f32 1.0, %v1845
    %v1847 = vadd.f32 %v1664, %v1829
    %v1848 = vmul.f32 %v1839, %v1654
    %v1849 = vadd.f32 %v1840, %v1847
    %v1850 = vmul.f32 %v1839, %v1849
    %1852 = vrot.lane.b32.xlu0 %v1850, 64
    %v1853 = vpop.permute.xlu0 %1852
    %v1855 = vadd.f32 %v1848, %v1853
    %v1856 = vtanh.pop %v1855
    %v1857 = vmul.f32 %v1846, %v1856
    %1859 = vrot.lane.b32.xlu0 %v1857, 64
    %v1860 = vpop.permute.xlu0 %1859
    %s1862 = scalar_lea.vmem [#allocation11], 40
    %1863 = vst.msk [vmem:[%s1862] sm:$0xff] %vm847, %v1860
    %s1864 = scalar_lea.vmem [#allocation4], 144
    %v1865 = vld [vmem:[%s1864] sm:$0xff]
    %v1866 = vld [vmem:[%s1864 + $0x8] sm:$0xff]
    %v1867 = vld [vmem:[%s1864 + $0x10] sm:$0xff]
    %v1868 = vld [vmem:[#allocation6] sm:$0xff]
    %v1869 = vld [vmem:[#allocation6 + $0x8] sm:$0xff]
    %v1870 = vld [vmem:[#allocation6 + $0x10] sm:$0xff]
    %v1871 = vld [vmem:[#allocation6 + $0x18] sm:$0xff]
    %v1872 = vld [vmem:[#allocation6 + $0x20] sm:$0xff]
    %v1873 = vld [vmem:[#allocation6 + $0x28] sm:$0xff]
    %v1874 = vld [vmem:[#allocation6 + $0x30] sm:$0xff]
    %v1875 = vld [vmem:[#allocation6 + $0x38] sm:$0xff]
    %v1876 = vld [vmem:[#allocation6 + $0x40] sm:$0xff]
    %v1877 = vld [vmem:[#allocation6 + $0x48] sm:$0xff]
    %v1878 = vld [vmem:[#allocation6 + $0x50] sm:$0xff]
    %v1879 = vld [vmem:[#allocation6 + $0x58] sm:$0xff]
    %v1880 = vld [vmem:[#allocation6 + $0x60] sm:$0xff]
    %v1881 = vld [vmem:[#allocation6 + $0x68] sm:$0xff]
    %v1882 = vld [vmem:[#allocation6 + $0x70] sm:$0xff]
    %v1883 = vld [vmem:[#allocation6 + $0x78] sm:$0xff]
    %v1884 = vld [vmem:[#allocation6 + $0x80] sm:$0xff]
    %v1885 = vld [vmem:[#allocation6 + $0x88] sm:$0xff]
    %v1886 = vld [vmem:[#allocation6 + $0x90] sm:$0xff]
    %v1887 = vld [vmem:[#allocation6 + $0x98] sm:$0xff]
    %v1888 = vld [vmem:[#allocation6 + $0xa0] sm:$0xff]
    %v1889 = vld [vmem:[#allocation6 + $0xa8] sm:$0xff]
    %v1890 = vld [vmem:[#allocation6 + $0xb0] sm:$0xff]
    %v1891 = vld [vmem:[#allocation6 + $0xb8] sm:$0xff]
    %v1892 = vsel %vm550, %v1860, 0
    %1894 = vmatprep.subr.mxu0 %v1869
    %1895 = vmatpush1.msra.mxu0 %v1868
    %1896 = vmatprep.subr.mxu0 %v1872
    %1897 = vmatpush1.msra.mxu0 %v1871
    %1898 = vmatprep.subr.mxu0 %v1875
    %1899 = vmatpush1.msra.mxu0 %v1874
    %1900 = vmatprep.subr.mxu0 %v1878
    %1901 = vmatpush1.msra.mxu0 %v1877
    %1902 = vmatprep.subr.mxu0 %v1881
    %1903 = vmatpush1.msra.mxu0 %v1880
    %1904 = vmatprep.subr.mxu0 %v1884
    %1905 = vmatpush1.msra.mxu0 %v1883
    %1906 = vmatprep.subr.mxu0 %v1887
    %1907 = vmatpush1.msra.mxu0 %v1886
    %1908 = vmatprep.subr.mxu0 %v1890
    %1909 = vmatpush1.msra.mxu0 %v1889
    %1910 = vmatprep.subr.mxu0 0.0
    %1911 = vmatpush1.msra.mxu0 0.0
    %1912 = vmatprep.subr.mxu0 0.0
    %1913 = vmatpush1.msra.mxu0 0.0
    %1914 = vmatprep.subr.mxu0 0.0
    %1915 = vmatpush1.msra.mxu0 0.0
    %1916 = vmatprep.subr.mxu0 0.0
    %1917 = vmatpush1.msra.mxu0 0.0
    %1918 = vmatprep.subr.mxu0 0.0
    %1919 = vmatpush1.msra.mxu0 0.0
    %1920 = vmatprep.subr.mxu0 0.0
    %1921 = vmatpush1.msra.mxu0 0.0
    %1922 = vmatprep.subr.mxu0 0.0
    %1923 = vmatpush1.msra.mxu0 0.0
    %1924 = vmatprep.subr.mxu0 0.0
    %1925 = vmatpush1.msra.mxu0 0.0
    %1926 = vmatprep.subr.mxu0 0.0
    %1927 = vmatpush1.msra.mxu0 0.0
    %1928 = vmatprep.subr.mxu0 0.0
    %1929 = vmatpush1.msra.mxu0 0.0
    %1930 = vmatprep.subr.mxu0 0.0
    %1931 = vmatpush1.msra.mxu0 0.0
    %1932 = vmatprep.subr.mxu0 0.0
    %1933 = vmatpush1.msra.mxu0 0.0
    %1934 = vmatprep.subr.mxu0 0.0
    %1935 = vmatpush1.msra.mxu0 0.0
    %1936 = vmatprep.subr.mxu0 0.0
    %1937 = vmatpush1.msra.mxu0 0.0
    %1938 = vmatprep.subr.mxu0 0.0
    %1939 = vmatpush1.msra.mxu0 0.0
    %1940 = vmatprep.subr.mxu0 0.0
    %1941 = vmatpush1.msra.mxu0 0.0
    %1942 = vmatprep.subr.mxu0 0.0
    %1943 = vmatpush1.msra.mxu0 0.0
    %1944 = vmatprep.subr.mxu0 0.0
    %1945 = vmatpush1.msra.mxu0 0.0
    %1946 = vmatprep.subr.mxu0 0.0
    %1947 = vmatpush1.msra.mxu0 0.0
    %1948 = vmatprep.subr.mxu0 0.0
    %1949 = vmatpush1.msra.mxu0 0.0
    %1950 = vmatprep.subr.mxu0 0.0
    %1951 = vmatpush1.msra.mxu0 0.0
    %1952 = vmatprep.subr.mxu0 0.0
    %1953 = vmatpush1.msra.mxu0 0.0
    %1954 = vmatprep.subr.mxu0 0.0
    %1955 = vmatpush1.msra.mxu0 0.0
    %1956 = vmatprep.subr.mxu0 0.0
    %1957 = vmatpush1.msra.mxu0 0.0
    %1958 = vmatprep.mubr.f32.mxu0 0.0
    %1959 = vmatmul.mubr.f32.gmra.mrb[0].mxu0 %v1892
    %v1960 = vpop.f32.mrb[0].mxu0
    %v1961 = vadd.f32 0.0, %v1960
    %v1962 = vpop.f32.mrb[0].mxu0
    %v1963 = vadd.f32 0.0, %v1962
    %1964 = vdwg.mxu0
    %1965 = vmatprep.subr.mxu0 0.0
    %1966 = vmatpush1.msra.mxu0 %v1870
    %1967 = vmatprep.subr.mxu0 0.0
    %1968 = vmatpush1.msra.mxu0 %v1873
    %1969 = vmatprep.subr.mxu0 0.0
    %1970 = vmatpush1.msra.mxu0 %v1876
    %1971 = vmatprep.subr.mxu0 0.0
    %1972 = vmatpush1.msra.mxu0 %v1879
    %1973 = vmatprep.subr.mxu0 0.0
    %1974 = vmatpush1.msra.mxu0 %v1882
    %1975 = vmatprep.subr.mxu0 0.0
    %1976 = vmatpush1.msra.mxu0 %v1885
    %1977 = vmatprep.subr.mxu0 0.0
    %1978 = vmatpush1.msra.mxu0 %v1888
    %1979 = vmatprep.subr.mxu0 0.0
    %1980 = vmatpush1.msra.mxu0 %v1891
    %1981 = vmatprep.subr.mxu0 0.0
    %1982 = vmatpush1.msra.mxu0 0.0
    %1983 = vmatprep.subr.mxu0 0.0
    %1984 = vmatpush1.msra.mxu0 0.0
    %1985 = vmatprep.subr.mxu0 0.0
    %1986 = vmatpush1.msra.mxu0 0.0
    %1987 = vmatprep.subr.mxu0 0.0
    %1988 = vmatpush1.msra.mxu0 0.0
    %1989 = vmatprep.subr.mxu0 0.0
    %1990 = vmatpush1.msra.mxu0 0.0
    %1991 = vmatprep.subr.mxu0 0.0
    %1992 = vmatpush1.msra.mxu0 0.0
    %1993 = vmatprep.subr.mxu0 0.0
    %1994 = vmatpush1.msra.mxu0 0.0
    %1995 = vmatprep.subr.mxu0 0.0
    %1996 = vmatpush1.msra.mxu0 0.0
    %1997 = vmatprep.subr.mxu0 0.0
    %1998 = vmatpush1.msra.mxu0 0.0
    %1999 = vmatprep.subr.mxu0 0.0
    %2000 = vmatpush1.msra.mxu0 0.0
    %2001 = vmatprep.subr.mxu0 0.0
    %2002 = vmatpush1.msra.mxu0 0.0
    %2003 = vmatprep.subr.mxu0 0.0
    %2004 = vmatpush1.msra.mxu0 0.0
    %2005 = vmatprep.subr.mxu0 0.0
    %2006 = vmatpush1.msra.mxu0 0.0
    %2007 = vmatprep.subr.mxu0 0.0
    %2008 = vmatpush1.msra.mxu0 0.0
    %2009 = vmatprep.subr.mxu0 0.0
    %2010 = vmatpush1.msra.mxu0 0.0
    %2011 = vmatprep.subr.mxu0 0.0
    %2012 = vmatpush1.msra.mxu0 0.0
    %2013 = vmatprep.subr.mxu0 0.0
    %2014 = vmatpush1.msra.mxu0 0.0
    %2015 = vmatprep.subr.mxu0 0.0
    %2016 = vmatpush1.msra.mxu0 0.0
    %2017 = vmatprep.subr.mxu0 0.0
    %2018 = vmatpush1.msra.mxu0 0.0
    %2019 = vmatprep.subr.mxu0 0.0
    %2020 = vmatpush1.msra.mxu0 0.0
    %2021 = vmatprep.subr.mxu0 0.0
    %2022 = vmatpush1.msra.mxu0 0.0
    %2023 = vmatprep.subr.mxu0 0.0
    %2024 = vmatpush1.msra.mxu0 0.0
    %2025 = vmatprep.subr.mxu0 0.0
    %2026 = vmatpush1.msra.mxu0 0.0
    %2027 = vmatprep.subr.mxu0 0.0
    %2028 = vmatpush1.msra.mxu0 0.0
    %2029 = vmatprep.mubr.f32.mxu0 0.0
    %2030 = vmatmul.mubr.f32.gmra.mrb[0].mxu0 %v1892
    %v2031 = vpop.f32.mrb[0].mxu0
    %v2032 = vadd.f32 0.0, %v2031
    %v2033 = vpop.f32.mrb[0].mxu0
    %2034 = vdwg.mxu0
    %v2035 = vadd.f32 %v1865, %v1961
    %v2036 = vadd.f32 %v1866, %v1963
    %v2037 = vxor.u32 %v2035, 2147483648
    %v2038 = vmul.f32 %v2037, 1.442695
    %v2039 = vpow.pop %v2038
    %v2040 = vadd.f32 %v2039, 1.0
    %v2041 = vrcp.pop %v2040
    %v2042 = vmul.f32 1.0, %v2041
    %v2043 = vtanh.pop %v2036
    %v2044 = vxor.u32 %v2036, 2147483648
    %v2045 = vmul.f32 %v2044, 1.442695
    %v2046 = vpow.pop %v2045
    %v2047 = vadd.f32 %v2046, 1.0
    %v2048 = vrcp.pop %v2047
    %v2049 = vmul.f32 1.0, %v2048
    %v2050 = vadd.f32 %v1867, %v2032
    %v2051 = vmul.f32 %v2042, %v1857
    %v2052 = vadd.f32 %v2043, %v2050
    %v2053 = vmul.f32 %v2042, %v2052
    %2055 = vrot.lane.b32.xlu0 %v2053, 64
    %v2056 = vpop.permute.xlu0 %2055
    %v2058 = vadd.f32 %v2051, %v2056
    %v2059 = vtanh.pop %v2058
    %v2060 = vmul.f32 %v2049, %v2059
    %2062 = vrot.lane.b32.xlu0 %v2060, 64
    %v2063 = vpop.permute.xlu0 %2062
    %s2065 = scalar_lea.vmem [#allocation11], 48
    %2066 = vst.msk [vmem:[%s2065] sm:$0xff] %vm847, %v2063
    %s2067 = scalar_lea.vmem [#allocation4], 168
    %v2068 = vld [vmem:[%s2067] sm:$0xff]
    %v2069 = vld [vmem:[%s2067 + $0x8] sm:$0xff]
    %v2070 = vld [vmem:[%s2067 + $0x10] sm:$0xff]
    %v2071 = vld [vmem:[#allocation6] sm:$0xff]
    %v2072 = vld [vmem:[#allocation6 + $0x8] sm:$0xff]
    %v2073 = vld [vmem:[#allocation6 + $0x10] sm:$0xff]
    %v2074 = vld [vmem:[#allocation6 + $0x18] sm:$0xff]
    %v2075 = vld [vmem:[#allocation6 + $0x20] sm:$0xff]
    %v2076 = vld [vmem:[#allocation6 + $0x28] sm:$0xff]
    %v2077 = vld [vmem:[#allocation6 + $0x30] sm:$0xff]
    %v2078 = vld [vmem:[#allocation6 + $0x38] sm:$0xff]
    %v2079 = vld [vmem:[#allocation6 + $0x40] sm:$0xff]
    %v2080 = vld [vmem:[#allocation6 + $0x48] sm:$0xff]
    %v2081 = vld [vmem:[#allocation6 + $0x50] sm:$0xff]
    %v2082 = vld [vmem:[#allocation6 + $0x58] sm:$0xff]
    %v2083 = vld [vmem:[#allocation6 + $0x60] sm:$0xff]
    %v2084 = vld [vmem:[#allocation6 + $0x68] sm:$0xff]
    %v2085 = vld [vmem:[#allocation6 + $0x70] sm:$0xff]
    %v2086 = vld [vmem:[#allocation6 + $0x78] sm:$0xff]
    %v2087 = vld [vmem:[#allocation6 + $0x80] sm:$0xff]
    %v2088 = vld [vmem:[#allocation6 + $0x88] sm:$0xff]
    %v2089 = vld [vmem:[#allocation6 + $0x90] sm:$0xff]
    %v2090 = vld [vmem:[#allocation6 + $0x98] sm:$0xff]
    %v2091 = vld [vmem:[#allocation6 + $0xa0] sm:$0xff]
    %v2092 = vld [vmem:[#allocation6 + $0xa8] sm:$0xff]
    %v2093 = vld [vmem:[#allocation6 + $0xb0] sm:$0xff]
    %v2094 = vld [vmem:[#allocation6 + $0xb8] sm:$0xff]
    %v2095 = vsel %vm550, %v2063, 0
    %2097 = vmatprep.subr.mxu0 %v2072
    %2098 = vmatpush1.msra.mxu0 %v2071
    %2099 = vmatprep.subr.mxu0 %v2075
    %2100 = vmatpush1.msra.mxu0 %v2074
    %2101 = vmatprep.subr.mxu0 %v2078
    %2102 = vmatpush1.msra.mxu0 %v2077
    %2103 = vmatprep.subr.mxu0 %v2081
    %2104 = vmatpush1.msra.mxu0 %v2080
    %2105 = vmatprep.subr.mxu0 %v2084
    %2106 = vmatpush1.msra.mxu0 %v2083
    %2107 = vmatprep.subr.mxu0 %v2087
    %2108 = vmatpush1.msra.mxu0 %v2086
    %2109 = vmatprep.subr.mxu0 %v2090
    %2110 = vmatpush1.msra.mxu0 %v2089
    %2111 = vmatprep.subr.mxu0 %v2093
    %2112 = vmatpush1.msra.mxu0 %v2092
    %2113 = vmatprep.subr.mxu0 0.0
    %2114 = vmatpush1.msra.mxu0 0.0
    %2115 = vmatprep.subr.mxu0 0.0
    %2116 = vmatpush1.msra.mxu0 0.0
    %2117 = vmatprep.subr.mxu0 0.0
    %2118 = vmatpush1.msra.mxu0 0.0
    %2119 = vmatprep.subr.mxu0 0.0
    %2120 = vmatpush1.msra.mxu0 0.0
    %2121 = vmatprep.subr.mxu0 0.0
    %2122 = vmatpush1.msra.mxu0 0.0
    %2123 = vmatprep.subr.mxu0 0.0
    %2124 = vmatpush1.msra.mxu0 0.0
    %2125 = vmatprep.subr.mxu0 0.0
    %2126 = vmatpush1.msra.mxu0 0.0
    %2127 = vmatprep.subr.mxu0 0.0
    %2128 = vmatpush1.msra.mxu0 0.0
    %2129 = vmatprep.subr.mxu0 0.0
    %2130 = vmatpush1.msra.mxu0 0.0
    %2131 = vmatprep.subr.mxu0 0.0
    %2132 = vmatpush1.msra.mxu0 0.0
    %2133 = vmatprep.subr.mxu0 0.0
    %2134 = vmatpush1.msra.mxu0 0.0
    %2135 = vmatprep.subr.mxu0 0.0
    %2136 = vmatpush1.msra.mxu0 0.0
    %2137 = vmatprep.subr.mxu0 0.0
    %2138 = vmatpush1.msra.mxu0 0.0
    %2139 = vmatprep.subr.mxu0 0.0
    %2140 = vmatpush1.msra.mxu0 0.0
    %2141 = vmatprep.subr.mxu0 0.0
    %2142 = vmatpush1.msra.mxu0 0.0
    %2143 = vmatprep.subr.mxu0 0.0
    %2144 = vmatpush1.msra.mxu0 0.0
    %2145 = vmatprep.subr.mxu0 0.0
    %2146 = vmatpush1.msra.mxu0 0.0
    %2147 = vmatprep.subr.mxu0 0.0
    %2148 = vmatpush1.msra.mxu0 0.0
    %2149 = vmatprep.subr.mxu0 0.0
    %2150 = vmatpush1.msra.mxu0 0.0
    %2151 = vmatprep.subr.mxu0 0.0
    %2152 = vmatpush1.msra.mxu0 0.0
    %2153 = vmatprep.subr.mxu0 0.0
    %2154 = vmatpush1.msra.mxu0 0.0
    %2155 = vmatprep.subr.mxu0 0.0
    %2156 = vmatpush1.msra.mxu0 0.0
    %2157 = vmatprep.subr.mxu0 0.0
    %2158 = vmatpush1.msra.mxu0 0.0
    %2159 = vmatprep.subr.mxu0 0.0
    %2160 = vmatpush1.msra.mxu0 0.0
    %2161 = vmatprep.mubr.f32.mxu0 0.0
    %2162 = vmatmul.mubr.f32.gmra.mrb[0].mxu0 %v2095
    %v2163 = vpop.f32.mrb[0].mxu0
    %v2164 = vadd.f32 0.0, %v2163
    %v2165 = vpop.f32.mrb[0].mxu0
    %v2166 = vadd.f32 0.0, %v2165
    %2167 = vdwg.mxu0
    %2168 = vmatprep.subr.mxu0 0.0
    %2169 = vmatpush1.msra.mxu0 %v2073
    %2170 = vmatprep.subr.mxu0 0.0
    %2171 = vmatpush1.msra.mxu0 %v2076
    %2172 = vmatprep.subr.mxu0 0.0
    %2173 = vmatpush1.msra.mxu0 %v2079
    %2174 = vmatprep.subr.mxu0 0.0
    %2175 = vmatpush1.msra.mxu0 %v2082
    %2176 = vmatprep.subr.mxu0 0.0
    %2177 = vmatpush1.msra.mxu0 %v2085
    %2178 = vmatprep.subr.mxu0 0.0
    %2179 = vmatpush1.msra.mxu0 %v2088
    %2180 = vmatprep.subr.mxu0 0.0
    %2181 = vmatpush1.msra.mxu0 %v2091
    %2182 = vmatprep.subr.mxu0 0.0
    %2183 = vmatpush1.msra.mxu0 %v2094
    %2184 = vmatprep.subr.mxu0 0.0
    %2185 = vmatpush1.msra.mxu0 0.0
    %2186 = vmatprep.subr.mxu0 0.0
    %2187 = vmatpush1.msra.mxu0 0.0
    %2188 = vmatprep.subr.mxu0 0.0
    %2189 = vmatpush1.msra.mxu0 0.0
    %2190 = vmatprep.subr.mxu0 0.0
    %2191 = vmatpush1.msra.mxu0 0.0
    %2192 = vmatprep.subr.mxu0 0.0
    %2193 = vmatpush1.msra.mxu0 0.0
    %2194 = vmatprep.subr.mxu0 0.0
    %2195 = vmatpush1.msra.mxu0 0.0
    %2196 = vmatprep.subr.mxu0 0.0
    %2197 = vmatpush1.msra.mxu0 0.0
    %2198 = vmatprep.subr.mxu0 0.0
    %2199 = vmatpush1.msra.mxu0 0.0
    %2200 = vmatprep.subr.mxu0 0.0
    %2201 = vmatpush1.msra.mxu0 0.0
    %2202 = vmatprep.subr.mxu0 0.0
    %2203 = vmatpush1.msra.mxu0 0.0
    %2204 = vmatprep.subr.mxu0 0.0
    %2205 = vmatpush1.msra.mxu0 0.0
    %2206 = vmatprep.subr.mxu0 0.0
    %2207 = vmatpush1.msra.mxu0 0.0
    %2208 = vmatprep.subr.mxu0 0.0
    %2209 = vmatpush1.msra.mxu0 0.0
    %2210 = vmatprep.subr.mxu0 0.0
    %2211 = vmatpush1.msra.mxu0 0.0
    %2212 = vmatprep.subr.mxu0 0.0
    %2213 = vmatpush1.msra.mxu0 0.0
    %2214 = vmatprep.subr.mxu0 0.0
    %2215 = vmatpush1.msra.mxu0 0.0
    %2216 = vmatprep.subr.mxu0 0.0
    %2217 = vmatpush1.msra.mxu0 0.0
    %2218 = vmatprep.subr.mxu0 0.0
    %2219 = vmatpush1.msra.mxu0 0.0
    %2220 = vmatprep.subr.mxu0 0.0
    %2221 = vmatpush1.msra.mxu0 0.0
    %2222 = vmatprep.subr.mxu0 0.0
    %2223 = vmatpush1.msra.mxu0 0.0
    %2224 = vmatprep.subr.mxu0 0.0
    %2225 = vmatpush1.msra.mxu0 0.0
    %2226 = vmatprep.subr.mxu0 0.0
    %2227 = vmatpush1.msra.mxu0 0.0
    %2228 = vmatprep.subr.mxu0 0.0
    %2229 = vmatpush1.msra.mxu0 0.0
    %2230 = vmatprep.subr.mxu0 0.0
    %2231 = vmatpush1.msra.mxu0 0.0
    %2232 = vmatprep.mubr.f32.mxu0 0.0
    %2233 = vmatmul.mubr.f32.gmra.mrb[0].mxu0 %v2095
    %v2234 = vpop.f32.mrb[0].mxu0
    %v2235 = vadd.f32 0.0, %v2234
    %v2236 = vpop.f32.mrb[0].mxu0
    %2237 = vdwg.mxu0
    %v2238 = vadd.f32 %v2068, %v2164
    %v2239 = vadd.f32 %v2069, %v2166
    %v2240 = vxor.u32 %v2238, 2147483648
    %v2241 = vmul.f32 %v2240, 1.442695
    %v2242 = vpow.pop %v2241
    %v2243 = vadd.f32 %v2242, 1.0
    %v2244 = vrcp.pop %v2243
    %v2245 = vmul.f32 1.0, %v2244
    %v2246 = vtanh.pop %v2239
    %v2247 = vxor.u32 %v2239, 2147483648
    %v2248 = vmul.f32 %v2247, 1.442695
    %v2249 = vpow.pop %v2248
    %v2250 = vadd.f32 %v2249, 1.0
    %v2251 = vrcp.pop %v2250
    %v2252 = vmul.f32 1.0, %v2251
    %v2253 = vadd.f32 %v2070, %v2235
    %v2254 = vmul.f32 %v2245, %v2060
    %v2255 = vadd.f32 %v2246, %v2253
    %v2256 = vmul.f32 %v2245, %v2255
    %2258 = vrot.lane.b32.xlu0 %v2256, 64
    %v2259 = vpop.permute.xlu0 %2258
    %v2261 = vadd.f32 %v2254, %v2259
    %v2262 = vtanh.pop %v2261
    %v2263 = vmul.f32 %v2252, %v2262
    %2265 = vrot.lane.b32.xlu0 %v2263, 64
    %v2266 = vpop.permute.xlu0 %2265
    %s2268 = scalar_lea.vmem [#allocation11], 56
    %2269 = vst.msk [vmem:[%s2268] sm:$0xff] %vm847, %v2266
    %2270 = vst.msk [vmem:[#allocation2] sm:$0xff] %vm550, %v2266
    // Predicated region
    $region34: #{tpu_custom_call.1} parent=1 // pred_check
      %p2271 = pneg %p31
    $region35: #{tpu_custom_call.1} parent=1 // pred_check_branch
      %2273 = sbr.rel (%p2271) target = $region37
    $region36: #{tpu_custom_call.1} parent=1 // pred_region
      %2274 = vst.msk [vmem:[#allocation12] sm:$0xff] %vm550, %v2266
    $region37: #{tpu_custom_call.1} parent=1 // pred_fallthru
      _
    // Predicated region
    $region38: #{tpu_custom_call.1} parent=1 // pred_check
      _
    $region39: #{tpu_custom_call.1} parent=1 // pred_check_branch
      %2276 = sbr.rel (0) target = $region41
    $region40: #{tpu_custom_call.1} parent=1 // pred_region
      %s2278 = ssub.s32 1024, 1024
      %2279 = vsyncadd [#allocation10], %s2278
      %s2280 = sshll.u32 [#allocation11], 4
      %s2281 = int_to_ptr.vmem [resolvable:$true] %s2280
      %2286 = dma.vmem_to_hbm [thread:$0]  %s2281, 1024, %s4, [#allocation10], 128, 128, 8
    $region41: #{tpu_custom_call.1} parent=1 // pred_fallthru
      _
    // Predicated region
    $region42: #{tpu_custom_call.1} parent=1 // pred_check
      _
    $region43: #{tpu_custom_call.1} parent=1 // pred_check_branch
      %2288 = sbr.rel (0) target = $region45
    $region44: #{tpu_custom_call.1} parent=1 // pred_region
      %s2290 = ssub.s32 128, 128
      %2291 = vsyncadd [#allocation13], %s2290
      %s2293 = sshll.u32 [#allocation12], 4
      %s2294 = int_to_ptr.vmem [resolvable:$true] %s2293
      %2296 = dma.vmem_to_hbm [thread:$0]  %s2294, 128, %s5, [#allocation13]
    $region45: #{tpu_custom_call.1} parent=1 // pred_fallthru
      _
    // Predicated region
    $region46: #{tpu_custom_call.1} parent=1 // pred_check
      _
    $region47: #{tpu_custom_call.1} parent=1 // pred_check_branch
      %2298 = sbr.rel (0) target = $region49
    $region48: #{tpu_custom_call.1} parent=1 // pred_region
      %2299 = dma.done [#allocation10], 1024
    $region49: #{tpu_custom_call.1} parent=1 // pred_fallthru
      _
    // Predicated region
    $region50: #{tpu_custom_call.1} parent=1 // pred_check
      _
    $region51: #{tpu_custom_call.1} parent=1 // pred_check_branch
      %2301 = sbr.rel (0) target = $region53
    $region52: #{tpu_custom_call.1} parent=1 // pred_region
      %2302 = dma.done [#allocation13], 128
    $region53: #{tpu_custom_call.1} parent=1 // pred_fallthru
      _
    %2303 = vsyncpa [#allocation9], 1
    %2304 = vsyncpa [#allocation10], 1
    %2305 = vsyncpa [#allocation13], 1
  %2306 = vsyncmov [#allocation7]
  %s2307 = vpop.sfrf %2306
  %p2308 = scmp.eq.s32.totalorder %s2307, 0
  %p2309 = pneg %p2308
  %2311 = shalt.err (%p2309)
  %s2312 = scalar_lea.sflag [#allocation7], 1
  %2313 = vsyncmov %s2312
  %s2314 = vpop.sfrf %2313
  %p2315 = scmp.eq.s32.totalorder %s2314, 0
  %p2316 = pneg %p2315
  %2318 = shalt.err (%p2316)

</llo_original>
